<compile_context>
chip_gen: v5e
topology: v5e:2x2
jax: 0.10.0
libtpu: 0.0.40
codegen_flags: <defaults>
</compile_context>

<pallas_src>
import math

import jax
import jax.numpy as jnp
from jax import lax
from jax.experimental import pallas as pl
from jax.experimental.pallas import tpu as pltpu


O_PAD = 128  # final Linear output padded to one full lane width (real O = 3)


def _round_up(x, m):
    return ((x + m - 1) // m) * m


# ----------------------------- Pallas kernel --------------------------------


def make_gru_kernel(num_layers, seq, Bp, Hp):
    """Builds the fused kernel: all GRU layers + final FC in one pallas_call.

    Kernel ref layout:
        x_ref (seq*Bp, Dinp),
        [w_ih (Dl, 3*Hp), w_hh (Hp, 3*Hp), b (1, 3*Hp), b_hn (1, Hp)] * num_layers,
        fc_w (Hp, O_PAD), fc_b (1, O_PAD),
        out_ref (Bp, O_PAD),
        gi_buf (seq*Bp, 3*Hp)            [scratch]
        seq_buf (seq*Bp, Hp)             [scratch, only if num_layers > 1]
    """

    def kernel(*refs):
        x_ref = refs[0]
        layer_refs = refs[1:1 + 4 * num_layers]
        fc_w_ref = refs[1 + 4 * num_layers]
        fc_b_ref = refs[2 + 4 * num_layers]
        out_ref = refs[3 + 4 * num_layers]
        gi_buf = refs[4 + 4 * num_layers]
        seq_buf = refs[5 + 4 * num_layers] if num_layers > 1 else None

        h_last = None
        for l in range(num_layers):
            w_ih_ref, w_hh_ref, b_ref, bhn_ref = layer_refs[4 * l:4 * l + 4]
            is_last = (l == num_layers - 1)
            src_ref = x_ref if l == 0 else seq_buf

            # (1) Batched input projection for the WHOLE sequence: one big MXU
            # matmul, off the serial recurrence chain. Fills MXU rows properly
            # (seq*Bp rows instead of B rows per push).
            gi_buf[...] = (jnp.dot(src_ref[...], w_ih_ref[...],
                                   preferred_element_type=jnp.float32)
                           + b_ref[...])

            # Hoisted, loop-invariant broadcast of b_hn (no per-step re-broadcast).
            bhn_b = jnp.broadcast_to(bhn_ref[...], (Bp, Hp))

            def step(t, h, is_last=is_last, bhn_b=bhn_b, w_hh_ref=w_hh_ref):
                row = pl.multiple_of(t * Bp, Bp)
                gi = gi_buf[pl.ds(row, Bp), :]                       # (Bp, 3*Hp)
                # Only matmul left on the serial chain: h @ W_hh (from VMEM ref).
                gh = jnp.dot(h, w_hh_ref[...],
                             preferred_element_type=jnp.float32)     # (Bp, 3*Hp)
                # Fused r|z sigmoid on one contiguous, lane-aligned slab.
                rz = jax.nn.sigmoid(gi[:, :2 * Hp] + gh[:, :2 * Hp])
                r = rz[:, :Hp]
                z = rz[:, Hp:2 * Hp]
                n = jnp.tanh(gi[:, 2 * Hp:] + r * (gh[:, 2 * Hp:] + bhn_b))
                h_new = n + z * (h - n)   # == (1-z)*n + z*h
                if not is_last:
                    # Dense (8,128)-tiled store into the (single, in-place) buffer.
                    seq_buf[pl.ds(row, Bp), :] = h_new
                return h_new

            h0 = jnp.zeros((Bp, Hp), jnp.float32)
            h_last = lax.fori_loop(0, seq, step, h0,
                                   unroll=True if seq <= 16 else 8)

        # Final Linear(H, 3) (padded to O_PAD lanes -> dense, unmasked store).
        out_ref[...] = (jnp.dot(h_last, fc_w_ref[...],
                                preferred_element_type=jnp.float32)
                        + fc_b_ref[...])

    return kernel


# ------------------------------ Wrapper --------------------------------------


def gru_forward(params, x):
    """Mirrors the PyTorch module's forward.

    x: (1, batch, seq, input_size)  -> returns (batch, 3) float32.
    """
    x = jnp.squeeze(x, axis=0).astype(jnp.float32)    # (B, seq, Din)
    B, seq, Din = x.shape
    Hp = params["Hp"]
    num_layers = len(params["gru"])
    Bp = max(_round_up(B, 8), 8)
    Dinp = params["gru"][0]["w_ih"].shape[0]

    # Time-major, zero-padded, flattened input: (seq*Bp, Dinp).
    x_tm = jnp.transpose(x, (1, 0, 2))                # (seq, B, Din)
    x_pad = jnp.zeros((seq, Bp, Dinp), jnp.float32).at[:, :B, :Din].set(x_tm)
    x_flat = x_pad.reshape(seq * Bp, Dinp)

    flat_inputs = [x_flat]
    for p in params["gru"]:
        flat_inputs += [p["w_ih"], p["w_hh"], p["b"], p["b_hn"]]
    flat_inputs += [params["fc_w"], params["fc_b"]]

    kernel = make_gru_kernel(num_layers, seq, Bp, Hp)

    scratch = [pltpu.VMEM((seq * Bp, 3 * Hp), jnp.float32)]     # gi_buf
    if num_layers > 1:
        scratch.append(pltpu.VMEM((seq * Bp, Hp), jnp.float32))  # seq_buf

    # Explicit VMEM budget: all-resident inputs/outputs + scratch + headroom.
    in_bytes = sum(int(a.size) * 4 for a in flat_inputs)
    scratch_bytes = seq * Bp * 3 * Hp * 4
    if num_layers > 1:
        scratch_bytes += seq * Bp * Hp * 4
    vmem_limit = 2 * in_bytes + scratch_bytes + Bp * O_PAD * 4 + (4 << 20)
    vmem_limit = int(min(max(vmem_limit, 32 << 20), 64 << 20))

    vmem_spec = pl.BlockSpec(memory_space=pltpu.MemorySpace.VMEM)
    out_pad = pl.pallas_call(
        kernel,
        out_shape=jax.ShapeDtypeStruct((Bp, O_PAD), jnp.float32),
        in_specs=[vmem_spec] * len(flat_inputs),
        out_specs=vmem_spec,
        scratch_shapes=scratch,
        compiler_params=pltpu.CompilerParams(vmem_limit_bytes=vmem_limit),
    )(*flat_inputs)
    return out_pad[:B, :3]


# --------------------------- Parameter init ----------------------------------


def init_params(key, input_size, hidden_size, num_layers):
    """Init matching nn.GRU / nn.Linear shapes (uniform(-1/sqrt(H), 1/sqrt(H))).

    Stores the raw PyTorch-layout weights (for the pure-JAX reference) and the
    fused kernel layout: per-gate blocks padded to 128 lanes (lane-aligned gate
    slices), transposed weights, pre-summed biases (b_ir+b_hr, b_iz+b_hz, b_in;
    b_hn kept separate), lane-padded FC.
    """
    k = 1.0 / math.sqrt(hidden_size)
    H = hidden_size
    Hp = _round_up(H, 128)
    params = {"gru": [], "raw": {"layers": []}, "H": H, "Hp": Hp}

    for layer in range(num_layers):
        din = input_size if layer == 0 else hidden_size
        dinp = _round_up(din, 128) if layer == 0 else Hp
        key, k1, k2, k3, k4 = jax.random.split(key, 5)
        w_ih = jax.random.uniform(k1, (3 * H, din), jnp.float32, -k, k)
        w_hh = jax.random.uniform(k2, (3 * H, H), jnp.float32, -k, k)
        b_ih = jax.random.uniform(k3, (3 * H,), jnp.float32, -k, k)
        b_hh = jax.random.uniform(k4, (3 * H,), jnp.float32, -k, k)
        params["raw"]["layers"].append((w_ih, w_hh, b_ih, b_hh))

        w_ih_p = jnp.zeros((dinp, 3 * Hp), jnp.float32)
        w_hh_p = jnp.zeros((Hp, 3 * Hp), jnp.float32)
        b_p = jnp.zeros((1, 3 * Hp), jnp.float32)
        for g in range(3):                 # gate order: r, z, n
            w_ih_p = w_ih_p.at[:din, g * Hp:g * Hp + H].set(
                w_ih[g * H:(g + 1) * H, :].T)
            w_hh_p = w_hh_p.at[:H, g * Hp:g * Hp + H].set(
                w_hh[g * H:(g + 1) * H, :].T)
            bg = b_ih[g * H:(g + 1) * H]
            if g < 2:
                bg = bg + b_hh[g * H:(g + 1) * H]
            b_p = b_p.at[0, g * Hp:g * Hp + H].set(bg)
        bhn_p = jnp.zeros((1, Hp), jnp.float32).at[0, :H].set(b_hh[2 * H:3 * H])

        params["gru"].append({"w_ih": w_ih_p, "w_hh": w_hh_p,
                              "b": b_p, "b_hn": bhn_p})

    key, kf1, kf2 = jax.random.split(key, 3)
    fc_w = jax.random.uniform(kf1, (3, H), jnp.float32, -k, k)
    fc_b = jax.random.uniform(kf2, (3,), jnp.float32, -k, k)
    params["raw"]["fc"] = (fc_w, fc_b)
    params["fc_w"] = jnp.zeros((Hp, O_PAD), jnp.float32).at[:H, :3].set(fc_w.T)
    params["fc_b"] = jnp.zeros((1, O_PAD), jnp.float32).at[0, :3].set(fc_b)
    return params


# ------------------------- Pure-JAX reference ---------------------------------
# Uses the RAW PyTorch-layout weights and the original gate formulation, so it
# independently checks the fused/padded/reformulated kernel math.


def gru_forward_ref(params, x):
    x = jnp.squeeze(x, axis=0).astype(jnp.float32)
    h_seq = jnp.transpose(x, (1, 0, 2))              # (seq, B, Din)
    H = params["raw"]["layers"][0][1].shape[1]

    for (w_ih, w_hh, b_ih, b_hh) in params["raw"]["layers"]:
        def step(h, x_t, w_ih=w_ih, w_hh=w_hh, b_ih=b_ih, b_hh=b_hh):
            r = jax.nn.sigmoid(x_t @ w_ih[:H].T + b_ih[:H]
                               + h @ w_hh[:H].T + b_hh[:H])
            z = jax.nn.sigmoid(x_t @ w_ih[H:2 * H].T + b_ih[H:2 * H]
                               + h @ w_hh[H:2 * H].T + b_hh[H:2 * H])
            n = jnp.tanh(x_t @ w_ih[2 * H:].T + b_ih[2 * H:]
                         + r * (h @ w_hh[2 * H:].T + b_hh[2 * H:]))
            h_new = (1.0 - z) * n + z * h
            return h_new, h_new

        h0 = jnp.zeros((h_seq.shape[1], H), jnp.float32)
        _, h_seq = jax.lax.scan(step, h0, h_seq)

    fc_w, fc_b = params["raw"]["fc"]
    return h_seq[-1] @ fc_w.T + fc_b


# --------------------------------- Main ---------------------------------------


if __name__ == "__main__":
    input_size, hidden_size, num_layers = 4, 32, 2
    batch, seq = 2, 8

    key = jax.random.PRNGKey(0)
    kx, kp = jax.random.split(key)
    # PyTorch module does x.squeeze(0): feed (1, batch, seq, input_size)
    x = jax.random.normal(kx, (1, batch, seq, input_size), dtype=jnp.float32)
    params = init_params(kp, input_size, hidden_size, num_layers)

    out = gru_forward(params, x)
    out = jax.block_until_ready(out)

    assert out.shape == (batch, 3), out.shape
    ref = gru_forward_ref(params, x)
    assert jnp.allclose(out, ref, atol=1e-5, rtol=1e-5), (out, ref)

    print("KERNEL_OK")
</pallas_src>

<mosaic_0001>
module attributes {stable_mosaic.version = 11 : i64} {
  func.func @kernel(%arg0: memref<64x128xf32, #tpu.memory_space<vmem>>, %arg1: memref<128x384xf32, #tpu.memory_space<vmem>>, %arg2: memref<128x384xf32, #tpu.memory_space<vmem>>, %arg3: memref<1x384xf32, #tpu.memory_space<vmem>>, %arg4: memref<1x128xf32, #tpu.memory_space<vmem>>, %arg5: memref<128x384xf32, #tpu.memory_space<vmem>>, %arg6: memref<128x384xf32, #tpu.memory_space<vmem>>, %arg7: memref<1x384xf32, #tpu.memory_space<vmem>>, %arg8: memref<1x128xf32, #tpu.memory_space<vmem>>, %arg9: memref<128x128xf32, #tpu.memory_space<vmem>>, %arg10: memref<1x128xf32, #tpu.memory_space<vmem>>, %arg11: memref<8x128xf32, #tpu.memory_space<vmem>>, %arg12: memref<64x384xf32, #tpu.memory_space<vmem>>, %arg13: memref<64x128xf32, #tpu.memory_space<vmem>>) attributes {dimension_semantics = [], scalar_prefetch = 0 : i64, scratch_operands = 2 : i64, tpu.core_type = #tpu.core_type<tc>} {
    %c0 = arith.constant 0 : index
    %c0_0 = arith.constant 0 : index
    %0 = vector.load %arg0[%c0, %c0_0] : memref<64x128xf32, #tpu.memory_space<vmem>>, vector<64x128xf32>
    %c0_1 = arith.constant 0 : index
    %c0_2 = arith.constant 0 : index
    %1 = vector.load %arg1[%c0_1, %c0_2] : memref<128x384xf32, #tpu.memory_space<vmem>>, vector<128x384xf32>
    %cst = arith.constant dense<0.000000e+00> : vector<64x384xf32>
    %2 = tpu.matmul %0, %1, %cst {dimension_numbers = #tpu.dot_dimension_numbers<[1], [0], [0], [1], [0, 0, 1, 1], [], []>} : vector<64x128xf32>, vector<128x384xf32>, vector<64x384xf32> -> vector<64x384xf32>
    %c0_3 = arith.constant 0 : index
    %c0_4 = arith.constant 0 : index
    %3 = vector.load %arg3[%c0_3, %c0_4] : memref<1x384xf32, #tpu.memory_space<vmem>>, vector<1x384xf32>
    %4 = vector.broadcast %3 : vector<1x384xf32> to vector<64x384xf32>
    %5 = arith.addf %2, %4 : vector<64x384xf32>
    %c0_5 = arith.constant 0 : index
    %c0_6 = arith.constant 0 : index
    %6 = vector.load %arg12[%c0_5, %c0_6] : memref<64x384xf32, #tpu.memory_space<vmem>>, vector<64x384xf32>
    tpu.vector_store %arg12[%c0_5, %c0_6], %5 {strides = array<i32>} : memref<64x384xf32, #tpu.memory_space<vmem>>, vector<64x384xf32>,
    %c0_7 = arith.constant 0 : index
    %c0_8 = arith.constant 0 : index
    %7 = vector.load %arg4[%c0_7, %c0_8] : memref<1x128xf32, #tpu.memory_space<vmem>>, vector<1x128xf32>
    %8 = vector.shape_cast %7 : vector<1x128xf32> to vector<1x128xf32>
    %9 = vector.broadcast %8 : vector<1x128xf32> to vector<8x128xf32>
    %cst_9 = arith.constant 0.000000e+00 : f32
    %10 = vector.broadcast %cst_9 : f32 to vector<8x128xf32>
    %c0_i32 = arith.constant 0 : i32
    %c8_i32 = arith.constant 8 : i32
    %11 = arith.muli %c0_i32, %c8_i32 : i32
    %12 = tpu.assume_multiple %11, 8 : i32
    %13 = arith.index_cast %12 : i32 to index
    %c0_10 = arith.constant 0 : index
    %14 = vector.load %arg12[%13, %c0_10] : memref<64x384xf32, #tpu.memory_space<vmem>>, vector<8x384xf32>
    %c0_11 = arith.constant 0 : index
    %c0_12 = arith.constant 0 : index
    %15 = vector.load %arg2[%c0_11, %c0_12] : memref<128x384xf32, #tpu.memory_space<vmem>>, vector<128x384xf32>
    %cst_13 = arith.constant dense<0.000000e+00> : vector<8x384xf32>
    %16 = tpu.matmul %10, %15, %cst_13 {dimension_numbers = #tpu.dot_dimension_numbers<[1], [0], [0], [1], [0, 0, 1, 1], [], []>} : vector<8x128xf32>, vector<128x384xf32>, vector<8x384xf32> -> vector<8x384xf32>
    %17 = vector.extract_strided_slice %14 {offsets = [0, 0], sizes = [8, 256], strides = [1, 1]} : vector<8x384xf32> to vector<8x256xf32>
    %18 = vector.extract_strided_slice %16 {offsets = [0, 0], sizes = [8, 256], strides = [1, 1]} : vector<8x384xf32> to vector<8x256xf32>
    %19 = arith.addf %17, %18 : vector<8x256xf32>
    %20 = arith.negf %19 : vector<8x256xf32>
    %21 = math.exp %20 : vector<8x256xf32>
    %cst_14 = arith.constant 1.000000e+00 : f32
    %22 = vector.broadcast %cst_14 : f32 to vector<8x256xf32>
    %23 = arith.addf %22, %21 : vector<8x256xf32>
    %24 = arith.divf %22, %23 : vector<8x256xf32>
    %25 = vector.extract_strided_slice %24 {offsets = [0, 0], sizes = [8, 128], strides = [1, 1]} : vector<8x256xf32> to vector<8x128xf32>
    %26 = vector.extract_strided_slice %24 {offsets = [0, 128], sizes = [8, 128], strides = [1, 1]} : vector<8x256xf32> to vector<8x128xf32>
    %27 = vector.extract_strided_slice %14 {offsets = [0, 256], sizes = [8, 128], strides = [1, 1]} : vector<8x384xf32> to vector<8x128xf32>
    %28 = vector.extract_strided_slice %16 {offsets = [0, 256], sizes = [8, 128], strides = [1, 1]} : vector<8x384xf32> to vector<8x128xf32>
    %29 = arith.addf %28, %9 : vector<8x128xf32>
    %30 = arith.mulf %25, %29 : vector<8x128xf32>
    %31 = arith.addf %27, %30 : vector<8x128xf32>
    %32 = math.tanh %31 : vector<8x128xf32>
    %33 = arith.subf %10, %32 : vector<8x128xf32>
    %34 = arith.mulf %26, %33 : vector<8x128xf32>
    %35 = arith.addf %32, %34 : vector<8x128xf32>
    %36 = arith.index_cast %12 : i32 to index
    %c0_15 = arith.constant 0 : index
    %37 = vector.load %arg13[%36, %c0_15] : memref<64x128xf32, #tpu.memory_space<vmem>>, vector<8x128xf32>
    tpu.vector_store %arg13[%36, %c0_15], %35 {strides = array<i32>} : memref<64x128xf32, #tpu.memory_space<vmem>>, vector<8x128xf32>,
    %c1_i32 = arith.constant 1 : i32
    %c8_i32_16 = arith.constant 8 : i32
    %38 = arith.muli %c1_i32, %c8_i32_16 : i32
    %39 = tpu.assume_multiple %38, 8 : i32
    %40 = arith.index_cast %39 : i32 to index
    %c0_17 = arith.constant 0 : index
    %41 = vector.load %arg12[%40, %c0_17] : memref<64x384xf32, #tpu.memory_space<vmem>>, vector<8x384xf32>
    %c0_18 = arith.constant 0 : index
    %c0_19 = arith.constant 0 : index
    %42 = vector.load %arg2[%c0_18, %c0_19] : memref<128x384xf32, #tpu.memory_space<vmem>>, vector<128x384xf32>
    %cst_20 = arith.constant dense<0.000000e+00> : vector<8x384xf32>
    %43 = tpu.matmul %35, %42, %cst_20 {dimension_numbers = #tpu.dot_dimension_numbers<[1], [0], [0], [1], [0, 0, 1, 1], [], []>} : vector<8x128xf32>, vector<128x384xf32>, vector<8x384xf32> -> vector<8x384xf32>
    %44 = vector.extract_strided_slice %41 {offsets = [0, 0], sizes = [8, 256], strides = [1, 1]} : vector<8x384xf32> to vector<8x256xf32>
    %45 = vector.extract_strided_slice %43 {offsets = [0, 0], sizes = [8, 256], strides = [1, 1]} : vector<8x384xf32> to vector<8x256xf32>
    %46 = arith.addf %44, %45 : vector<8x256xf32>
    %47 = arith.negf %46 : vector<8x256xf32>
    %48 = math.exp %47 : vector<8x256xf32>
    %cst_21 = arith.constant 1.000000e+00 : f32
    %49 = vector.broadcast %cst_21 : f32 to vector<8x256xf32>
    %50 = arith.addf %49, %48 : vector<8x256xf32>
    %51 = arith.divf %49, %50 : vector<8x256xf32>
    %52 = vector.extract_strided_slice %51 {offsets = [0, 0], sizes = [8, 128], strides = [1, 1]} : vector<8x256xf32> to vector<8x128xf32>
    %53 = vector.extract_strided_slice %51 {offsets = [0, 128], sizes = [8, 128], strides = [1, 1]} : vector<8x256xf32> to vector<8x128xf32>
    %54 = vector.extract_strided_slice %41 {offsets = [0, 256], sizes = [8, 128], strides = [1, 1]} : vector<8x384xf32> to vector<8x128xf32>
    %55 = vector.extract_strided_slice %43 {offsets = [0, 256], sizes = [8, 128], strides = [1, 1]} : vector<8x384xf32> to vector<8x128xf32>
    %56 = arith.addf %55, %9 : vector<8x128xf32>
    %57 = arith.mulf %52, %56 : vector<8x128xf32>
    %58 = arith.addf %54, %57 : vector<8x128xf32>
    %59 = math.tanh %58 : vector<8x128xf32>
    %60 = arith.subf %35, %59 : vector<8x128xf32>
    %61 = arith.mulf %53, %60 : vector<8x128xf32>
    %62 = arith.addf %59, %61 : vector<8x128xf32>
    %63 = arith.index_cast %39 : i32 to index
    %c0_22 = arith.constant 0 : index
    %64 = vector.load %arg13[%63, %c0_22] : memref<64x128xf32, #tpu.memory_space<vmem>>, vector<8x128xf32>
    tpu.vector_store %arg13[%63, %c0_22], %62 {strides = array<i32>} : memref<64x128xf32, #tpu.memory_space<vmem>>, vector<8x128xf32>,
    %c2_i32 = arith.constant 2 : i32
    %c8_i32_23 = arith.constant 8 : i32
    %65 = arith.muli %c2_i32, %c8_i32_23 : i32
    %66 = tpu.assume_multiple %65, 8 : i32
    %67 = arith.index_cast %66 : i32 to index
    %c0_24 = arith.constant 0 : index
    %68 = vector.load %arg12[%67, %c0_24] : memref<64x384xf32, #tpu.memory_space<vmem>>, vector<8x384xf32>
    %c0_25 = arith.constant 0 : index
    %c0_26 = arith.constant 0 : index
    %69 = vector.load %arg2[%c0_25, %c0_26] : memref<128x384xf32, #tpu.memory_space<vmem>>, vector<128x384xf32>
    %cst_27 = arith.constant dense<0.000000e+00> : vector<8x384xf32>
    %70 = tpu.matmul %62, %69, %cst_27 {dimension_numbers = #tpu.dot_dimension_numbers<[1], [0], [0], [1], [0, 0, 1, 1], [], []>} : vector<8x128xf32>, vector<128x384xf32>, vector<8x384xf32> -> vector<8x384xf32>
    %71 = vector.extract_strided_slice %68 {offsets = [0, 0], sizes = [8, 256], strides = [1, 1]} : vector<8x384xf32> to vector<8x256xf32>
    %72 = vector.extract_strided_slice %70 {offsets = [0, 0], sizes = [8, 256], strides = [1, 1]} : vector<8x384xf32> to vector<8x256xf32>
    %73 = arith.addf %71, %72 : vector<8x256xf32>
    %74 = arith.negf %73 : vector<8x256xf32>
    %75 = math.exp %74 : vector<8x256xf32>
    %cst_28 = arith.constant 1.000000e+00 : f32
    %76 = vector.broadcast %cst_28 : f32 to vector<8x256xf32>
    %77 = arith.addf %76, %75 : vector<8x256xf32>
    %78 = arith.divf %76, %77 : vector<8x256xf32>
    %79 = vector.extract_strided_slice %78 {offsets = [0, 0], sizes = [8, 128], strides = [1, 1]} : vector<8x256xf32> to vector<8x128xf32>
    %80 = vector.extract_strided_slice %78 {offsets = [0, 128], sizes = [8, 128], strides = [1, 1]} : vector<8x256xf32> to vector<8x128xf32>
    %81 = vector.extract_strided_slice %68 {offsets = [0, 256], sizes = [8, 128], strides = [1, 1]} : vector<8x384xf32> to vector<8x128xf32>
    %82 = vector.extract_strided_slice %70 {offsets = [0, 256], sizes = [8, 128], strides = [1, 1]} : vector<8x384xf32> to vector<8x128xf32>
    %83 = arith.addf %82, %9 : vector<8x128xf32>
    %84 = arith.mulf %79, %83 : vector<8x128xf32>
    %85 = arith.addf %81, %84 : vector<8x128xf32>
    %86 = math.tanh %85 : vector<8x128xf32>
    %87 = arith.subf %62, %86 : vector<8x128xf32>
    %88 = arith.mulf %80, %87 : vector<8x128xf32>
    %89 = arith.addf %86, %88 : vector<8x128xf32>
    %90 = arith.index_cast %66 : i32 to index
    %c0_29 = arith.constant 0 : index
    %91 = vector.load %arg13[%90, %c0_29] : memref<64x128xf32, #tpu.memory_space<vmem>>, vector<8x128xf32>
    tpu.vector_store %arg13[%90, %c0_29], %89 {strides = array<i32>} : memref<64x128xf32, #tpu.memory_space<vmem>>, vector<8x128xf32>,
    %c3_i32 = arith.constant 3 : i32
    %c8_i32_30 = arith.constant 8 : i32
    %92 = arith.muli %c3_i32, %c8_i32_30 : i32
    %93 = tpu.assume_multiple %92, 8 : i32
    %94 = arith.index_cast %93 : i32 to index
    %c0_31 = arith.constant 0 : index
    %95 = vector.load %arg12[%94, %c0_31] : memref<64x384xf32, #tpu.memory_space<vmem>>, vector<8x384xf32>
    %c0_32 = arith.constant 0 : index
    %c0_33 = arith.constant 0 : index
    %96 = vector.load %arg2[%c0_32, %c0_33] : memref<128x384xf32, #tpu.memory_space<vmem>>, vector<128x384xf32>
    %cst_34 = arith.constant dense<0.000000e+00> : vector<8x384xf32>
    %97 = tpu.matmul %89, %96, %cst_34 {dimension_numbers = #tpu.dot_dimension_numbers<[1], [0], [0], [1], [0, 0, 1, 1], [], []>} : vector<8x128xf32>, vector<128x384xf32>, vector<8x384xf32> -> vector<8x384xf32>
    %98 = vector.extract_strided_slice %95 {offsets = [0, 0], sizes = [8, 256], strides = [1, 1]} : vector<8x384xf32> to vector<8x256xf32>
    %99 = vector.extract_strided_slice %97 {offsets = [0, 0], sizes = [8, 256], strides = [1, 1]} : vector<8x384xf32> to vector<8x256xf32>
    %100 = arith.addf %98, %99 : vector<8x256xf32>
    %101 = arith.negf %100 : vector<8x256xf32>
    %102 = math.exp %101 : vector<8x256xf32>
    %cst_35 = arith.constant 1.000000e+00 : f32
    %103 = vector.broadcast %cst_35 : f32 to vector<8x256xf32>
    %104 = arith.addf %103, %102 : vector<8x256xf32>
    %105 = arith.divf %103, %104 : vector<8x256xf32>
    %106 = vector.extract_strided_slice %105 {offsets = [0, 0], sizes = [8, 128], strides = [1, 1]} : vector<8x256xf32> to vector<8x128xf32>
    %107 = vector.extract_strided_slice %105 {offsets = [0, 128], sizes = [8, 128], strides = [1, 1]} : vector<8x256xf32> to vector<8x128xf32>
    %108 = vector.extract_strided_slice %95 {offsets = [0, 256], sizes = [8, 128], strides = [1, 1]} : vector<8x384xf32> to vector<8x128xf32>
    %109 = vector.extract_strided_slice %97 {offsets = [0, 256], sizes = [8, 128], strides = [1, 1]} : vector<8x384xf32> to vector<8x128xf32>
    %110 = arith.addf %109, %9 : vector<8x128xf32>
    %111 = arith.mulf %106, %110 : vector<8x128xf32>
    %112 = arith.addf %108, %111 : vector<8x128xf32>
    %113 = math.tanh %112 : vector<8x128xf32>
    %114 = arith.subf %89, %113 : vector<8x128xf32>
    %115 = arith.mulf %107, %114 : vector<8x128xf32>
    %116 = arith.addf %113, %115 : vector<8x128xf32>
    %117 = arith.index_cast %93 : i32 to index
    %c0_36 = arith.constant 0 : index
    %118 = vector.load %arg13[%117, %c0_36] : memref<64x128xf32, #tpu.memory_space<vmem>>, vector<8x128xf32>
    tpu.vector_store %arg13[%117, %c0_36], %116 {strides = array<i32>} : memref<64x128xf32, #tpu.memory_space<vmem>>, vector<8x128xf32>,
    %c4_i32 = arith.constant 4 : i32
    %c8_i32_37 = arith.constant 8 : i32
    %119 = arith.muli %c4_i32, %c8_i32_37 : i32
    %120 = tpu.assume_multiple %119, 8 : i32
    %121 = arith.index_cast %120 : i32 to index
    %c0_38 = arith.constant 0 : index
    %122 = vector.load %arg12[%121, %c0_38] : memref<64x384xf32, #tpu.memory_space<vmem>>, vector<8x384xf32>
    %c0_39 = arith.constant 0 : index
    %c0_40 = arith.constant 0 : index
    %123 = vector.load %arg2[%c0_39, %c0_40] : memref<128x384xf32, #tpu.memory_space<vmem>>, vector<128x384xf32>
    %cst_41 = arith.constant dense<0.000000e+00> : vector<8x384xf32>
    %124 = tpu.matmul %116, %123, %cst_41 {dimension_numbers = #tpu.dot_dimension_numbers<[1], [0], [0], [1], [0, 0, 1, 1], [], []>} : vector<8x128xf32>, vector<128x384xf32>, vector<8x384xf32> -> vector<8x384xf32>
    %125 = vector.extract_strided_slice %122 {offsets = [0, 0], sizes = [8, 256], strides = [1, 1]} : vector<8x384xf32> to vector<8x256xf32>
    %126 = vector.extract_strided_slice %124 {offsets = [0, 0], sizes = [8, 256], strides = [1, 1]} : vector<8x384xf32> to vector<8x256xf32>
    %127 = arith.addf %125, %126 : vector<8x256xf32>
    %128 = arith.negf %127 : vector<8x256xf32>
    %129 = math.exp %128 : vector<8x256xf32>
    %cst_42 = arith.constant 1.000000e+00 : f32
    %130 = vector.broadcast %cst_42 : f32 to vector<8x256xf32>
    %131 = arith.addf %130, %129 : vector<8x256xf32>
    %132 = arith.divf %130, %131 : vector<8x256xf32>
    %133 = vector.extract_strided_slice %132 {offsets = [0, 0], sizes = [8, 128], strides = [1, 1]} : vector<8x256xf32> to vector<8x128xf32>
    %134 = vector.extract_strided_slice %132 {offsets = [0, 128], sizes = [8, 128], strides = [1, 1]} : vector<8x256xf32> to vector<8x128xf32>
    %135 = vector.extract_strided_slice %122 {offsets = [0, 256], sizes = [8, 128], strides = [1, 1]} : vector<8x384xf32> to vector<8x128xf32>
    %136 = vector.extract_strided_slice %124 {offsets = [0, 256], sizes = [8, 128], strides = [1, 1]} : vector<8x384xf32> to vector<8x128xf32>
    %137 = arith.addf %136, %9 : vector<8x128xf32>
    %138 = arith.mulf %133, %137 : vector<8x128xf32>
    %139 = arith.addf %135, %138 : vector<8x128xf32>
    %140 = math.tanh %139 : vector<8x128xf32>
    %141 = arith.subf %116, %140 : vector<8x128xf32>
    %142 = arith.mulf %134, %141 : vector<8x128xf32>
    %143 = arith.addf %140, %142 : vector<8x128xf32>
    %144 = arith.index_cast %120 : i32 to index
    %c0_43 = arith.constant 0 : index
    %145 = vector.load %arg13[%144, %c0_43] : memref<64x128xf32, #tpu.memory_space<vmem>>, vector<8x128xf32>
    tpu.vector_store %arg13[%144, %c0_43], %143 {strides = array<i32>} : memref<64x128xf32, #tpu.memory_space<vmem>>, vector<8x128xf32>,
    %c5_i32 = arith.constant 5 : i32
    %c8_i32_44 = arith.constant 8 : i32
    %146 = arith.muli %c5_i32, %c8_i32_44 : i32
    %147 = tpu.assume_multiple %146, 8 : i32
    %148 = arith.index_cast %147 : i32 to index
    %c0_45 = arith.constant 0 : index
    %149 = vector.load %arg12[%148, %c0_45] : memref<64x384xf32, #tpu.memory_space<vmem>>, vector<8x384xf32>
    %c0_46 = arith.constant 0 : index
    %c0_47 = arith.constant 0 : index
    %150 = vector.load %arg2[%c0_46, %c0_47] : memref<128x384xf32, #tpu.memory_space<vmem>>, vector<128x384xf32>
    %cst_48 = arith.constant dense<0.000000e+00> : vector<8x384xf32>
    %151 = tpu.matmul %143, %150, %cst_48 {dimension_numbers = #tpu.dot_dimension_numbers<[1], [0], [0], [1], [0, 0, 1, 1], [], []>} : vector<8x128xf32>, vector<128x384xf32>, vector<8x384xf32> -> vector<8x384xf32>
    %152 = vector.extract_strided_slice %149 {offsets = [0, 0], sizes = [8, 256], strides = [1, 1]} : vector<8x384xf32> to vector<8x256xf32>
    %153 = vector.extract_strided_slice %151 {offsets = [0, 0], sizes = [8, 256], strides = [1, 1]} : vector<8x384xf32> to vector<8x256xf32>
    %154 = arith.addf %152, %153 : vector<8x256xf32>
    %155 = arith.negf %154 : vector<8x256xf32>
    %156 = math.exp %155 : vector<8x256xf32>
    %cst_49 = arith.constant 1.000000e+00 : f32
    %157 = vector.broadcast %cst_49 : f32 to vector<8x256xf32>
    %158 = arith.addf %157, %156 : vector<8x256xf32>
    %159 = arith.divf %157, %158 : vector<8x256xf32>
    %160 = vector.extract_strided_slice %159 {offsets = [0, 0], sizes = [8, 128], strides = [1, 1]} : vector<8x256xf32> to vector<8x128xf32>
    %161 = vector.extract_strided_slice %159 {offsets = [0, 128], sizes = [8, 128], strides = [1, 1]} : vector<8x256xf32> to vector<8x128xf32>
    %162 = vector.extract_strided_slice %149 {offsets = [0, 256], sizes = [8, 128], strides = [1, 1]} : vector<8x384xf32> to vector<8x128xf32>
    %163 = vector.extract_strided_slice %151 {offsets = [0, 256], sizes = [8, 128], strides = [1, 1]} : vector<8x384xf32> to vector<8x128xf32>
    %164 = arith.addf %163, %9 : vector<8x128xf32>
    %165 = arith.mulf %160, %164 : vector<8x128xf32>
    %166 = arith.addf %162, %165 : vector<8x128xf32>
    %167 = math.tanh %166 : vector<8x128xf32>
    %168 = arith.subf %143, %167 : vector<8x128xf32>
    %169 = arith.mulf %161, %168 : vector<8x128xf32>
    %170 = arith.addf %167, %169 : vector<8x128xf32>
    %171 = arith.index_cast %147 : i32 to index
    %c0_50 = arith.constant 0 : index
    %172 = vector.load %arg13[%171, %c0_50] : memref<64x128xf32, #tpu.memory_space<vmem>>, vector<8x128xf32>
    tpu.vector_store %arg13[%171, %c0_50], %170 {strides = array<i32>} : memref<64x128xf32, #tpu.memory_space<vmem>>, vector<8x128xf32>,
    %c6_i32 = arith.constant 6 : i32
    %c8_i32_51 = arith.constant 8 : i32
    %173 = arith.muli %c6_i32, %c8_i32_51 : i32
    %174 = tpu.assume_multiple %173, 8 : i32
    %175 = arith.index_cast %174 : i32 to index
    %c0_52 = arith.constant 0 : index
    %176 = vector.load %arg12[%175, %c0_52] : memref<64x384xf32, #tpu.memory_space<vmem>>, vector<8x384xf32>
    %c0_53 = arith.constant 0 : index
    %c0_54 = arith.constant 0 : index
    %177 = vector.load %arg2[%c0_53, %c0_54] : memref<128x384xf32, #tpu.memory_space<vmem>>, vector<128x384xf32>
    %cst_55 = arith.constant dense<0.000000e+00> : vector<8x384xf32>
    %178 = tpu.matmul %170, %177, %cst_55 {dimension_numbers = #tpu.dot_dimension_numbers<[1], [0], [0], [1], [0, 0, 1, 1], [], []>} : vector<8x128xf32>, vector<128x384xf32>, vector<8x384xf32> -> vector<8x384xf32>
    %179 = vector.extract_strided_slice %176 {offsets = [0, 0], sizes = [8, 256], strides = [1, 1]} : vector<8x384xf32> to vector<8x256xf32>
    %180 = vector.extract_strided_slice %178 {offsets = [0, 0], sizes = [8, 256], strides = [1, 1]} : vector<8x384xf32> to vector<8x256xf32>
    %181 = arith.addf %179, %180 : vector<8x256xf32>
    %182 = arith.negf %181 : vector<8x256xf32>
    %183 = math.exp %182 : vector<8x256xf32>
    %cst_56 = arith.constant 1.000000e+00 : f32
    %184 = vector.broadcast %cst_56 : f32 to vector<8x256xf32>
    %185 = arith.addf %184, %183 : vector<8x256xf32>
    %186 = arith.divf %184, %185 : vector<8x256xf32>
    %187 = vector.extract_strided_slice %186 {offsets = [0, 0], sizes = [8, 128], strides = [1, 1]} : vector<8x256xf32> to vector<8x128xf32>
    %188 = vector.extract_strided_slice %186 {offsets = [0, 128], sizes = [8, 128], strides = [1, 1]} : vector<8x256xf32> to vector<8x128xf32>
    %189 = vector.extract_strided_slice %176 {offsets = [0, 256], sizes = [8, 128], strides = [1, 1]} : vector<8x384xf32> to vector<8x128xf32>
    %190 = vector.extract_strided_slice %178 {offsets = [0, 256], sizes = [8, 128], strides = [1, 1]} : vector<8x384xf32> to vector<8x128xf32>
    %191 = arith.addf %190, %9 : vector<8x128xf32>
    %192 = arith.mulf %187, %191 : vector<8x128xf32>
    %193 = arith.addf %189, %192 : vector<8x128xf32>
    %194 = math.tanh %193 : vector<8x128xf32>
    %195 = arith.subf %170, %194 : vector<8x128xf32>
    %196 = arith.mulf %188, %195 : vector<8x128xf32>
    %197 = arith.addf %194, %196 : vector<8x128xf32>
    %198 = arith.index_cast %174 : i32 to index
    %c0_57 = arith.constant 0 : index
    %199 = vector.load %arg13[%198, %c0_57] : memref<64x128xf32, #tpu.memory_space<vmem>>, vector<8x128xf32>
    tpu.vector_store %arg13[%198, %c0_57], %197 {strides = array<i32>} : memref<64x128xf32, #tpu.memory_space<vmem>>, vector<8x128xf32>,
    %c7_i32 = arith.constant 7 : i32
    %c8_i32_58 = arith.constant 8 : i32
    %200 = arith.muli %c7_i32, %c8_i32_58 : i32
    %201 = tpu.assume_multiple %200, 8 : i32
    %202 = arith.index_cast %201 : i32 to index
    %c0_59 = arith.constant 0 : index
    %203 = vector.load %arg12[%202, %c0_59] : memref<64x384xf32, #tpu.memory_space<vmem>>, vector<8x384xf32>
    %c0_60 = arith.constant 0 : index
    %c0_61 = arith.constant 0 : index
    %204 = vector.load %arg2[%c0_60, %c0_61] : memref<128x384xf32, #tpu.memory_space<vmem>>, vector<128x384xf32>
    %cst_62 = arith.constant dense<0.000000e+00> : vector<8x384xf32>
    %205 = tpu.matmul %197, %204, %cst_62 {dimension_numbers = #tpu.dot_dimension_numbers<[1], [0], [0], [1], [0, 0, 1, 1], [], []>} : vector<8x128xf32>, vector<128x384xf32>, vector<8x384xf32> -> vector<8x384xf32>
    %206 = vector.extract_strided_slice %203 {offsets = [0, 0], sizes = [8, 256], strides = [1, 1]} : vector<8x384xf32> to vector<8x256xf32>
    %207 = vector.extract_strided_slice %205 {offsets = [0, 0], sizes = [8, 256], strides = [1, 1]} : vector<8x384xf32> to vector<8x256xf32>
    %208 = arith.addf %206, %207 : vector<8x256xf32>
    %209 = arith.negf %208 : vector<8x256xf32>
    %210 = math.exp %209 : vector<8x256xf32>
    %cst_63 = arith.constant 1.000000e+00 : f32
    %211 = vector.broadcast %cst_63 : f32 to vector<8x256xf32>
    %212 = arith.addf %211, %210 : vector<8x256xf32>
    %213 = arith.divf %211, %212 : vector<8x256xf32>
    %214 = vector.extract_strided_slice %213 {offsets = [0, 0], sizes = [8, 128], strides = [1, 1]} : vector<8x256xf32> to vector<8x128xf32>
    %215 = vector.extract_strided_slice %213 {offsets = [0, 128], sizes = [8, 128], strides = [1, 1]} : vector<8x256xf32> to vector<8x128xf32>
    %216 = vector.extract_strided_slice %203 {offsets = [0, 256], sizes = [8, 128], strides = [1, 1]} : vector<8x384xf32> to vector<8x128xf32>
    %217 = vector.extract_strided_slice %205 {offsets = [0, 256], sizes = [8, 128], strides = [1, 1]} : vector<8x384xf32> to vector<8x128xf32>
    %218 = arith.addf %217, %9 : vector<8x128xf32>
    %219 = arith.mulf %214, %218 : vector<8x128xf32>
    %220 = arith.addf %216, %219 : vector<8x128xf32>
    %221 = math.tanh %220 : vector<8x128xf32>
    %222 = arith.subf %197, %221 : vector<8x128xf32>
    %223 = arith.mulf %215, %222 : vector<8x128xf32>
    %224 = arith.addf %221, %223 : vector<8x128xf32>
    %225 = arith.index_cast %201 : i32 to index
    %c0_64 = arith.constant 0 : index
    %226 = vector.load %arg13[%225, %c0_64] : memref<64x128xf32, #tpu.memory_space<vmem>>, vector<8x128xf32>
    tpu.vector_store %arg13[%225, %c0_64], %224 {strides = array<i32>} : memref<64x128xf32, #tpu.memory_space<vmem>>, vector<8x128xf32>,
    %c8_i32_65 = arith.constant 8 : i32
    %c0_66 = arith.constant 0 : index
    %c0_67 = arith.constant 0 : index
    %227 = vector.load %arg13[%c0_66, %c0_67] : memref<64x128xf32, #tpu.memory_space<vmem>>, vector<64x128xf32>
    %c0_68 = arith.constant 0 : index
    %c0_69 = arith.constant 0 : index
    %228 = vector.load %arg5[%c0_68, %c0_69] : memref<128x384xf32, #tpu.memory_space<vmem>>, vector<128x384xf32>
    %cst_70 = arith.constant dense<0.000000e+00> : vector<64x384xf32>
    %229 = tpu.matmul %227, %228, %cst_70 {dimension_numbers = #tpu.dot_dimension_numbers<[1], [0], [0], [1], [0, 0, 1, 1], [], []>} : vector<64x128xf32>, vector<128x384xf32>, vector<64x384xf32> -> vector<64x384xf32>
    %c0_71 = arith.constant 0 : index
    %c0_72 = arith.constant 0 : index
    %230 = vector.load %arg7[%c0_71, %c0_72] : memref<1x384xf32, #tpu.memory_space<vmem>>, vector<1x384xf32>
    %231 = vector.broadcast %230 : vector<1x384xf32> to vector<64x384xf32>
    %232 = arith.addf %229, %231 : vector<64x384xf32>
    %c0_73 = arith.constant 0 : index
    %c0_74 = arith.constant 0 : index
    %233 = vector.load %arg12[%c0_73, %c0_74] : memref<64x384xf32, #tpu.memory_space<vmem>>, vector<64x384xf32>
    tpu.vector_store %arg12[%c0_73, %c0_74], %232 {strides = array<i32>} : memref<64x384xf32, #tpu.memory_space<vmem>>, vector<64x384xf32>,
    %c0_75 = arith.constant 0 : index
    %c0_76 = arith.constant 0 : index
    %234 = vector.load %arg8[%c0_75, %c0_76] : memref<1x128xf32, #tpu.memory_space<vmem>>, vector<1x128xf32>
    %235 = vector.shape_cast %234 : vector<1x128xf32> to vector<1x128xf32>
    %236 = vector.broadcast %235 : vector<1x128xf32> to vector<8x128xf32>
    %cst_77 = arith.constant 0.000000e+00 : f32
    %237 = vector.broadcast %cst_77 : f32 to vector<8x128xf32>
    %c0_i32_78 = arith.constant 0 : i32
    %c8_i32_79 = arith.constant 8 : i32
    %238 = arith.muli %c0_i32_78, %c8_i32_79 : i32
    %239 = tpu.assume_multiple %238, 8 : i32
    %240 = arith.index_cast %239 : i32 to index
    %c0_80 = arith.constant 0 : index
    %241 = vector.load %arg12[%240, %c0_80] : memref<64x384xf32, #tpu.memory_space<vmem>>, vector<8x384xf32>
    %c0_81 = arith.constant 0 : index
    %c0_82 = arith.constant 0 : index
    %242 = vector.load %arg6[%c0_81, %c0_82] : memref<128x384xf32, #tpu.memory_space<vmem>>, vector<128x384xf32>
    %cst_83 = arith.constant dense<0.000000e+00> : vector<8x384xf32>
    %243 = tpu.matmul %237, %242, %cst_83 {dimension_numbers = #tpu.dot_dimension_numbers<[1], [0], [0], [1], [0, 0, 1, 1], [], []>} : vector<8x128xf32>, vector<128x384xf32>, vector<8x384xf32> -> vector<8x384xf32>
    %244 = vector.extract_strided_slice %241 {offsets = [0, 0], sizes = [8, 256], strides = [1, 1]} : vector<8x384xf32> to vector<8x256xf32>
    %245 = vector.extract_strided_slice %243 {offsets = [0, 0], sizes = [8, 256], strides = [1, 1]} : vector<8x384xf32> to vector<8x256xf32>
    %246 = arith.addf %244, %245 : vector<8x256xf32>
    %247 = arith.negf %246 : vector<8x256xf32>
    %248 = math.exp %247 : vector<8x256xf32>
    %cst_84 = arith.constant 1.000000e+00 : f32
    %249 = vector.broadcast %cst_84 : f32 to vector<8x256xf32>
    %250 = arith.addf %249, %248 : vector<8x256xf32>
    %251 = arith.divf %249, %250 : vector<8x256xf32>
    %252 = vector.extract_strided_slice %251 {offsets = [0, 0], sizes = [8, 128], strides = [1, 1]} : vector<8x256xf32> to vector<8x128xf32>
    %253 = vector.extract_strided_slice %251 {offsets = [0, 128], sizes = [8, 128], strides = [1, 1]} : vector<8x256xf32> to vector<8x128xf32>
    %254 = vector.extract_strided_slice %241 {offsets = [0, 256], sizes = [8, 128], strides = [1, 1]} : vector<8x384xf32> to vector<8x128xf32>
    %255 = vector.extract_strided_slice %243 {offsets = [0, 256], sizes = [8, 128], strides = [1, 1]} : vector<8x384xf32> to vector<8x128xf32>
    %256 = arith.addf %255, %236 : vector<8x128xf32>
    %257 = arith.mulf %252, %256 : vector<8x128xf32>
    %258 = arith.addf %254, %257 : vector<8x128xf32>
    %259 = math.tanh %258 : vector<8x128xf32>
    %260 = arith.subf %237, %259 : vector<8x128xf32>
    %261 = arith.mulf %253, %260 : vector<8x128xf32>
    %262 = arith.addf %259, %261 : vector<8x128xf32>
    %c1_i32_85 = arith.constant 1 : i32
    %c8_i32_86 = arith.constant 8 : i32
    %263 = arith.muli %c1_i32_85, %c8_i32_86 : i32
    %264 = tpu.assume_multiple %263, 8 : i32
    %265 = arith.index_cast %264 : i32 to index
    %c0_87 = arith.constant 0 : index
    %266 = vector.load %arg12[%265, %c0_87] : memref<64x384xf32, #tpu.memory_space<vmem>>, vector<8x384xf32>
    %c0_88 = arith.constant 0 : index
    %c0_89 = arith.constant 0 : index
    %267 = vector.load %arg6[%c0_88, %c0_89] : memref<128x384xf32, #tpu.memory_space<vmem>>, vector<128x384xf32>
    %cst_90 = arith.constant dense<0.000000e+00> : vector<8x384xf32>
    %268 = tpu.matmul %262, %267, %cst_90 {dimension_numbers = #tpu.dot_dimension_numbers<[1], [0], [0], [1], [0, 0, 1, 1], [], []>} : vector<8x128xf32>, vector<128x384xf32>, vector<8x384xf32> -> vector<8x384xf32>
    %269 = vector.extract_strided_slice %266 {offsets = [0, 0], sizes = [8, 256], strides = [1, 1]} : vector<8x384xf32> to vector<8x256xf32>
    %270 = vector.extract_strided_slice %268 {offsets = [0, 0], sizes = [8, 256], strides = [1, 1]} : vector<8x384xf32> to vector<8x256xf32>
    %271 = arith.addf %269, %270 : vector<8x256xf32>
    %272 = arith.negf %271 : vector<8x256xf32>
    %273 = math.exp %272 : vector<8x256xf32>
    %cst_91 = arith.constant 1.000000e+00 : f32
    %274 = vector.broadcast %cst_91 : f32 to vector<8x256xf32>
    %275 = arith.addf %274, %273 : vector<8x256xf32>
    %276 = arith.divf %274, %275 : vector<8x256xf32>
    %277 = vector.extract_strided_slice %276 {offsets = [0, 0], sizes = [8, 128], strides = [1, 1]} : vector<8x256xf32> to vector<8x128xf32>
    %278 = vector.extract_strided_slice %276 {offsets = [0, 128], sizes = [8, 128], strides = [1, 1]} : vector<8x256xf32> to vector<8x128xf32>
    %279 = vector.extract_strided_slice %266 {offsets = [0, 256], sizes = [8, 128], strides = [1, 1]} : vector<8x384xf32> to vector<8x128xf32>
    %280 = vector.extract_strided_slice %268 {offsets = [0, 256], sizes = [8, 128], strides = [1, 1]} : vector<8x384xf32> to vector<8x128xf32>
    %281 = arith.addf %280, %236 : vector<8x128xf32>
    %282 = arith.mulf %277, %281 : vector<8x128xf32>
    %283 = arith.addf %279, %282 : vector<8x128xf32>
    %284 = math.tanh %283 : vector<8x128xf32>
    %285 = arith.subf %262, %284 : vector<8x128xf32>
    %286 = arith.mulf %278, %285 : vector<8x128xf32>
    %287 = arith.addf %284, %286 : vector<8x128xf32>
    %c2_i32_92 = arith.constant 2 : i32
    %c8_i32_93 = arith.constant 8 : i32
    %288 = arith.muli %c2_i32_92, %c8_i32_93 : i32
    %289 = tpu.assume_multiple %288, 8 : i32
    %290 = arith.index_cast %289 : i32 to index
    %c0_94 = arith.constant 0 : index
    %291 = vector.load %arg12[%290, %c0_94] : memref<64x384xf32, #tpu.memory_space<vmem>>, vector<8x384xf32>
    %c0_95 = arith.constant 0 : index
    %c0_96 = arith.constant 0 : index
    %292 = vector.load %arg6[%c0_95, %c0_96] : memref<128x384xf32, #tpu.memory_space<vmem>>, vector<128x384xf32>
    %cst_97 = arith.constant dense<0.000000e+00> : vector<8x384xf32>
    %293 = tpu.matmul %287, %292, %cst_97 {dimension_numbers = #tpu.dot_dimension_numbers<[1], [0], [0], [1], [0, 0, 1, 1], [], []>} : vector<8x128xf32>, vector<128x384xf32>, vector<8x384xf32> -> vector<8x384xf32>
    %294 = vector.extract_strided_slice %291 {offsets = [0, 0], sizes = [8, 256], strides = [1, 1]} : vector<8x384xf32> to vector<8x256xf32>
    %295 = vector.extract_strided_slice %293 {offsets = [0, 0], sizes = [8, 256], strides = [1, 1]} : vector<8x384xf32> to vector<8x256xf32>
    %296 = arith.addf %294, %295 : vector<8x256xf32>
    %297 = arith.negf %296 : vector<8x256xf32>
    %298 = math.exp %297 : vector<8x256xf32>
    %cst_98 = arith.constant 1.000000e+00 : f32
    %299 = vector.broadcast %cst_98 : f32 to vector<8x256xf32>
    %300 = arith.addf %299, %298 : vector<8x256xf32>
    %301 = arith.divf %299, %300 : vector<8x256xf32>
    %302 = vector.extract_strided_slice %301 {offsets = [0, 0], sizes = [8, 128], strides = [1, 1]} : vector<8x256xf32> to vector<8x128xf32>
    %303 = vector.extract_strided_slice %301 {offsets = [0, 128], sizes = [8, 128], strides = [1, 1]} : vector<8x256xf32> to vector<8x128xf32>
    %304 = vector.extract_strided_slice %291 {offsets = [0, 256], sizes = [8, 128], strides = [1, 1]} : vector<8x384xf32> to vector<8x128xf32>
    %305 = vector.extract_strided_slice %293 {offsets = [0, 256], sizes = [8, 128], strides = [1, 1]} : vector<8x384xf32> to vector<8x128xf32>
    %306 = arith.addf %305, %236 : vector<8x128xf32>
    %307 = arith.mulf %302, %306 : vector<8x128xf32>
    %308 = arith.addf %304, %307 : vector<8x128xf32>
    %309 = math.tanh %308 : vector<8x128xf32>
    %310 = arith.subf %287, %309 : vector<8x128xf32>
    %311 = arith.mulf %303, %310 : vector<8x128xf32>
    %312 = arith.addf %309, %311 : vector<8x128xf32>
    %c3_i32_99 = arith.constant 3 : i32
    %c8_i32_100 = arith.constant 8 : i32
    %313 = arith.muli %c3_i32_99, %c8_i32_100 : i32
    %314 = tpu.assume_multiple %313, 8 : i32
    %315 = arith.index_cast %314 : i32 to index
    %c0_101 = arith.constant 0 : index
    %316 = vector.load %arg12[%315, %c0_101] : memref<64x384xf32, #tpu.memory_space<vmem>>, vector<8x384xf32>
    %c0_102 = arith.constant 0 : index
    %c0_103 = arith.constant 0 : index
    %317 = vector.load %arg6[%c0_102, %c0_103] : memref<128x384xf32, #tpu.memory_space<vmem>>, vector<128x384xf32>
    %cst_104 = arith.constant dense<0.000000e+00> : vector<8x384xf32>
    %318 = tpu.matmul %312, %317, %cst_104 {dimension_numbers = #tpu.dot_dimension_numbers<[1], [0], [0], [1], [0, 0, 1, 1], [], []>} : vector<8x128xf32>, vector<128x384xf32>, vector<8x384xf32> -> vector<8x384xf32>
    %319 = vector.extract_strided_slice %316 {offsets = [0, 0], sizes = [8, 256], strides = [1, 1]} : vector<8x384xf32> to vector<8x256xf32>
    %320 = vector.extract_strided_slice %318 {offsets = [0, 0], sizes = [8, 256], strides = [1, 1]} : vector<8x384xf32> to vector<8x256xf32>
    %321 = arith.addf %319, %320 : vector<8x256xf32>
    %322 = arith.negf %321 : vector<8x256xf32>
    %323 = math.exp %322 : vector<8x256xf32>
    %cst_105 = arith.constant 1.000000e+00 : f32
    %324 = vector.broadcast %cst_105 : f32 to vector<8x256xf32>
    %325 = arith.addf %324, %323 : vector<8x256xf32>
    %326 = arith.divf %324, %325 : vector<8x256xf32>
    %327 = vector.extract_strided_slice %326 {offsets = [0, 0], sizes = [8, 128], strides = [1, 1]} : vector<8x256xf32> to vector<8x128xf32>
    %328 = vector.extract_strided_slice %326 {offsets = [0, 128], sizes = [8, 128], strides = [1, 1]} : vector<8x256xf32> to vector<8x128xf32>
    %329 = vector.extract_strided_slice %316 {offsets = [0, 256], sizes = [8, 128], strides = [1, 1]} : vector<8x384xf32> to vector<8x128xf32>
    %330 = vector.extract_strided_slice %318 {offsets = [0, 256], sizes = [8, 128], strides = [1, 1]} : vector<8x384xf32> to vector<8x128xf32>
    %331 = arith.addf %330, %236 : vector<8x128xf32>
    %332 = arith.mulf %327, %331 : vector<8x128xf32>
    %333 = arith.addf %329, %332 : vector<8x128xf32>
    %334 = math.tanh %333 : vector<8x128xf32>
    %335 = arith.subf %312, %334 : vector<8x128xf32>
    %336 = arith.mulf %328, %335 : vector<8x128xf32>
    %337 = arith.addf %334, %336 : vector<8x128xf32>
    %c4_i32_106 = arith.constant 4 : i32
    %c8_i32_107 = arith.constant 8 : i32
    %338 = arith.muli %c4_i32_106, %c8_i32_107 : i32
    %339 = tpu.assume_multiple %338, 8 : i32
    %340 = arith.index_cast %339 : i32 to index
    %c0_108 = arith.constant 0 : index
    %341 = vector.load %arg12[%340, %c0_108] : memref<64x384xf32, #tpu.memory_space<vmem>>, vector<8x384xf32>
    %c0_109 = arith.constant 0 : index
    %c0_110 = arith.constant 0 : index
    %342 = vector.load %arg6[%c0_109, %c0_110] : memref<128x384xf32, #tpu.memory_space<vmem>>, vector<128x384xf32>
    %cst_111 = arith.constant dense<0.000000e+00> : vector<8x384xf32>
    %343 = tpu.matmul %337, %342, %cst_111 {dimension_numbers = #tpu.dot_dimension_numbers<[1], [0], [0], [1], [0, 0, 1, 1], [], []>} : vector<8x128xf32>, vector<128x384xf32>, vector<8x384xf32> -> vector<8x384xf32>
    %344 = vector.extract_strided_slice %341 {offsets = [0, 0], sizes = [8, 256], strides = [1, 1]} : vector<8x384xf32> to vector<8x256xf32>
    %345 = vector.extract_strided_slice %343 {offsets = [0, 0], sizes = [8, 256], strides = [1, 1]} : vector<8x384xf32> to vector<8x256xf32>
    %346 = arith.addf %344, %345 : vector<8x256xf32>
    %347 = arith.negf %346 : vector<8x256xf32>
    %348 = math.exp %347 : vector<8x256xf32>
    %cst_112 = arith.constant 1.000000e+00 : f32
    %349 = vector.broadcast %cst_112 : f32 to vector<8x256xf32>
    %350 = arith.addf %349, %348 : vector<8x256xf32>
    %351 = arith.divf %349, %350 : vector<8x256xf32>
    %352 = vector.extract_strided_slice %351 {offsets = [0, 0], sizes = [8, 128], strides = [1, 1]} : vector<8x256xf32> to vector<8x128xf32>
    %353 = vector.extract_strided_slice %351 {offsets = [0, 128], sizes = [8, 128], strides = [1, 1]} : vector<8x256xf32> to vector<8x128xf32>
    %354 = vector.extract_strided_slice %341 {offsets = [0, 256], sizes = [8, 128], strides = [1, 1]} : vector<8x384xf32> to vector<8x128xf32>
    %355 = vector.extract_strided_slice %343 {offsets = [0, 256], sizes = [8, 128], strides = [1, 1]} : vector<8x384xf32> to vector<8x128xf32>
    %356 = arith.addf %355, %236 : vector<8x128xf32>
    %357 = arith.mulf %352, %356 : vector<8x128xf32>
    %358 = arith.addf %354, %357 : vector<8x128xf32>
    %359 = math.tanh %358 : vector<8x128xf32>
    %360 = arith.subf %337, %359 : vector<8x128xf32>
    %361 = arith.mulf %353, %360 : vector<8x128xf32>
    %362 = arith.addf %359, %361 : vector<8x128xf32>
    %c5_i32_113 = arith.constant 5 : i32
    %c8_i32_114 = arith.constant 8 : i32
    %363 = arith.muli %c5_i32_113, %c8_i32_114 : i32
    %364 = tpu.assume_multiple %363, 8 : i32
    %365 = arith.index_cast %364 : i32 to index
    %c0_115 = arith.constant 0 : index
    %366 = vector.load %arg12[%365, %c0_115] : memref<64x384xf32, #tpu.memory_space<vmem>>, vector<8x384xf32>
    %c0_116 = arith.constant 0 : index
    %c0_117 = arith.constant 0 : index
    %367 = vector.load %arg6[%c0_116, %c0_117] : memref<128x384xf32, #tpu.memory_space<vmem>>, vector<128x384xf32>
    %cst_118 = arith.constant dense<0.000000e+00> : vector<8x384xf32>
    %368 = tpu.matmul %362, %367, %cst_118 {dimension_numbers = #tpu.dot_dimension_numbers<[1], [0], [0], [1], [0, 0, 1, 1], [], []>} : vector<8x128xf32>, vector<128x384xf32>, vector<8x384xf32> -> vector<8x384xf32>
    %369 = vector.extract_strided_slice %366 {offsets = [0, 0], sizes = [8, 256], strides = [1, 1]} : vector<8x384xf32> to vector<8x256xf32>
    %370 = vector.extract_strided_slice %368 {offsets = [0, 0], sizes = [8, 256], strides = [1, 1]} : vector<8x384xf32> to vector<8x256xf32>
    %371 = arith.addf %369, %370 : vector<8x256xf32>
    %372 = arith.negf %371 : vector<8x256xf32>
    %373 = math.exp %372 : vector<8x256xf32>
    %cst_119 = arith.constant 1.000000e+00 : f32
    %374 = vector.broadcast %cst_119 : f32 to vector<8x256xf32>
    %375 = arith.addf %374, %373 : vector<8x256xf32>
    %376 = arith.divf %374, %375 : vector<8x256xf32>
    %377 = vector.extract_strided_slice %376 {offsets = [0, 0], sizes = [8, 128], strides = [1, 1]} : vector<8x256xf32> to vector<8x128xf32>
    %378 = vector.extract_strided_slice %376 {offsets = [0, 128], sizes = [8, 128], strides = [1, 1]} : vector<8x256xf32> to vector<8x128xf32>
    %379 = vector.extract_strided_slice %366 {offsets = [0, 256], sizes = [8, 128], strides = [1, 1]} : vector<8x384xf32> to vector<8x128xf32>
    %380 = vector.extract_strided_slice %368 {offsets = [0, 256], sizes = [8, 128], strides = [1, 1]} : vector<8x384xf32> to vector<8x128xf32>
    %381 = arith.addf %380, %236 : vector<8x128xf32>
    %382 = arith.mulf %377, %381 : vector<8x128xf32>
    %383 = arith.addf %379, %382 : vector<8x128xf32>
    %384 = math.tanh %383 : vector<8x128xf32>
    %385 = arith.subf %362, %384 : vector<8x128xf32>
    %386 = arith.mulf %378, %385 : vector<8x128xf32>
    %387 = arith.addf %384, %386 : vector<8x128xf32>
    %c6_i32_120 = arith.constant 6 : i32
    %c8_i32_121 = arith.constant 8 : i32
    %388 = arith.muli %c6_i32_120, %c8_i32_121 : i32
    %389 = tpu.assume_multiple %388, 8 : i32
    %390 = arith.index_cast %389 : i32 to index
    %c0_122 = arith.constant 0 : index
    %391 = vector.load %arg12[%390, %c0_122] : memref<64x384xf32, #tpu.memory_space<vmem>>, vector<8x384xf32>
    %c0_123 = arith.constant 0 : index
    %c0_124 = arith.constant 0 : index
    %392 = vector.load %arg6[%c0_123, %c0_124] : memref<128x384xf32, #tpu.memory_space<vmem>>, vector<128x384xf32>
    %cst_125 = arith.constant dense<0.000000e+00> : vector<8x384xf32>
    %393 = tpu.matmul %387, %392, %cst_125 {dimension_numbers = #tpu.dot_dimension_numbers<[1], [0], [0], [1], [0, 0, 1, 1], [], []>} : vector<8x128xf32>, vector<128x384xf32>, vector<8x384xf32> -> vector<8x384xf32>
    %394 = vector.extract_strided_slice %391 {offsets = [0, 0], sizes = [8, 256], strides = [1, 1]} : vector<8x384xf32> to vector<8x256xf32>
    %395 = vector.extract_strided_slice %393 {offsets = [0, 0], sizes = [8, 256], strides = [1, 1]} : vector<8x384xf32> to vector<8x256xf32>
    %396 = arith.addf %394, %395 : vector<8x256xf32>
    %397 = arith.negf %396 : vector<8x256xf32>
    %398 = math.exp %397 : vector<8x256xf32>
    %cst_126 = arith.constant 1.000000e+00 : f32
    %399 = vector.broadcast %cst_126 : f32 to vector<8x256xf32>
    %400 = arith.addf %399, %398 : vector<8x256xf32>
    %401 = arith.divf %399, %400 : vector<8x256xf32>
    %402 = vector.extract_strided_slice %401 {offsets = [0, 0], sizes = [8, 128], strides = [1, 1]} : vector<8x256xf32> to vector<8x128xf32>
    %403 = vector.extract_strided_slice %401 {offsets = [0, 128], sizes = [8, 128], strides = [1, 1]} : vector<8x256xf32> to vector<8x128xf32>
    %404 = vector.extract_strided_slice %391 {offsets = [0, 256], sizes = [8, 128], strides = [1, 1]} : vector<8x384xf32> to vector<8x128xf32>
    %405 = vector.extract_strided_slice %393 {offsets = [0, 256], sizes = [8, 128], strides = [1, 1]} : vector<8x384xf32> to vector<8x128xf32>
    %406 = arith.addf %405, %236 : vector<8x128xf32>
    %407 = arith.mulf %402, %406 : vector<8x128xf32>
    %408 = arith.addf %404, %407 : vector<8x128xf32>
    %409 = math.tanh %408 : vector<8x128xf32>
    %410 = arith.subf %387, %409 : vector<8x128xf32>
    %411 = arith.mulf %403, %410 : vector<8x128xf32>
    %412 = arith.addf %409, %411 : vector<8x128xf32>
    %c7_i32_127 = arith.constant 7 : i32
    %c8_i32_128 = arith.constant 8 : i32
    %413 = arith.muli %c7_i32_127, %c8_i32_128 : i32
    %414 = tpu.assume_multiple %413, 8 : i32
    %415 = arith.index_cast %414 : i32 to index
    %c0_129 = arith.constant 0 : index
    %416 = vector.load %arg12[%415, %c0_129] : memref<64x384xf32, #tpu.memory_space<vmem>>, vector<8x384xf32>
    %c0_130 = arith.constant 0 : index
    %c0_131 = arith.constant 0 : index
    %417 = vector.load %arg6[%c0_130, %c0_131] : memref<128x384xf32, #tpu.memory_space<vmem>>, vector<128x384xf32>
    %cst_132 = arith.constant dense<0.000000e+00> : vector<8x384xf32>
    %418 = tpu.matmul %412, %417, %cst_132 {dimension_numbers = #tpu.dot_dimension_numbers<[1], [0], [0], [1], [0, 0, 1, 1], [], []>} : vector<8x128xf32>, vector<128x384xf32>, vector<8x384xf32> -> vector<8x384xf32>
    %419 = vector.extract_strided_slice %416 {offsets = [0, 0], sizes = [8, 256], strides = [1, 1]} : vector<8x384xf32> to vector<8x256xf32>
    %420 = vector.extract_strided_slice %418 {offsets = [0, 0], sizes = [8, 256], strides = [1, 1]} : vector<8x384xf32> to vector<8x256xf32>
    %421 = arith.addf %419, %420 : vector<8x256xf32>
    %422 = arith.negf %421 : vector<8x256xf32>
    %423 = math.exp %422 : vector<8x256xf32>
    %cst_133 = arith.constant 1.000000e+00 : f32
    %424 = vector.broadcast %cst_133 : f32 to vector<8x256xf32>
    %425 = arith.addf %424, %423 : vector<8x256xf32>
    %426 = arith.divf %424, %425 : vector<8x256xf32>
    %427 = vector.extract_strided_slice %426 {offsets = [0, 0], sizes = [8, 128], strides = [1, 1]} : vector<8x256xf32> to vector<8x128xf32>
    %428 = vector.extract_strided_slice %426 {offsets = [0, 128], sizes = [8, 128], strides = [1, 1]} : vector<8x256xf32> to vector<8x128xf32>
    %429 = vector.extract_strided_slice %416 {offsets = [0, 256], sizes = [8, 128], strides = [1, 1]} : vector<8x384xf32> to vector<8x128xf32>
    %430 = vector.extract_strided_slice %418 {offsets = [0, 256], sizes = [8, 128], strides = [1, 1]} : vector<8x384xf32> to vector<8x128xf32>
    %431 = arith.addf %430, %236 : vector<8x128xf32>
    %432 = arith.mulf %427, %431 : vector<8x128xf32>
    %433 = arith.addf %429, %432 : vector<8x128xf32>
    %434 = math.tanh %433 : vector<8x128xf32>
    %435 = arith.subf %412, %434 : vector<8x128xf32>
    %436 = arith.mulf %428, %435 : vector<8x128xf32>
    %437 = arith.addf %434, %436 : vector<8x128xf32>
    %c8_i32_134 = arith.constant 8 : i32
    %c0_135 = arith.constant 0 : index
    %c0_136 = arith.constant 0 : index
    %438 = vector.load %arg9[%c0_135, %c0_136] : memref<128x128xf32, #tpu.memory_space<vmem>>, vector<128x128xf32>
    %cst_137 = arith.constant dense<0.000000e+00> : vector<8x128xf32>
    %439 = tpu.matmul %437, %438, %cst_137 {dimension_numbers = #tpu.dot_dimension_numbers<[1], [0], [0], [1], [0, 0, 1, 1], [], []>} : vector<8x128xf32>, vector<128x128xf32>, vector<8x128xf32> -> vector<8x128xf32>
    %c0_138 = arith.constant 0 : index
    %c0_139 = arith.constant 0 : index
    %440 = vector.load %arg10[%c0_138, %c0_139] : memref<1x128xf32, #tpu.memory_space<vmem>>, vector<1x128xf32>
    %441 = vector.broadcast %440 : vector<1x128xf32> to vector<8x128xf32>
    %442 = arith.addf %439, %441 : vector<8x128xf32>
    %c0_140 = arith.constant 0 : index
    %c0_141 = arith.constant 0 : index
    %443 = vector.load %arg11[%c0_140, %c0_141] : memref<8x128xf32, #tpu.memory_space<vmem>>, vector<8x128xf32>
    tpu.vector_store %arg11[%c0_140, %c0_141], %442 {strides = array<i32>} : memref<8x128xf32, #tpu.memory_space<vmem>>, vector<8x128xf32>,
    return
  }
}

</mosaic_0001>

<llo_original>
// kernel: tpu_custom_call.1
$region0: #{tpu_custom_call.1}
  #allocation0 [shape = 'u32[]', space=smem, size = 0x4, offset = 0x4, fixed_abs, tag = 'smem constant byte address 0x4 - core index']
  #allocation1 [shape = 'u32[72,128]{1,0:T(1,128)}', space=vmem, size = 0x9000, scoped, tag = 'internal scratch']
  #allocation2 [shape = 'f32[64,384]{1,0:T(8,128)}', space=vmem, size = 0x18000, scoped, tag = 'scratch operand']
  #allocation3 [shape = 'f32[64,128]{1,0:T(8,128)}', space=vmem, size = 0x8000, scoped, tag = 'scratch operand']
  %s0 = inlined_call_operand.hbm [shape: f32[64,128], index: 0, kind: input, shape index: {}]
  %s1 = inlined_call_operand.hbm [shape: f32[128,384], index: 1, kind: input, shape index: {}]
  %s2 = inlined_call_operand.hbm [shape: f32[128,384], index: 2, kind: input, shape index: {}]
  %s3 = inlined_call_operand.hbm [shape: f32[1,384], index: 3, kind: input, shape index: {}]
  %s4 = inlined_call_operand.vmem [shape: f32[1,128], index: 4, kind: input, shape index: {}]
  %s5 = inlined_call_operand.hbm [shape: f32[128,384], index: 5, kind: input, shape index: {}]
  %s6 = inlined_call_operand.hbm [shape: f32[128,384], index: 6, kind: input, shape index: {}]
  %s7 = inlined_call_operand.vmem [shape: f32[1,384], index: 7, kind: input, shape index: {}]
  %s8 = inlined_call_operand.vmem [shape: f32[1,128], index: 8, kind: input, shape index: {}]
  %s9 = inlined_call_operand.hbm [shape: f32[128,128], index: 9, kind: input, shape index: {}]
  %s10 = inlined_call_operand.vmem [shape: f32[1,128], index: 10, kind: input, shape index: {}]
  %s11 = inlined_call_operand.hbm [shape: f32[8,128], index: 11, kind: output, shape index: {}]
  %s12 = sld [smem:[#allocation0]]
  $region82: #{tpu_custom_call.1} parent=0
    _
  %s14 = ssub.s32 1, %s12
  %s15 = scalar_select 0, %s14, %s12
  $region1: #{tpu_custom_call.1} parent=0
    #allocation4 [shape = 'u8[32768]{0}', space=vmem, size = 0x8000, scoped, tag = 'input window, operand 0, single buffered']
    #allocation5 [shape = 's32[1]{0}', space=sflag, size = 0x4, scoped, tag = 'scoped memory for tpu_custom_call.1']
    #allocation6 [shape = 's32[1]{0}', space=sflag, size = 0x4, scoped, tag = 'scoped memory for tpu_custom_call.1']
    #allocation7 [shape = 'u8[196608]{0}', space=vmem, size = 0x30000, scoped, tag = 'input window, operand 1, single buffered']
    #allocation8 [shape = 's32[1]{0}', space=sflag, size = 0x4, scoped, tag = 'scoped memory for tpu_custom_call.1']
    #allocation9 [shape = 'u8[196608]{0}', space=vmem, size = 0x30000, scoped, tag = 'input window, operand 2, single buffered']
    #allocation10 [shape = 'u8[1536]{0}', space=vmem, size = 0x800, scoped, tag = 'input window, operand 3, single buffered']
    #allocation11 [shape = 's32[1]{0}', space=sflag, size = 0x4, scoped, tag = 'scoped memory for tpu_custom_call.1']
    #allocation12 [shape = 'u8[196608]{0}', space=vmem, size = 0x30000, scoped, tag = 'input window, operand 5, single buffered']
    #allocation13 [shape = 'u8[196608]{0}', space=vmem, size = 0x30000, scoped, tag = 'input window, operand 6, single buffered']
    #allocation14 [shape = 's32[1]{0}', space=sflag, size = 0x4, scoped, tag = 'scoped memory for tpu_custom_call.1']
    #allocation15 [shape = 'u8[65536]{0}', space=vmem, size = 0x10000, scoped, tag = 'input window, operand 9, single buffered']
    #allocation16 [shape = 'u8[4096]{0}', space=vmem, size = 0x1000, scoped, tag = 'output window, operand 0, single buffered']
    %16 = vsyncpa [#allocation5], 0
    %17 = vsyncpa [#allocation8], 0
    %18 = vsyncpa [#allocation11], 0
    %19 = vsyncpa [#allocation14], 0
    %20 = vsyncpa [#allocation6], 0
    // Predicated region
    $region2: #{tpu_custom_call.1} parent=1 // pred_check
      _
    $region3: #{tpu_custom_call.1} parent=1 // pred_check_branch
      %22 = sbr.rel (0) target = $region5
    $region4: #{tpu_custom_call.1} parent=1 // pred_region
      %24 = vsyncadd [#allocation5], 0
      %s25 = sshll.u32 %s0, 4
      %s26 = int_to_ptr.hbm [resolvable:$true] %s25
      %s27 = sshll.u32 [#allocation4], 4
      %s28 = int_to_ptr.vmem [resolvable:$true] %s27
      %33 = dma.hbm_to_vmem [thread:$0]  %s26, 1024, %s28, [#allocation5], 128, 128, 8
    $region5: #{tpu_custom_call.1} parent=1 // pred_fallthru
      _
    // Predicated region
    $region6: #{tpu_custom_call.1} parent=1 // pred_check
      _
    $region7: #{tpu_custom_call.1} parent=1 // pred_check_branch
      %35 = sbr.rel (0) target = $region9
    $region8: #{tpu_custom_call.1} parent=1 // pred_region
      %37 = vsyncadd [#allocation8], 0
      %s38 = sshll.u32 %s1, 4
      %s39 = int_to_ptr.hbm [resolvable:$true] %s38
      %s40 = sshll.u32 [#allocation7], 4
      %s41 = int_to_ptr.vmem [resolvable:$true] %s40
      %46 = dma.hbm_to_vmem [thread:$0]  %s39, 6144, %s41, [#allocation8], 384, 384, 24
    $region9: #{tpu_custom_call.1} parent=1 // pred_fallthru
      _
    // Predicated region
    $region10: #{tpu_custom_call.1} parent=1 // pred_check
      _
    $region11: #{tpu_custom_call.1} parent=1 // pred_check_branch
      %48 = sbr.rel (0) target = $region13
    $region12: #{tpu_custom_call.1} parent=1 // pred_region
      %50 = vsyncadd [#allocation8], 0
      %s51 = sshll.u32 %s2, 4
      %s52 = int_to_ptr.hbm [resolvable:$true] %s51
      %s53 = sshll.u32 [#allocation9], 4
      %s54 = int_to_ptr.vmem [resolvable:$true] %s53
      %59 = dma.hbm_to_vmem [thread:$0]  %s52, 6144, %s54, [#allocation8], 384, 384, 24
    $region13: #{tpu_custom_call.1} parent=1 // pred_fallthru
      _
    // Predicated region
    $region14: #{tpu_custom_call.1} parent=1 // pred_check
      _
    $region15: #{tpu_custom_call.1} parent=1 // pred_check_branch
      %61 = sbr.rel (0) target = $region17
    $region16: #{tpu_custom_call.1} parent=1 // pred_region
      %63 = vsyncadd [#allocation11], 0
      %s65 = sshll.u32 %s3, 4
      %s66 = int_to_ptr.hbm [resolvable:$true] %s65
      %s67 = sshll.u32 [#allocation10], 4
      %s68 = int_to_ptr.vmem [resolvable:$true] %s67
      %70 = dma.hbm_to_vmem [thread:$0]  %s66, 48, %s68, [#allocation11]
    $region17: #{tpu_custom_call.1} parent=1 // pred_fallthru
      _
    // Predicated region
    $region18: #{tpu_custom_call.1} parent=1 // pred_check
      _
    $region19: #{tpu_custom_call.1} parent=1 // pred_check_branch
      %72 = sbr.rel (0) target = $region21
    $region20: #{tpu_custom_call.1} parent=1 // pred_region
      _
    $region21: #{tpu_custom_call.1} parent=1 // pred_fallthru
      _
    // Predicated region
    $region22: #{tpu_custom_call.1} parent=1 // pred_check
      _
    $region23: #{tpu_custom_call.1} parent=1 // pred_check_branch
      %74 = sbr.rel (0) target = $region25
    $region24: #{tpu_custom_call.1} parent=1 // pred_region
      %76 = vsyncadd [#allocation11], 0
      %s77 = sshll.u32 %s5, 4
      %s78 = int_to_ptr.hbm [resolvable:$true] %s77
      %s79 = sshll.u32 [#allocation12], 4
      %s80 = int_to_ptr.vmem [resolvable:$true] %s79
      %85 = dma.hbm_to_vmem [thread:$0]  %s78, 6144, %s80, [#allocation11], 384, 384, 24
    $region25: #{tpu_custom_call.1} parent=1 // pred_fallthru
      _
    // Predicated region
    $region26: #{tpu_custom_call.1} parent=1 // pred_check
      _
    $region27: #{tpu_custom_call.1} parent=1 // pred_check_branch
      %87 = sbr.rel (0) target = $region29
    $region28: #{tpu_custom_call.1} parent=1 // pred_region
      %89 = vsyncadd [#allocation14], 0
      %s90 = sshll.u32 %s6, 4
      %s91 = int_to_ptr.hbm [resolvable:$true] %s90
      %s92 = sshll.u32 [#allocation13], 4
      %s93 = int_to_ptr.vmem [resolvable:$true] %s92
      %98 = dma.hbm_to_vmem [thread:$0]  %s91, 6144, %s93, [#allocation14], 384, 384, 24
    $region29: #{tpu_custom_call.1} parent=1 // pred_fallthru
      _
    // Predicated region
    $region30: #{tpu_custom_call.1} parent=1 // pred_check
      _
    $region31: #{tpu_custom_call.1} parent=1 // pred_check_branch
      %100 = sbr.rel (0) target = $region33
    $region32: #{tpu_custom_call.1} parent=1 // pred_region
      _
    $region33: #{tpu_custom_call.1} parent=1 // pred_fallthru
      _
    // Predicated region
    $region34: #{tpu_custom_call.1} parent=1 // pred_check
      _
    $region35: #{tpu_custom_call.1} parent=1 // pred_check_branch
      %102 = sbr.rel (0) target = $region37
    $region36: #{tpu_custom_call.1} parent=1 // pred_region
      _
    $region37: #{tpu_custom_call.1} parent=1 // pred_fallthru
      _
    // Predicated region
    $region38: #{tpu_custom_call.1} parent=1 // pred_check
      _
    $region39: #{tpu_custom_call.1} parent=1 // pred_check_branch
      %104 = sbr.rel (0) target = $region41
    $region40: #{tpu_custom_call.1} parent=1 // pred_region
      %106 = vsyncadd [#allocation14], 0
      %s107 = sshll.u32 %s9, 4
      %s108 = int_to_ptr.hbm [resolvable:$true] %s107
      %s109 = sshll.u32 [#allocation15], 4
      %s110 = int_to_ptr.vmem [resolvable:$true] %s109
      %115 = dma.hbm_to_vmem [thread:$0]  %s108, 2048, %s110, [#allocation14], 128, 128, 8
    $region41: #{tpu_custom_call.1} parent=1 // pred_fallthru
      _
    // Predicated region
    $region42: #{tpu_custom_call.1} parent=1 // pred_check
      _
    $region43: #{tpu_custom_call.1} parent=1 // pred_check_branch
      %117 = sbr.rel (0) target = $region45
    $region44: #{tpu_custom_call.1} parent=1 // pred_region
      _
    $region45: #{tpu_custom_call.1} parent=1 // pred_fallthru
      _
    // Predicated region
    $region46: #{tpu_custom_call.1} parent=1 // pred_check
      _
    $region47: #{tpu_custom_call.1} parent=1 // pred_check_branch
      %119 = sbr.rel (0) target = $region49
    $region48: #{tpu_custom_call.1} parent=1 // pred_region
      %121 = dma.done [#allocation5], 1024
    $region49: #{tpu_custom_call.1} parent=1 // pred_fallthru
      _
    // Predicated region
    $region50: #{tpu_custom_call.1} parent=1 // pred_check
      _
    $region51: #{tpu_custom_call.1} parent=1 // pred_check_branch
      %123 = sbr.rel (0) target = $region53
    $region52: #{tpu_custom_call.1} parent=1 // pred_region
      %125 = dma.done [#allocation8], 6144
    $region53: #{tpu_custom_call.1} parent=1 // pred_fallthru
      _
    // Predicated region
    $region54: #{tpu_custom_call.1} parent=1 // pred_check
      _
    $region55: #{tpu_custom_call.1} parent=1 // pred_check_branch
      %127 = sbr.rel (0) target = $region57
    $region56: #{tpu_custom_call.1} parent=1 // pred_region
      %129 = dma.done [#allocation8], 6144
    $region57: #{tpu_custom_call.1} parent=1 // pred_fallthru
      _
    // Predicated region
    $region58: #{tpu_custom_call.1} parent=1 // pred_check
      _
    $region59: #{tpu_custom_call.1} parent=1 // pred_check_branch
      %131 = sbr.rel (0) target = $region61
    $region60: #{tpu_custom_call.1} parent=1 // pred_region
      %133 = dma.done [#allocation11], 48
    $region61: #{tpu_custom_call.1} parent=1 // pred_fallthru
      _
    // Predicated region
    $region62: #{tpu_custom_call.1} parent=1 // pred_check
      _
    $region63: #{tpu_custom_call.1} parent=1 // pred_check_branch
      %135 = sbr.rel (0) target = $region65
    $region64: #{tpu_custom_call.1} parent=1 // pred_region
      %137 = dma.done [#allocation11], 6144
    $region65: #{tpu_custom_call.1} parent=1 // pred_fallthru
      _
    // Predicated region
    $region66: #{tpu_custom_call.1} parent=1 // pred_check
      _
    $region67: #{tpu_custom_call.1} parent=1 // pred_check_branch
      %139 = sbr.rel (0) target = $region69
    $region68: #{tpu_custom_call.1} parent=1 // pred_region
      %141 = dma.done [#allocation14], 6144
    $region69: #{tpu_custom_call.1} parent=1 // pred_fallthru
      _
    // Predicated region
    $region70: #{tpu_custom_call.1} parent=1 // pred_check
      _
    $region71: #{tpu_custom_call.1} parent=1 // pred_check_branch
      %143 = sbr.rel (0) target = $region73
    $region72: #{tpu_custom_call.1} parent=1 // pred_region
      %145 = dma.done [#allocation14], 2048
    $region73: #{tpu_custom_call.1} parent=1 // pred_fallthru
      _
    %v146 = vld [vmem:[#allocation4] sm:$0xff]
    %v147 = vld [vmem:[#allocation4 + $0x8] sm:$0xff]
    %v148 = vld [vmem:[#allocation4 + $0x10] sm:$0xff]
    %v149 = vld [vmem:[#allocation4 + $0x18] sm:$0xff]
    %v150 = vld [vmem:[#allocation4 + $0x20] sm:$0xff]
    %v151 = vld [vmem:[#allocation4 + $0x28] sm:$0xff]
    %v152 = vld [vmem:[#allocation4 + $0x30] sm:$0xff]
    %v153 = vld [vmem:[#allocation4 + $0x38] sm:$0xff]
    %v154 = vld [vmem:[#allocation7] sm:$0xff]
    %v155 = vld [vmem:[#allocation7 + $0x8] sm:$0xff]
    %v156 = vld [vmem:[#allocation7 + $0x10] sm:$0xff]
    %v157 = vld [vmem:[#allocation7 + $0x18] sm:$0xff]
    %v158 = vld [vmem:[#allocation7 + $0x20] sm:$0xff]
    %v159 = vld [vmem:[#allocation7 + $0x28] sm:$0xff]
    %v160 = vld [vmem:[#allocation7 + $0x30] sm:$0xff]
    %v161 = vld [vmem:[#allocation7 + $0x38] sm:$0xff]
    %v162 = vld [vmem:[#allocation7 + $0x40] sm:$0xff]
    %v163 = vld [vmem:[#allocation7 + $0x48] sm:$0xff]
    %v164 = vld [vmem:[#allocation7 + $0x50] sm:$0xff]
    %v165 = vld [vmem:[#allocation7 + $0x58] sm:$0xff]
    %v166 = vld [vmem:[#allocation7 + $0x60] sm:$0xff]
    %v167 = vld [vmem:[#allocation7 + $0x68] sm:$0xff]
    %v168 = vld [vmem:[#allocation7 + $0x70] sm:$0xff]
    %v169 = vld [vmem:[#allocation7 + $0x78] sm:$0xff]
    %v170 = vld [vmem:[#allocation7 + $0x80] sm:$0xff]
    %v171 = vld [vmem:[#allocation7 + $0x88] sm:$0xff]
    %v172 = vld [vmem:[#allocation7 + $0x90] sm:$0xff]
    %v173 = vld [vmem:[#allocation7 + $0x98] sm:$0xff]
    %v174 = vld [vmem:[#allocation7 + $0xa0] sm:$0xff]
    %v175 = vld [vmem:[#allocation7 + $0xa8] sm:$0xff]
    %v176 = vld [vmem:[#allocation7 + $0xb0] sm:$0xff]
    %v177 = vld [vmem:[#allocation7 + $0xb8] sm:$0xff]
    %v178 = vld [vmem:[#allocation7 + $0xc0] sm:$0xff]
    %v179 = vld [vmem:[#allocation7 + $0xc8] sm:$0xff]
    %v180 = vld [vmem:[#allocation7 + $0xd0] sm:$0xff]
    %v181 = vld [vmem:[#allocation7 + $0xd8] sm:$0xff]
    %v182 = vld [vmem:[#allocation7 + $0xe0] sm:$0xff]
    %v183 = vld [vmem:[#allocation7 + $0xe8] sm:$0xff]
    %v184 = vld [vmem:[#allocation7 + $0xf0] sm:$0xff]
    %v185 = vld [vmem:[#allocation7 + $0xf8] sm:$0xff]
    %v186 = vld [vmem:[#allocation7 + $0x100] sm:$0xff]
    %v187 = vld [vmem:[#allocation7 + $0x108] sm:$0xff]
    %v188 = vld [vmem:[#allocation7 + $0x110] sm:$0xff]
    %v189 = vld [vmem:[#allocation7 + $0x118] sm:$0xff]
    %v190 = vld [vmem:[#allocation7 + $0x120] sm:$0xff]
    %v191 = vld [vmem:[#allocation7 + $0x128] sm:$0xff]
    %v192 = vld [vmem:[#allocation7 + $0x130] sm:$0xff]
    %v193 = vld [vmem:[#allocation7 + $0x138] sm:$0xff]
    %v194 = vld [vmem:[#allocation7 + $0x140] sm:$0xff]
    %v195 = vld [vmem:[#allocation7 + $0x148] sm:$0xff]
    %v196 = vld [vmem:[#allocation7 + $0x150] sm:$0xff]
    %v197 = vld [vmem:[#allocation7 + $0x158] sm:$0xff]
    %v198 = vld [vmem:[#allocation7 + $0x160] sm:$0xff]
    %v199 = vld [vmem:[#allocation7 + $0x168] sm:$0xff]
    %v200 = vld [vmem:[#allocation7 + $0x170] sm:$0xff]
    %v201 = vld [vmem:[#allocation7 + $0x178] sm:$0xff]
    %v202 = vld [vmem:[#allocation10] sm:$0x7]
    %v204 = vperm.slane %v202, 0
    %v205 = vperm.slane %v202, 1
    %v206 = vperm.slane %v202, 2
    %210 = vmatpush.msra.mxu0 %v199
    %211 = vmatpush.msra.mxu0 %v196
    %212 = vmatpush.msra.mxu0 %v193
    %213 = vmatpush.msra.mxu0 %v190
    %214 = vmatpush.msra.mxu0 %v187
    %215 = vmatpush.msra.mxu0 %v184
    %216 = vmatpush.msra.mxu0 %v181
    %217 = vmatpush.msra.mxu0 %v178
    %218 = vmatpush.msra.mxu0 %v175
    %219 = vmatpush.msra.mxu0 %v172
    %220 = vmatpush.msra.mxu0 %v169
    %221 = vmatpush.msra.mxu0 %v166
    %222 = vmatpush.msra.mxu0 %v163
    %223 = vmatpush.msra.mxu0 %v160
    %224 = vmatpush.msra.mxu0 %v157
    %225 = vmatpush.msra.mxu0 %v154
    %226 = vmatmul.f32.gmra.mxu0 %v146
    %v227 = vpop.f32.mrf.mxu0
    %v228 = vadd.f32 %v204, %v227
    %229 = vmatmul.f32.gmra.mxu0 %v147
    %v230 = vpop.f32.mrf.mxu0
    %v231 = vadd.f32 %v204, %v230
    %232 = vmatmul.f32.gmra.mxu0 %v148
    %v233 = vpop.f32.mrf.mxu0
    %v234 = vadd.f32 %v204, %v233
    %235 = vmatmul.f32.gmra.mxu0 %v149
    %v236 = vpop.f32.mrf.mxu0
    %v237 = vadd.f32 %v204, %v236
    %238 = vmatmul.f32.gmra.mxu0 %v150
    %v239 = vpop.f32.mrf.mxu0
    %v240 = vadd.f32 %v204, %v239
    %241 = vmatmul.f32.gmra.mxu0 %v151
    %v242 = vpop.f32.mrf.mxu0
    %v243 = vadd.f32 %v204, %v242
    %244 = vmatmul.f32.gmra.mxu0 %v152
    %v245 = vpop.f32.mrf.mxu0
    %v246 = vadd.f32 %v204, %v245
    %247 = vmatmul.f32.gmra.mxu0 %v153
    %v248 = vpop.f32.mrf.mxu0
    %v249 = vadd.f32 %v204, %v248
    %250 = vdwg.mxu0
    %251 = vmatpush.msra.mxu0 %v200
    %252 = vmatpush.msra.mxu0 %v197
    %253 = vmatpush.msra.mxu0 %v194
    %254 = vmatpush.msra.mxu0 %v191
    %255 = vmatpush.msra.mxu0 %v188
    %256 = vmatpush.msra.mxu0 %v185
    %257 = vmatpush.msra.mxu0 %v182
    %258 = vmatpush.msra.mxu0 %v179
    %259 = vmatpush.msra.mxu0 %v176
    %260 = vmatpush.msra.mxu0 %v173
    %261 = vmatpush.msra.mxu0 %v170
    %262 = vmatpush.msra.mxu0 %v167
    %263 = vmatpush.msra.mxu0 %v164
    %264 = vmatpush.msra.mxu0 %v161
    %265 = vmatpush.msra.mxu0 %v158
    %266 = vmatpush.msra.mxu0 %v155
    %267 = vmatmul.f32.gmra.mxu0 %v146
    %v268 = vpop.f32.mrf.mxu0
    %v269 = vadd.f32 %v205, %v268
    %270 = vmatmul.f32.gmra.mxu0 %v147
    %v271 = vpop.f32.mrf.mxu0
    %v272 = vadd.f32 %v205, %v271
    %273 = vmatmul.f32.gmra.mxu0 %v148
    %v274 = vpop.f32.mrf.mxu0
    %v275 = vadd.f32 %v205, %v274
    %276 = vmatmul.f32.gmra.mxu0 %v149
    %v277 = vpop.f32.mrf.mxu0
    %v278 = vadd.f32 %v205, %v277
    %279 = vmatmul.f32.gmra.mxu0 %v150
    %v280 = vpop.f32.mrf.mxu0
    %v281 = vadd.f32 %v205, %v280
    %282 = vmatmul.f32.gmra.mxu0 %v151
    %v283 = vpop.f32.mrf.mxu0
    %v284 = vadd.f32 %v205, %v283
    %285 = vmatmul.f32.gmra.mxu0 %v152
    %v286 = vpop.f32.mrf.mxu0
    %v287 = vadd.f32 %v205, %v286
    %288 = vmatmul.f32.gmra.mxu0 %v153
    %v289 = vpop.f32.mrf.mxu0
    %v290 = vadd.f32 %v205, %v289
    %291 = vdwg.mxu0
    %292 = vmatpush.msra.mxu0 %v201
    %293 = vmatpush.msra.mxu0 %v198
    %294 = vmatpush.msra.mxu0 %v195
    %295 = vmatpush.msra.mxu0 %v192
    %296 = vmatpush.msra.mxu0 %v189
    %297 = vmatpush.msra.mxu0 %v186
    %298 = vmatpush.msra.mxu0 %v183
    %299 = vmatpush.msra.mxu0 %v180
    %300 = vmatpush.msra.mxu0 %v177
    %301 = vmatpush.msra.mxu0 %v174
    %302 = vmatpush.msra.mxu0 %v171
    %303 = vmatpush.msra.mxu0 %v168
    %304 = vmatpush.msra.mxu0 %v165
    %305 = vmatpush.msra.mxu0 %v162
    %306 = vmatpush.msra.mxu0 %v159
    %307 = vmatpush.msra.mxu0 %v156
    %308 = vmatmul.f32.gmra.mxu0 %v146
    %v309 = vpop.f32.mrf.mxu0
    %v310 = vadd.f32 %v206, %v309
    %311 = vmatmul.f32.gmra.mxu0 %v147
    %v312 = vpop.f32.mrf.mxu0
    %v313 = vadd.f32 %v206, %v312
    %314 = vmatmul.f32.gmra.mxu0 %v148
    %v315 = vpop.f32.mrf.mxu0
    %v316 = vadd.f32 %v206, %v315
    %317 = vmatmul.f32.gmra.mxu0 %v149
    %v318 = vpop.f32.mrf.mxu0
    %v319 = vadd.f32 %v206, %v318
    %320 = vmatmul.f32.gmra.mxu0 %v150
    %v321 = vpop.f32.mrf.mxu0
    %v322 = vadd.f32 %v206, %v321
    %323 = vmatmul.f32.gmra.mxu0 %v151
    %v324 = vpop.f32.mrf.mxu0
    %v325 = vadd.f32 %v206, %v324
    %326 = vmatmul.f32.gmra.mxu0 %v152
    %v327 = vpop.f32.mrf.mxu0
    %v328 = vadd.f32 %v206, %v327
    %329 = vmatmul.f32.gmra.mxu0 %v153
    %v330 = vpop.f32.mrf.mxu0
    %v331 = vadd.f32 %v206, %v330
    %332 = vdwg.mxu0
    %333 = vst [vmem:[#allocation2] sm:$0xff] %v228
    %334 = vst [vmem:[#allocation2 + $0x8] sm:$0xff] %v269
    %335 = vst [vmem:[#allocation2 + $0x10] sm:$0xff] %v310
    %336 = vst [vmem:[#allocation2 + $0x18] sm:$0xff] %v231
    %337 = vst [vmem:[#allocation2 + $0x20] sm:$0xff] %v272
    %338 = vst [vmem:[#allocation2 + $0x28] sm:$0xff] %v313
    %339 = vst [vmem:[#allocation2 + $0x30] sm:$0xff] %v234
    %340 = vst [vmem:[#allocation2 + $0x38] sm:$0xff] %v275
    %341 = vst [vmem:[#allocation2 + $0x40] sm:$0xff] %v316
    %342 = vst [vmem:[#allocation2 + $0x48] sm:$0xff] %v237
    %343 = vst [vmem:[#allocation2 + $0x50] sm:$0xff] %v278
    %344 = vst [vmem:[#allocation2 + $0x58] sm:$0xff] %v319
    %345 = vst [vmem:[#allocation2 + $0x60] sm:$0xff] %v240
    %346 = vst [vmem:[#allocation2 + $0x68] sm:$0xff] %v281
    %347 = vst [vmem:[#allocation2 + $0x70] sm:$0xff] %v322
    %348 = vst [vmem:[#allocation2 + $0x78] sm:$0xff] %v243
    %349 = vst [vmem:[#allocation2 + $0x80] sm:$0xff] %v284
    %350 = vst [vmem:[#allocation2 + $0x88] sm:$0xff] %v325
    %351 = vst [vmem:[#allocation2 + $0x90] sm:$0xff] %v246
    %352 = vst [vmem:[#allocation2 + $0x98] sm:$0xff] %v287
    %353 = vst [vmem:[#allocation2 + $0xa0] sm:$0xff] %v328
    %354 = vst [vmem:[#allocation2 + $0xa8] sm:$0xff] %v249
    %355 = vst [vmem:[#allocation2 + $0xb0] sm:$0xff] %v290
    %356 = vst [vmem:[#allocation2 + $0xb8] sm:$0xff] %v331
    %v357 = vld [vmem:[%s4] sm:$0x1]
    %v359 = vperm.slane %v357, 0
    %s361 = smul.u32 0, 3
    %s362 = smul.addr %s361, 8
    %s363 = scalar_lea.vmem [#allocation2], %s362
    %v364 = vld [vmem:[%s363] sm:$0xff]
    %v365 = vld [vmem:[%s363 + $0x8] sm:$0xff]
    %v366 = vld [vmem:[%s363 + $0x10] sm:$0xff]
    %v367 = vld [vmem:[#allocation9] sm:$0xff]
    %v368 = vld [vmem:[#allocation9 + $0x8] sm:$0xff]
    %v369 = vld [vmem:[#allocation9 + $0x10] sm:$0xff]
    %v370 = vld [vmem:[#allocation9 + $0x18] sm:$0xff]
    %v371 = vld [vmem:[#allocation9 + $0x20] sm:$0xff]
    %v372 = vld [vmem:[#allocation9 + $0x28] sm:$0xff]
    %v373 = vld [vmem:[#allocation9 + $0x30] sm:$0xff]
    %v374 = vld [vmem:[#allocation9 + $0x38] sm:$0xff]
    %v375 = vld [vmem:[#allocation9 + $0x40] sm:$0xff]
    %v376 = vld [vmem:[#allocation9 + $0x48] sm:$0xff]
    %v377 = vld [vmem:[#allocation9 + $0x50] sm:$0xff]
    %v378 = vld [vmem:[#allocation9 + $0x58] sm:$0xff]
    %v379 = vld [vmem:[#allocation9 + $0x60] sm:$0xff]
    %v380 = vld [vmem:[#allocation9 + $0x68] sm:$0xff]
    %v381 = vld [vmem:[#allocation9 + $0x70] sm:$0xff]
    %v382 = vld [vmem:[#allocation9 + $0x78] sm:$0xff]
    %v383 = vld [vmem:[#allocation9 + $0x80] sm:$0xff]
    %v384 = vld [vmem:[#allocation9 + $0x88] sm:$0xff]
    %v385 = vld [vmem:[#allocation9 + $0x90] sm:$0xff]
    %v386 = vld [vmem:[#allocation9 + $0x98] sm:$0xff]
    %v387 = vld [vmem:[#allocation9 + $0xa0] sm:$0xff]
    %v388 = vld [vmem:[#allocation9 + $0xa8] sm:$0xff]
    %v389 = vld [vmem:[#allocation9 + $0xb0] sm:$0xff]
    %v390 = vld [vmem:[#allocation9 + $0xb8] sm:$0xff]
    %v391 = vld [vmem:[#allocation9 + $0xc0] sm:$0xff]
    %v392 = vld [vmem:[#allocation9 + $0xc8] sm:$0xff]
    %v393 = vld [vmem:[#allocation9 + $0xd0] sm:$0xff]
    %v394 = vld [vmem:[#allocation9 + $0xd8] sm:$0xff]
    %v395 = vld [vmem:[#allocation9 + $0xe0] sm:$0xff]
    %v396 = vld [vmem:[#allocation9 + $0xe8] sm:$0xff]
    %v397 = vld [vmem:[#allocation9 + $0xf0] sm:$0xff]
    %v398 = vld [vmem:[#allocation9 + $0xf8] sm:$0xff]
    %v399 = vld [vmem:[#allocation9 + $0x100] sm:$0xff]
    %v400 = vld [vmem:[#allocation9 + $0x108] sm:$0xff]
    %v401 = vld [vmem:[#allocation9 + $0x110] sm:$0xff]
    %v402 = vld [vmem:[#allocation9 + $0x118] sm:$0xff]
    %v403 = vld [vmem:[#allocation9 + $0x120] sm:$0xff]
    %v404 = vld [vmem:[#allocation9 + $0x128] sm:$0xff]
    %v405 = vld [vmem:[#allocation9 + $0x130] sm:$0xff]
    %v406 = vld [vmem:[#allocation9 + $0x138] sm:$0xff]
    %v407 = vld [vmem:[#allocation9 + $0x140] sm:$0xff]
    %v408 = vld [vmem:[#allocation9 + $0x148] sm:$0xff]
    %v409 = vld [vmem:[#allocation9 + $0x150] sm:$0xff]
    %v410 = vld [vmem:[#allocation9 + $0x158] sm:$0xff]
    %v411 = vld [vmem:[#allocation9 + $0x160] sm:$0xff]
    %v412 = vld [vmem:[#allocation9 + $0x168] sm:$0xff]
    %v413 = vld [vmem:[#allocation9 + $0x170] sm:$0xff]
    %v414 = vld [vmem:[#allocation9 + $0x178] sm:$0xff]
    %415 = vmatpush.msra.mxu0 %v412
    %416 = vmatpush.msra.mxu0 %v409
    %417 = vmatpush.msra.mxu0 %v406
    %418 = vmatpush.msra.mxu0 %v403
    %419 = vmatpush.msra.mxu0 %v400
    %420 = vmatpush.msra.mxu0 %v397
    %421 = vmatpush.msra.mxu0 %v394
    %422 = vmatpush.msra.mxu0 %v391
    %423 = vmatpush.msra.mxu0 %v388
    %424 = vmatpush.msra.mxu0 %v385
    %425 = vmatpush.msra.mxu0 %v382
    %426 = vmatpush.msra.mxu0 %v379
    %427 = vmatpush.msra.mxu0 %v376
    %428 = vmatpush.msra.mxu0 %v373
    %429 = vmatpush.msra.mxu0 %v370
    %430 = vmatpush.msra.mxu0 %v367
    %431 = vmatmul.f32.gmra.mxu0 0.0
    %v432 = vpop.f32.mrf.mxu0
    %v433 = vadd.f32 0.0, %v432
    %434 = vdwg.mxu0
    %435 = vmatpush.msra.mxu0 %v413
    %436 = vmatpush.msra.mxu0 %v410
    %437 = vmatpush.msra.mxu0 %v407
    %438 = vmatpush.msra.mxu0 %v404
    %439 = vmatpush.msra.mxu0 %v401
    %440 = vmatpush.msra.mxu0 %v398
    %441 = vmatpush.msra.mxu0 %v395
    %442 = vmatpush.msra.mxu0 %v392
    %443 = vmatpush.msra.mxu0 %v389
    %444 = vmatpush.msra.mxu0 %v386
    %445 = vmatpush.msra.mxu0 %v383
    %446 = vmatpush.msra.mxu0 %v380
    %447 = vmatpush.msra.mxu0 %v377
    %448 = vmatpush.msra.mxu0 %v374
    %449 = vmatpush.msra.mxu0 %v371
    %450 = vmatpush.msra.mxu0 %v368
    %451 = vmatmul.f32.gmra.mxu0 0.0
    %v452 = vpop.f32.mrf.mxu0
    %v453 = vadd.f32 0.0, %v452
    %454 = vdwg.mxu0
    %455 = vmatpush.msra.mxu0 %v414
    %456 = vmatpush.msra.mxu0 %v411
    %457 = vmatpush.msra.mxu0 %v408
    %458 = vmatpush.msra.mxu0 %v405
    %459 = vmatpush.msra.mxu0 %v402
    %460 = vmatpush.msra.mxu0 %v399
    %461 = vmatpush.msra.mxu0 %v396
    %462 = vmatpush.msra.mxu0 %v393
    %463 = vmatpush.msra.mxu0 %v390
    %464 = vmatpush.msra.mxu0 %v387
    %465 = vmatpush.msra.mxu0 %v384
    %466 = vmatpush.msra.mxu0 %v381
    %467 = vmatpush.msra.mxu0 %v378
    %468 = vmatpush.msra.mxu0 %v375
    %469 = vmatpush.msra.mxu0 %v372
    %470 = vmatpush.msra.mxu0 %v369
    %471 = vmatmul.f32.gmra.mxu0 0.0
    %v472 = vpop.f32.mrf.mxu0
    %v473 = vadd.f32 0.0, %v472
    %474 = vdwg.mxu0
    %v475 = vadd.f32 %v364, %v433
    %v476 = vadd.f32 %v365, %v453
    %v477 = vxor.u32 %v475, 2147483648
    %v478 = vxor.u32 %v476, 2147483648
    %v479 = vmul.f32 %v477, 1.442695
    %v480 = vpow.pop %v479
    %v481 = vmul.f32 %v478, 1.442695
    %v482 = vpow.pop %v481
    %v483 = vadd.f32 %v480, 1.0
    %v484 = vadd.f32 %v482, 1.0
    %v485 = vrcp.pop %v483
    %v486 = vmul.f32 %v483, %v485
    %v487 = vsub.f32 1.0, %v486
    %v488 = vmul.f32 %v485, %v487
    %v489 = vadd.f32 %v485, %v488
    %vm490 = vweird.f32 %v483
    %vm491 = vweird.f32 %v485
    %vm492 = vmor %vm490, %vm491
    %v493 = vsel %vm492, %v485, %v489
    %v494 = vand.u32 2147483647, %v483
    %vm495 = vcmp.eq.f32.partialorder %v494, 8.507059e+37
    %v496 = vand.u32 %v483, 2147483648
    %v497 = vor.u32 1.1754944e-38, %v496
    %v498 = vsel %vm495, %v497, %v493
    %v499 = vmul.f32 1.0, %v498
    %v500 = vrcp.pop %v484
    %v501 = vmul.f32 %v484, %v500
    %v502 = vsub.f32 1.0, %v501
    %v503 = vmul.f32 %v500, %v502
    %v504 = vadd.f32 %v500, %v503
    %vm505 = vweird.f32 %v484
    %vm506 = vweird.f32 %v500
    %vm507 = vmor %vm505, %vm506
    %v508 = vsel %vm507, %v500, %v504
    %v509 = vand.u32 2147483647, %v484
    %vm510 = vcmp.eq.f32.partialorder %v509, 8.507059e+37
    %v511 = vand.u32 %v484, 2147483648
    %v512 = vor.u32 1.1754944e-38, %v511
    %v513 = vsel %vm510, %v512, %v508
    %v514 = vmul.f32 1.0, %v513
    %v515 = vadd.f32 %v473, %v359
    %v516 = vmul.f32 %v499, %v515
    %v517 = vadd.f32 %v366, %v516
    %v518 = vtanh.pop %v517
    %v519 = vsub.f32 0.0, %v518
    %v520 = vmul.f32 %v514, %v519
    %v521 = vadd.f32 %v518, %v520
    %522 = vst [vmem:[#allocation3] sm:$0xff] %v521
    %s523 = smul.u32 1, 3
    %s524 = smul.addr %s523, 8
    %s525 = scalar_lea.vmem [#allocation2], %s524
    %v526 = vld [vmem:[%s525] sm:$0xff]
    %v527 = vld [vmem:[%s525 + $0x8] sm:$0xff]
    %v528 = vld [vmem:[%s525 + $0x10] sm:$0xff]
    %v529 = vld [vmem:[#allocation9] sm:$0xff]
    %v530 = vld [vmem:[#allocation9 + $0x8] sm:$0xff]
    %v531 = vld [vmem:[#allocation9 + $0x10] sm:$0xff]
    %v532 = vld [vmem:[#allocation9 + $0x18] sm:$0xff]
    %v533 = vld [vmem:[#allocation9 + $0x20] sm:$0xff]
    %v534 = vld [vmem:[#allocation9 + $0x28] sm:$0xff]
    %v535 = vld [vmem:[#allocation9 + $0x30] sm:$0xff]
    %v536 = vld [vmem:[#allocation9 + $0x38] sm:$0xff]
    %v537 = vld [vmem:[#allocation9 + $0x40] sm:$0xff]
    %v538 = vld [vmem:[#allocation9 + $0x48] sm:$0xff]
    %v539 = vld [vmem:[#allocation9 + $0x50] sm:$0xff]
    %v540 = vld [vmem:[#allocation9 + $0x58] sm:$0xff]
    %v541 = vld [vmem:[#allocation9 + $0x60] sm:$0xff]
    %v542 = vld [vmem:[#allocation9 + $0x68] sm:$0xff]
    %v543 = vld [vmem:[#allocation9 + $0x70] sm:$0xff]
    %v544 = vld [vmem:[#allocation9 + $0x78] sm:$0xff]
    %v545 = vld [vmem:[#allocation9 + $0x80] sm:$0xff]
    %v546 = vld [vmem:[#allocation9 + $0x88] sm:$0xff]
    %v547 = vld [vmem:[#allocation9 + $0x90] sm:$0xff]
    %v548 = vld [vmem:[#allocation9 + $0x98] sm:$0xff]
    %v549 = vld [vmem:[#allocation9 + $0xa0] sm:$0xff]
    %v550 = vld [vmem:[#allocation9 + $0xa8] sm:$0xff]
    %v551 = vld [vmem:[#allocation9 + $0xb0] sm:$0xff]
    %v552 = vld [vmem:[#allocation9 + $0xb8] sm:$0xff]
    %v553 = vld [vmem:[#allocation9 + $0xc0] sm:$0xff]
    %v554 = vld [vmem:[#allocation9 + $0xc8] sm:$0xff]
    %v555 = vld [vmem:[#allocation9 + $0xd0] sm:$0xff]
    %v556 = vld [vmem:[#allocation9 + $0xd8] sm:$0xff]
    %v557 = vld [vmem:[#allocation9 + $0xe0] sm:$0xff]
    %v558 = vld [vmem:[#allocation9 + $0xe8] sm:$0xff]
    %v559 = vld [vmem:[#allocation9 + $0xf0] sm:$0xff]
    %v560 = vld [vmem:[#allocation9 + $0xf8] sm:$0xff]
    %v561 = vld [vmem:[#allocation9 + $0x100] sm:$0xff]
    %v562 = vld [vmem:[#allocation9 + $0x108] sm:$0xff]
    %v563 = vld [vmem:[#allocation9 + $0x110] sm:$0xff]
    %v564 = vld [vmem:[#allocation9 + $0x118] sm:$0xff]
    %v565 = vld [vmem:[#allocation9 + $0x120] sm:$0xff]
    %v566 = vld [vmem:[#allocation9 + $0x128] sm:$0xff]
    %v567 = vld [vmem:[#allocation9 + $0x130] sm:$0xff]
    %v568 = vld [vmem:[#allocation9 + $0x138] sm:$0xff]
    %v569 = vld [vmem:[#allocation9 + $0x140] sm:$0xff]
    %v570 = vld [vmem:[#allocation9 + $0x148] sm:$0xff]
    %v571 = vld [vmem:[#allocation9 + $0x150] sm:$0xff]
    %v572 = vld [vmem:[#allocation9 + $0x158] sm:$0xff]
    %v573 = vld [vmem:[#allocation9 + $0x160] sm:$0xff]
    %v574 = vld [vmem:[#allocation9 + $0x168] sm:$0xff]
    %v575 = vld [vmem:[#allocation9 + $0x170] sm:$0xff]
    %v576 = vld [vmem:[#allocation9 + $0x178] sm:$0xff]
    %577 = vmatpush.msra.mxu0 %v574
    %578 = vmatpush.msra.mxu0 %v571
    %579 = vmatpush.msra.mxu0 %v568
    %580 = vmatpush.msra.mxu0 %v565
    %581 = vmatpush.msra.mxu0 %v562
    %582 = vmatpush.msra.mxu0 %v559
    %583 = vmatpush.msra.mxu0 %v556
    %584 = vmatpush.msra.mxu0 %v553
    %585 = vmatpush.msra.mxu0 %v550
    %586 = vmatpush.msra.mxu0 %v547
    %587 = vmatpush.msra.mxu0 %v544
    %588 = vmatpush.msra.mxu0 %v541
    %589 = vmatpush.msra.mxu0 %v538
    %590 = vmatpush.msra.mxu0 %v535
    %591 = vmatpush.msra.mxu0 %v532
    %592 = vmatpush.msra.mxu0 %v529
    %593 = vmatmul.f32.gmra.mxu0 %v521
    %v594 = vpop.f32.mrf.mxu0
    %v595 = vadd.f32 0.0, %v594
    %596 = vdwg.mxu0
    %597 = vmatpush.msra.mxu0 %v575
    %598 = vmatpush.msra.mxu0 %v572
    %599 = vmatpush.msra.mxu0 %v569
    %600 = vmatpush.msra.mxu0 %v566
    %601 = vmatpush.msra.mxu0 %v563
    %602 = vmatpush.msra.mxu0 %v560
    %603 = vmatpush.msra.mxu0 %v557
    %604 = vmatpush.msra.mxu0 %v554
    %605 = vmatpush.msra.mxu0 %v551
    %606 = vmatpush.msra.mxu0 %v548
    %607 = vmatpush.msra.mxu0 %v545
    %608 = vmatpush.msra.mxu0 %v542
    %609 = vmatpush.msra.mxu0 %v539
    %610 = vmatpush.msra.mxu0 %v536
    %611 = vmatpush.msra.mxu0 %v533
    %612 = vmatpush.msra.mxu0 %v530
    %613 = vmatmul.f32.gmra.mxu0 %v521
    %v614 = vpop.f32.mrf.mxu0
    %v615 = vadd.f32 0.0, %v614
    %616 = vdwg.mxu0
    %617 = vmatpush.msra.mxu0 %v576
    %618 = vmatpush.msra.mxu0 %v573
    %619 = vmatpush.msra.mxu0 %v570
    %620 = vmatpush.msra.mxu0 %v567
    %621 = vmatpush.msra.mxu0 %v564
    %622 = vmatpush.msra.mxu0 %v561
    %623 = vmatpush.msra.mxu0 %v558
    %624 = vmatpush.msra.mxu0 %v555
    %625 = vmatpush.msra.mxu0 %v552
    %626 = vmatpush.msra.mxu0 %v549
    %627 = vmatpush.msra.mxu0 %v546
    %628 = vmatpush.msra.mxu0 %v543
    %629 = vmatpush.msra.mxu0 %v540
    %630 = vmatpush.msra.mxu0 %v537
    %631 = vmatpush.msra.mxu0 %v534
    %632 = vmatpush.msra.mxu0 %v531
    %633 = vmatmul.f32.gmra.mxu0 %v521
    %v634 = vpop.f32.mrf.mxu0
    %v635 = vadd.f32 0.0, %v634
    %636 = vdwg.mxu0
    %v637 = vadd.f32 %v526, %v595
    %v638 = vadd.f32 %v527, %v615
    %v639 = vxor.u32 %v637, 2147483648
    %v640 = vxor.u32 %v638, 2147483648
    %v641 = vmul.f32 %v639, 1.442695
    %v642 = vpow.pop %v641
    %v643 = vmul.f32 %v640, 1.442695
    %v644 = vpow.pop %v643
    %v645 = vadd.f32 %v642, 1.0
    %v646 = vadd.f32 %v644, 1.0
    %v647 = vrcp.pop %v645
    %v648 = vmul.f32 %v645, %v647
    %v649 = vsub.f32 1.0, %v648
    %v650 = vmul.f32 %v647, %v649
    %v651 = vadd.f32 %v647, %v650
    %vm652 = vweird.f32 %v645
    %vm653 = vweird.f32 %v647
    %vm654 = vmor %vm652, %vm653
    %v655 = vsel %vm654, %v647, %v651
    %v656 = vand.u32 2147483647, %v645
    %vm657 = vcmp.eq.f32.partialorder %v656, 8.507059e+37
    %v658 = vand.u32 %v645, 2147483648
    %v659 = vor.u32 1.1754944e-38, %v658
    %v660 = vsel %vm657, %v659, %v655
    %v661 = vmul.f32 1.0, %v660
    %v662 = vrcp.pop %v646
    %v663 = vmul.f32 %v646, %v662
    %v664 = vsub.f32 1.0, %v663
    %v665 = vmul.f32 %v662, %v664
    %v666 = vadd.f32 %v662, %v665
    %vm667 = vweird.f32 %v646
    %vm668 = vweird.f32 %v662
    %vm669 = vmor %vm667, %vm668
    %v670 = vsel %vm669, %v662, %v666
    %v671 = vand.u32 2147483647, %v646
    %vm672 = vcmp.eq.f32.partialorder %v671, 8.507059e+37
    %v673 = vand.u32 %v646, 2147483648
    %v674 = vor.u32 1.1754944e-38, %v673
    %v675 = vsel %vm672, %v674, %v670
    %v676 = vmul.f32 1.0, %v675
    %v677 = vadd.f32 %v635, %v359
    %v678 = vmul.f32 %v661, %v677
    %v679 = vadd.f32 %v528, %v678
    %v680 = vtanh.pop %v679
    %v681 = vsub.f32 %v521, %v680
    %v682 = vmul.f32 %v676, %v681
    %v683 = vadd.f32 %v680, %v682
    %s684 = scalar_lea.vmem [#allocation3], 8
    %685 = vst [vmem:[%s684] sm:$0xff] %v683
    %s686 = smul.u32 2, 3
    %s687 = smul.addr %s686, 8
    %s688 = scalar_lea.vmem [#allocation2], %s687
    %v689 = vld [vmem:[%s688] sm:$0xff]
    %v690 = vld [vmem:[%s688 + $0x8] sm:$0xff]
    %v691 = vld [vmem:[%s688 + $0x10] sm:$0xff]
    %v692 = vld [vmem:[#allocation9] sm:$0xff]
    %v693 = vld [vmem:[#allocation9 + $0x8] sm:$0xff]
    %v694 = vld [vmem:[#allocation9 + $0x10] sm:$0xff]
    %v695 = vld [vmem:[#allocation9 + $0x18] sm:$0xff]
    %v696 = vld [vmem:[#allocation9 + $0x20] sm:$0xff]
    %v697 = vld [vmem:[#allocation9 + $0x28] sm:$0xff]
    %v698 = vld [vmem:[#allocation9 + $0x30] sm:$0xff]
    %v699 = vld [vmem:[#allocation9 + $0x38] sm:$0xff]
    %v700 = vld [vmem:[#allocation9 + $0x40] sm:$0xff]
    %v701 = vld [vmem:[#allocation9 + $0x48] sm:$0xff]
    %v702 = vld [vmem:[#allocation9 + $0x50] sm:$0xff]
    %v703 = vld [vmem:[#allocation9 + $0x58] sm:$0xff]
    %v704 = vld [vmem:[#allocation9 + $0x60] sm:$0xff]
    %v705 = vld [vmem:[#allocation9 + $0x68] sm:$0xff]
    %v706 = vld [vmem:[#allocation9 + $0x70] sm:$0xff]
    %v707 = vld [vmem:[#allocation9 + $0x78] sm:$0xff]
    %v708 = vld [vmem:[#allocation9 + $0x80] sm:$0xff]
    %v709 = vld [vmem:[#allocation9 + $0x88] sm:$0xff]
    %v710 = vld [vmem:[#allocation9 + $0x90] sm:$0xff]
    %v711 = vld [vmem:[#allocation9 + $0x98] sm:$0xff]
    %v712 = vld [vmem:[#allocation9 + $0xa0] sm:$0xff]
    %v713 = vld [vmem:[#allocation9 + $0xa8] sm:$0xff]
    %v714 = vld [vmem:[#allocation9 + $0xb0] sm:$0xff]
    %v715 = vld [vmem:[#allocation9 + $0xb8] sm:$0xff]
    %v716 = vld [vmem:[#allocation9 + $0xc0] sm:$0xff]
    %v717 = vld [vmem:[#allocation9 + $0xc8] sm:$0xff]
    %v718 = vld [vmem:[#allocation9 + $0xd0] sm:$0xff]
    %v719 = vld [vmem:[#allocation9 + $0xd8] sm:$0xff]
    %v720 = vld [vmem:[#allocation9 + $0xe0] sm:$0xff]
    %v721 = vld [vmem:[#allocation9 + $0xe8] sm:$0xff]
    %v722 = vld [vmem:[#allocation9 + $0xf0] sm:$0xff]
    %v723 = vld [vmem:[#allocation9 + $0xf8] sm:$0xff]
    %v724 = vld [vmem:[#allocation9 + $0x100] sm:$0xff]
    %v725 = vld [vmem:[#allocation9 + $0x108] sm:$0xff]
    %v726 = vld [vmem:[#allocation9 + $0x110] sm:$0xff]
    %v727 = vld [vmem:[#allocation9 + $0x118] sm:$0xff]
    %v728 = vld [vmem:[#allocation9 + $0x120] sm:$0xff]
    %v729 = vld [vmem:[#allocation9 + $0x128] sm:$0xff]
    %v730 = vld [vmem:[#allocation9 + $0x130] sm:$0xff]
    %v731 = vld [vmem:[#allocation9 + $0x138] sm:$0xff]
    %v732 = vld [vmem:[#allocation9 + $0x140] sm:$0xff]
    %v733 = vld [vmem:[#allocation9 + $0x148] sm:$0xff]
    %v734 = vld [vmem:[#allocation9 + $0x150] sm:$0xff]
    %v735 = vld [vmem:[#allocation9 + $0x158] sm:$0xff]
    %v736 = vld [vmem:[#allocation9 + $0x160] sm:$0xff]
    %v737 = vld [vmem:[#allocation9 + $0x168] sm:$0xff]
    %v738 = vld [vmem:[#allocation9 + $0x170] sm:$0xff]
    %v739 = vld [vmem:[#allocation9 + $0x178] sm:$0xff]
    %740 = vmatpush.msra.mxu0 %v737
    %741 = vmatpush.msra.mxu0 %v734
    %742 = vmatpush.msra.mxu0 %v731
    %743 = vmatpush.msra.mxu0 %v728
    %744 = vmatpush.msra.mxu0 %v725
    %745 = vmatpush.msra.mxu0 %v722
    %746 = vmatpush.msra.mxu0 %v719
    %747 = vmatpush.msra.mxu0 %v716
    %748 = vmatpush.msra.mxu0 %v713
    %749 = vmatpush.msra.mxu0 %v710
    %750 = vmatpush.msra.mxu0 %v707
    %751 = vmatpush.msra.mxu0 %v704
    %752 = vmatpush.msra.mxu0 %v701
    %753 = vmatpush.msra.mxu0 %v698
    %754 = vmatpush.msra.mxu0 %v695
    %755 = vmatpush.msra.mxu0 %v692
    %756 = vmatmul.f32.gmra.mxu0 %v683
    %v757 = vpop.f32.mrf.mxu0
    %v758 = vadd.f32 0.0, %v757
    %759 = vdwg.mxu0
    %760 = vmatpush.msra.mxu0 %v738
    %761 = vmatpush.msra.mxu0 %v735
    %762 = vmatpush.msra.mxu0 %v732
    %763 = vmatpush.msra.mxu0 %v729
    %764 = vmatpush.msra.mxu0 %v726
    %765 = vmatpush.msra.mxu0 %v723
    %766 = vmatpush.msra.mxu0 %v720
    %767 = vmatpush.msra.mxu0 %v717
    %768 = vmatpush.msra.mxu0 %v714
    %769 = vmatpush.msra.mxu0 %v711
    %770 = vmatpush.msra.mxu0 %v708
    %771 = vmatpush.msra.mxu0 %v705
    %772 = vmatpush.msra.mxu0 %v702
    %773 = vmatpush.msra.mxu0 %v699
    %774 = vmatpush.msra.mxu0 %v696
    %775 = vmatpush.msra.mxu0 %v693
    %776 = vmatmul.f32.gmra.mxu0 %v683
    %v777 = vpop.f32.mrf.mxu0
    %v778 = vadd.f32 0.0, %v777
    %779 = vdwg.mxu0
    %780 = vmatpush.msra.mxu0 %v739
    %781 = vmatpush.msra.mxu0 %v736
    %782 = vmatpush.msra.mxu0 %v733
    %783 = vmatpush.msra.mxu0 %v730
    %784 = vmatpush.msra.mxu0 %v727
    %785 = vmatpush.msra.mxu0 %v724
    %786 = vmatpush.msra.mxu0 %v721
    %787 = vmatpush.msra.mxu0 %v718
    %788 = vmatpush.msra.mxu0 %v715
    %789 = vmatpush.msra.mxu0 %v712
    %790 = vmatpush.msra.mxu0 %v709
    %791 = vmatpush.msra.mxu0 %v706
    %792 = vmatpush.msra.mxu0 %v703
    %793 = vmatpush.msra.mxu0 %v700
    %794 = vmatpush.msra.mxu0 %v697
    %795 = vmatpush.msra.mxu0 %v694
    %796 = vmatmul.f32.gmra.mxu0 %v683
    %v797 = vpop.f32.mrf.mxu0
    %v798 = vadd.f32 0.0, %v797
    %799 = vdwg.mxu0
    %v800 = vadd.f32 %v689, %v758
    %v801 = vadd.f32 %v690, %v778
    %v802 = vxor.u32 %v800, 2147483648
    %v803 = vxor.u32 %v801, 2147483648
    %v804 = vmul.f32 %v802, 1.442695
    %v805 = vpow.pop %v804
    %v806 = vmul.f32 %v803, 1.442695
    %v807 = vpow.pop %v806
    %v808 = vadd.f32 %v805, 1.0
    %v809 = vadd.f32 %v807, 1.0
    %v810 = vrcp.pop %v808
    %v811 = vmul.f32 %v808, %v810
    %v812 = vsub.f32 1.0, %v811
    %v813 = vmul.f32 %v810, %v812
    %v814 = vadd.f32 %v810, %v813
    %vm815 = vweird.f32 %v808
    %vm816 = vweird.f32 %v810
    %vm817 = vmor %vm815, %vm816
    %v818 = vsel %vm817, %v810, %v814
    %v819 = vand.u32 2147483647, %v808
    %vm820 = vcmp.eq.f32.partialorder %v819, 8.507059e+37
    %v821 = vand.u32 %v808, 2147483648
    %v822 = vor.u32 1.1754944e-38, %v821
    %v823 = vsel %vm820, %v822, %v818
    %v824 = vmul.f32 1.0, %v823
    %v825 = vrcp.pop %v809
    %v826 = vmul.f32 %v809, %v825
    %v827 = vsub.f32 1.0, %v826
    %v828 = vmul.f32 %v825, %v827
    %v829 = vadd.f32 %v825, %v828
    %vm830 = vweird.f32 %v809
    %vm831 = vweird.f32 %v825
    %vm832 = vmor %vm830, %vm831
    %v833 = vsel %vm832, %v825, %v829
    %v834 = vand.u32 2147483647, %v809
    %vm835 = vcmp.eq.f32.partialorder %v834, 8.507059e+37
    %v836 = vand.u32 %v809, 2147483648
    %v837 = vor.u32 1.1754944e-38, %v836
    %v838 = vsel %vm835, %v837, %v833
    %v839 = vmul.f32 1.0, %v838
    %v840 = vadd.f32 %v798, %v359
    %v841 = vmul.f32 %v824, %v840
    %v842 = vadd.f32 %v691, %v841
    %v843 = vtanh.pop %v842
    %v844 = vsub.f32 %v683, %v843
    %v845 = vmul.f32 %v839, %v844
    %v846 = vadd.f32 %v843, %v845
    %s847 = scalar_lea.vmem [#allocation3], 16
    %848 = vst [vmem:[%s847] sm:$0xff] %v846
    %s849 = smul.u32 3, 3
    %s850 = smul.addr %s849, 8
    %s851 = scalar_lea.vmem [#allocation2], %s850
    %v852 = vld [vmem:[%s851] sm:$0xff]
    %v853 = vld [vmem:[%s851 + $0x8] sm:$0xff]
    %v854 = vld [vmem:[%s851 + $0x10] sm:$0xff]
    %v855 = vld [vmem:[#allocation9] sm:$0xff]
    %v856 = vld [vmem:[#allocation9 + $0x8] sm:$0xff]
    %v857 = vld [vmem:[#allocation9 + $0x10] sm:$0xff]
    %v858 = vld [vmem:[#allocation9 + $0x18] sm:$0xff]
    %v859 = vld [vmem:[#allocation9 + $0x20] sm:$0xff]
    %v860 = vld [vmem:[#allocation9 + $0x28] sm:$0xff]
    %v861 = vld [vmem:[#allocation9 + $0x30] sm:$0xff]
    %v862 = vld [vmem:[#allocation9 + $0x38] sm:$0xff]
    %v863 = vld [vmem:[#allocation9 + $0x40] sm:$0xff]
    %v864 = vld [vmem:[#allocation9 + $0x48] sm:$0xff]
    %v865 = vld [vmem:[#allocation9 + $0x50] sm:$0xff]
    %v866 = vld [vmem:[#allocation9 + $0x58] sm:$0xff]
    %v867 = vld [vmem:[#allocation9 + $0x60] sm:$0xff]
    %v868 = vld [vmem:[#allocation9 + $0x68] sm:$0xff]
    %v869 = vld [vmem:[#allocation9 + $0x70] sm:$0xff]
    %v870 = vld [vmem:[#allocation9 + $0x78] sm:$0xff]
    %v871 = vld [vmem:[#allocation9 + $0x80] sm:$0xff]
    %v872 = vld [vmem:[#allocation9 + $0x88] sm:$0xff]
    %v873 = vld [vmem:[#allocation9 + $0x90] sm:$0xff]
    %v874 = vld [vmem:[#allocation9 + $0x98] sm:$0xff]
    %v875 = vld [vmem:[#allocation9 + $0xa0] sm:$0xff]
    %v876 = vld [vmem:[#allocation9 + $0xa8] sm:$0xff]
    %v877 = vld [vmem:[#allocation9 + $0xb0] sm:$0xff]
    %v878 = vld [vmem:[#allocation9 + $0xb8] sm:$0xff]
    %v879 = vld [vmem:[#allocation9 + $0xc0] sm:$0xff]
    %v880 = vld [vmem:[#allocation9 + $0xc8] sm:$0xff]
    %v881 = vld [vmem:[#allocation9 + $0xd0] sm:$0xff]
    %v882 = vld [vmem:[#allocation9 + $0xd8] sm:$0xff]
    %v883 = vld [vmem:[#allocation9 + $0xe0] sm:$0xff]
    %v884 = vld [vmem:[#allocation9 + $0xe8] sm:$0xff]
    %v885 = vld [vmem:[#allocation9 + $0xf0] sm:$0xff]
    %v886 = vld [vmem:[#allocation9 + $0xf8] sm:$0xff]
    %v887 = vld [vmem:[#allocation9 + $0x100] sm:$0xff]
    %v888 = vld [vmem:[#allocation9 + $0x108] sm:$0xff]
    %v889 = vld [vmem:[#allocation9 + $0x110] sm:$0xff]
    %v890 = vld [vmem:[#allocation9 + $0x118] sm:$0xff]
    %v891 = vld [vmem:[#allocation9 + $0x120] sm:$0xff]
    %v892 = vld [vmem:[#allocation9 + $0x128] sm:$0xff]
    %v893 = vld [vmem:[#allocation9 + $0x130] sm:$0xff]
    %v894 = vld [vmem:[#allocation9 + $0x138] sm:$0xff]
    %v895 = vld [vmem:[#allocation9 + $0x140] sm:$0xff]
    %v896 = vld [vmem:[#allocation9 + $0x148] sm:$0xff]
    %v897 = vld [vmem:[#allocation9 + $0x150] sm:$0xff]
    %v898 = vld [vmem:[#allocation9 + $0x158] sm:$0xff]
    %v899 = vld [vmem:[#allocation9 + $0x160] sm:$0xff]
    %v900 = vld [vmem:[#allocation9 + $0x168] sm:$0xff]
    %v901 = vld [vmem:[#allocation9 + $0x170] sm:$0xff]
    %v902 = vld [vmem:[#allocation9 + $0x178] sm:$0xff]
    %903 = vmatpush.msra.mxu0 %v900
    %904 = vmatpush.msra.mxu0 %v897
    %905 = vmatpush.msra.mxu0 %v894
    %906 = vmatpush.msra.mxu0 %v891
    %907 = vmatpush.msra.mxu0 %v888
    %908 = vmatpush.msra.mxu0 %v885
    %909 = vmatpush.msra.mxu0 %v882
    %910 = vmatpush.msra.mxu0 %v879
    %911 = vmatpush.msra.mxu0 %v876
    %912 = vmatpush.msra.mxu0 %v873
    %913 = vmatpush.msra.mxu0 %v870
    %914 = vmatpush.msra.mxu0 %v867
    %915 = vmatpush.msra.mxu0 %v864
    %916 = vmatpush.msra.mxu0 %v861
    %917 = vmatpush.msra.mxu0 %v858
    %918 = vmatpush.msra.mxu0 %v855
    %919 = vmatmul.f32.gmra.mxu0 %v846
    %v920 = vpop.f32.mrf.mxu0
    %v921 = vadd.f32 0.0, %v920
    %922 = vdwg.mxu0
    %923 = vmatpush.msra.mxu0 %v901
    %924 = vmatpush.msra.mxu0 %v898
    %925 = vmatpush.msra.mxu0 %v895
    %926 = vmatpush.msra.mxu0 %v892
    %927 = vmatpush.msra.mxu0 %v889
    %928 = vmatpush.msra.mxu0 %v886
    %929 = vmatpush.msra.mxu0 %v883
    %930 = vmatpush.msra.mxu0 %v880
    %931 = vmatpush.msra.mxu0 %v877
    %932 = vmatpush.msra.mxu0 %v874
    %933 = vmatpush.msra.mxu0 %v871
    %934 = vmatpush.msra.mxu0 %v868
    %935 = vmatpush.msra.mxu0 %v865
    %936 = vmatpush.msra.mxu0 %v862
    %937 = vmatpush.msra.mxu0 %v859
    %938 = vmatpush.msra.mxu0 %v856
    %939 = vmatmul.f32.gmra.mxu0 %v846
    %v940 = vpop.f32.mrf.mxu0
    %v941 = vadd.f32 0.0, %v940
    %942 = vdwg.mxu0
    %943 = vmatpush.msra.mxu0 %v902
    %944 = vmatpush.msra.mxu0 %v899
    %945 = vmatpush.msra.mxu0 %v896
    %946 = vmatpush.msra.mxu0 %v893
    %947 = vmatpush.msra.mxu0 %v890
    %948 = vmatpush.msra.mxu0 %v887
    %949 = vmatpush.msra.mxu0 %v884
    %950 = vmatpush.msra.mxu0 %v881
    %951 = vmatpush.msra.mxu0 %v878
    %952 = vmatpush.msra.mxu0 %v875
    %953 = vmatpush.msra.mxu0 %v872
    %954 = vmatpush.msra.mxu0 %v869
    %955 = vmatpush.msra.mxu0 %v866
    %956 = vmatpush.msra.mxu0 %v863
    %957 = vmatpush.msra.mxu0 %v860
    %958 = vmatpush.msra.mxu0 %v857
    %959 = vmatmul.f32.gmra.mxu0 %v846
    %v960 = vpop.f32.mrf.mxu0
    %v961 = vadd.f32 0.0, %v960
    %962 = vdwg.mxu0
    %v963 = vadd.f32 %v852, %v921
    %v964 = vadd.f32 %v853, %v941
    %v965 = vxor.u32 %v963, 2147483648
    %v966 = vxor.u32 %v964, 2147483648
    %v967 = vmul.f32 %v965, 1.442695
    %v968 = vpow.pop %v967
    %v969 = vmul.f32 %v966, 1.442695
    %v970 = vpow.pop %v969
    %v971 = vadd.f32 %v968, 1.0
    %v972 = vadd.f32 %v970, 1.0
    %v973 = vrcp.pop %v971
    %v974 = vmul.f32 %v971, %v973
    %v975 = vsub.f32 1.0, %v974
    %v976 = vmul.f32 %v973, %v975
    %v977 = vadd.f32 %v973, %v976
    %vm978 = vweird.f32 %v971
    %vm979 = vweird.f32 %v973
    %vm980 = vmor %vm978, %vm979
    %v981 = vsel %vm980, %v973, %v977
    %v982 = vand.u32 2147483647, %v971
    %vm983 = vcmp.eq.f32.partialorder %v982, 8.507059e+37
    %v984 = vand.u32 %v971, 2147483648
    %v985 = vor.u32 1.1754944e-38, %v984
    %v986 = vsel %vm983, %v985, %v981
    %v987 = vmul.f32 1.0, %v986
    %v988 = vrcp.pop %v972
    %v989 = vmul.f32 %v972, %v988
    %v990 = vsub.f32 1.0, %v989
    %v991 = vmul.f32 %v988, %v990
    %v992 = vadd.f32 %v988, %v991
    %vm993 = vweird.f32 %v972
    %vm994 = vweird.f32 %v988
    %vm995 = vmor %vm993, %vm994
    %v996 = vsel %vm995, %v988, %v992
    %v997 = vand.u32 2147483647, %v972
    %vm998 = vcmp.eq.f32.partialorder %v997, 8.507059e+37
    %v999 = vand.u32 %v972, 2147483648
    %v1000 = vor.u32 1.1754944e-38, %v999
    %v1001 = vsel %vm998, %v1000, %v996
    %v1002 = vmul.f32 1.0, %v1001
    %v1003 = vadd.f32 %v961, %v359
    %v1004 = vmul.f32 %v987, %v1003
    %v1005 = vadd.f32 %v854, %v1004
    %v1006 = vtanh.pop %v1005
    %v1007 = vsub.f32 %v846, %v1006
    %v1008 = vmul.f32 %v1002, %v1007
    %v1009 = vadd.f32 %v1006, %v1008
    %s1010 = scalar_lea.vmem [#allocation3], 24
    %1011 = vst [vmem:[%s1010] sm:$0xff] %v1009
    %s1012 = smul.u32 4, 3
    %s1013 = smul.addr %s1012, 8
    %s1014 = scalar_lea.vmem [#allocation2], %s1013
    %v1015 = vld [vmem:[%s1014] sm:$0xff]
    %v1016 = vld [vmem:[%s1014 + $0x8] sm:$0xff]
    %v1017 = vld [vmem:[%s1014 + $0x10] sm:$0xff]
    %v1018 = vld [vmem:[#allocation9] sm:$0xff]
    %v1019 = vld [vmem:[#allocation9 + $0x8] sm:$0xff]
    %v1020 = vld [vmem:[#allocation9 + $0x10] sm:$0xff]
    %v1021 = vld [vmem:[#allocation9 + $0x18] sm:$0xff]
    %v1022 = vld [vmem:[#allocation9 + $0x20] sm:$0xff]
    %v1023 = vld [vmem:[#allocation9 + $0x28] sm:$0xff]
    %v1024 = vld [vmem:[#allocation9 + $0x30] sm:$0xff]
    %v1025 = vld [vmem:[#allocation9 + $0x38] sm:$0xff]
    %v1026 = vld [vmem:[#allocation9 + $0x40] sm:$0xff]
    %v1027 = vld [vmem:[#allocation9 + $0x48] sm:$0xff]
    %v1028 = vld [vmem:[#allocation9 + $0x50] sm:$0xff]
    %v1029 = vld [vmem:[#allocation9 + $0x58] sm:$0xff]
    %v1030 = vld [vmem:[#allocation9 + $0x60] sm:$0xff]
    %v1031 = vld [vmem:[#allocation9 + $0x68] sm:$0xff]
    %v1032 = vld [vmem:[#allocation9 + $0x70] sm:$0xff]
    %v1033 = vld [vmem:[#allocation9 + $0x78] sm:$0xff]
    %v1034 = vld [vmem:[#allocation9 + $0x80] sm:$0xff]
    %v1035 = vld [vmem:[#allocation9 + $0x88] sm:$0xff]
    %v1036 = vld [vmem:[#allocation9 + $0x90] sm:$0xff]
    %v1037 = vld [vmem:[#allocation9 + $0x98] sm:$0xff]
    %v1038 = vld [vmem:[#allocation9 + $0xa0] sm:$0xff]
    %v1039 = vld [vmem:[#allocation9 + $0xa8] sm:$0xff]
    %v1040 = vld [vmem:[#allocation9 + $0xb0] sm:$0xff]
    %v1041 = vld [vmem:[#allocation9 + $0xb8] sm:$0xff]
    %v1042 = vld [vmem:[#allocation9 + $0xc0] sm:$0xff]
    %v1043 = vld [vmem:[#allocation9 + $0xc8] sm:$0xff]
    %v1044 = vld [vmem:[#allocation9 + $0xd0] sm:$0xff]
    %v1045 = vld [vmem:[#allocation9 + $0xd8] sm:$0xff]
    %v1046 = vld [vmem:[#allocation9 + $0xe0] sm:$0xff]
    %v1047 = vld [vmem:[#allocation9 + $0xe8] sm:$0xff]
    %v1048 = vld [vmem:[#allocation9 + $0xf0] sm:$0xff]
    %v1049 = vld [vmem:[#allocation9 + $0xf8] sm:$0xff]
    %v1050 = vld [vmem:[#allocation9 + $0x100] sm:$0xff]
    %v1051 = vld [vmem:[#allocation9 + $0x108] sm:$0xff]
    %v1052 = vld [vmem:[#allocation9 + $0x110] sm:$0xff]
    %v1053 = vld [vmem:[#allocation9 + $0x118] sm:$0xff]
    %v1054 = vld [vmem:[#allocation9 + $0x120] sm:$0xff]
    %v1055 = vld [vmem:[#allocation9 + $0x128] sm:$0xff]
    %v1056 = vld [vmem:[#allocation9 + $0x130] sm:$0xff]
    %v1057 = vld [vmem:[#allocation9 + $0x138] sm:$0xff]
    %v1058 = vld [vmem:[#allocation9 + $0x140] sm:$0xff]
    %v1059 = vld [vmem:[#allocation9 + $0x148] sm:$0xff]
    %v1060 = vld [vmem:[#allocation9 + $0x150] sm:$0xff]
    %v1061 = vld [vmem:[#allocation9 + $0x158] sm:$0xff]
    %v1062 = vld [vmem:[#allocation9 + $0x160] sm:$0xff]
    %v1063 = vld [vmem:[#allocation9 + $0x168] sm:$0xff]
    %v1064 = vld [vmem:[#allocation9 + $0x170] sm:$0xff]
    %v1065 = vld [vmem:[#allocation9 + $0x178] sm:$0xff]
    %1066 = vmatpush.msra.mxu0 %v1063
    %1067 = vmatpush.msra.mxu0 %v1060
    %1068 = vmatpush.msra.mxu0 %v1057
    %1069 = vmatpush.msra.mxu0 %v1054
    %1070 = vmatpush.msra.mxu0 %v1051
    %1071 = vmatpush.msra.mxu0 %v1048
    %1072 = vmatpush.msra.mxu0 %v1045
    %1073 = vmatpush.msra.mxu0 %v1042
    %1074 = vmatpush.msra.mxu0 %v1039
    %1075 = vmatpush.msra.mxu0 %v1036
    %1076 = vmatpush.msra.mxu0 %v1033
    %1077 = vmatpush.msra.mxu0 %v1030
    %1078 = vmatpush.msra.mxu0 %v1027
    %1079 = vmatpush.msra.mxu0 %v1024
    %1080 = vmatpush.msra.mxu0 %v1021
    %1081 = vmatpush.msra.mxu0 %v1018
    %1082 = vmatmul.f32.gmra.mxu0 %v1009
    %v1083 = vpop.f32.mrf.mxu0
    %v1084 = vadd.f32 0.0, %v1083
    %1085 = vdwg.mxu0
    %1086 = vmatpush.msra.mxu0 %v1064
    %1087 = vmatpush.msra.mxu0 %v1061
    %1088 = vmatpush.msra.mxu0 %v1058
    %1089 = vmatpush.msra.mxu0 %v1055
    %1090 = vmatpush.msra.mxu0 %v1052
    %1091 = vmatpush.msra.mxu0 %v1049
    %1092 = vmatpush.msra.mxu0 %v1046
    %1093 = vmatpush.msra.mxu0 %v1043
    %1094 = vmatpush.msra.mxu0 %v1040
    %1095 = vmatpush.msra.mxu0 %v1037
    %1096 = vmatpush.msra.mxu0 %v1034
    %1097 = vmatpush.msra.mxu0 %v1031
    %1098 = vmatpush.msra.mxu0 %v1028
    %1099 = vmatpush.msra.mxu0 %v1025
    %1100 = vmatpush.msra.mxu0 %v1022
    %1101 = vmatpush.msra.mxu0 %v1019
    %1102 = vmatmul.f32.gmra.mxu0 %v1009
    %v1103 = vpop.f32.mrf.mxu0
    %v1104 = vadd.f32 0.0, %v1103
    %1105 = vdwg.mxu0
    %1106 = vmatpush.msra.mxu0 %v1065
    %1107 = vmatpush.msra.mxu0 %v1062
    %1108 = vmatpush.msra.mxu0 %v1059
    %1109 = vmatpush.msra.mxu0 %v1056
    %1110 = vmatpush.msra.mxu0 %v1053
    %1111 = vmatpush.msra.mxu0 %v1050
    %1112 = vmatpush.msra.mxu0 %v1047
    %1113 = vmatpush.msra.mxu0 %v1044
    %1114 = vmatpush.msra.mxu0 %v1041
    %1115 = vmatpush.msra.mxu0 %v1038
    %1116 = vmatpush.msra.mxu0 %v1035
    %1117 = vmatpush.msra.mxu0 %v1032
    %1118 = vmatpush.msra.mxu0 %v1029
    %1119 = vmatpush.msra.mxu0 %v1026
    %1120 = vmatpush.msra.mxu0 %v1023
    %1121 = vmatpush.msra.mxu0 %v1020
    %1122 = vmatmul.f32.gmra.mxu0 %v1009
    %v1123 = vpop.f32.mrf.mxu0
    %v1124 = vadd.f32 0.0, %v1123
    %1125 = vdwg.mxu0
    %v1126 = vadd.f32 %v1015, %v1084
    %v1127 = vadd.f32 %v1016, %v1104
    %v1128 = vxor.u32 %v1126, 2147483648
    %v1129 = vxor.u32 %v1127, 2147483648
    %v1130 = vmul.f32 %v1128, 1.442695
    %v1131 = vpow.pop %v1130
    %v1132 = vmul.f32 %v1129, 1.442695
    %v1133 = vpow.pop %v1132
    %v1134 = vadd.f32 %v1131, 1.0
    %v1135 = vadd.f32 %v1133, 1.0
    %v1136 = vrcp.pop %v1134
    %v1137 = vmul.f32 %v1134, %v1136
    %v1138 = vsub.f32 1.0, %v1137
    %v1139 = vmul.f32 %v1136, %v1138
    %v1140 = vadd.f32 %v1136, %v1139
    %vm1141 = vweird.f32 %v1134
    %vm1142 = vweird.f32 %v1136
    %vm1143 = vmor %vm1141, %vm1142
    %v1144 = vsel %vm1143, %v1136, %v1140
    %v1145 = vand.u32 2147483647, %v1134
    %vm1146 = vcmp.eq.f32.partialorder %v1145, 8.507059e+37
    %v1147 = vand.u32 %v1134, 2147483648
    %v1148 = vor.u32 1.1754944e-38, %v1147
    %v1149 = vsel %vm1146, %v1148, %v1144
    %v1150 = vmul.f32 1.0, %v1149
    %v1151 = vrcp.pop %v1135
    %v1152 = vmul.f32 %v1135, %v1151
    %v1153 = vsub.f32 1.0, %v1152
    %v1154 = vmul.f32 %v1151, %v1153
    %v1155 = vadd.f32 %v1151, %v1154
    %vm1156 = vweird.f32 %v1135
    %vm1157 = vweird.f32 %v1151
    %vm1158 = vmor %vm1156, %vm1157
    %v1159 = vsel %vm1158, %v1151, %v1155
    %v1160 = vand.u32 2147483647, %v1135
    %vm1161 = vcmp.eq.f32.partialorder %v1160, 8.507059e+37
    %v1162 = vand.u32 %v1135, 2147483648
    %v1163 = vor.u32 1.1754944e-38, %v1162
    %v1164 = vsel %vm1161, %v1163, %v1159
    %v1165 = vmul.f32 1.0, %v1164
    %v1166 = vadd.f32 %v1124, %v359
    %v1167 = vmul.f32 %v1150, %v1166
    %v1168 = vadd.f32 %v1017, %v1167
    %v1169 = vtanh.pop %v1168
    %v1170 = vsub.f32 %v1009, %v1169
    %v1171 = vmul.f32 %v1165, %v1170
    %v1172 = vadd.f32 %v1169, %v1171
    %s1173 = scalar_lea.vmem [#allocation3], 32
    %1174 = vst [vmem:[%s1173] sm:$0xff] %v1172
    %s1175 = smul.u32 5, 3
    %s1176 = smul.addr %s1175, 8
    %s1177 = scalar_lea.vmem [#allocation2], %s1176
    %v1178 = vld [vmem:[%s1177] sm:$0xff]
    %v1179 = vld [vmem:[%s1177 + $0x8] sm:$0xff]
    %v1180 = vld [vmem:[%s1177 + $0x10] sm:$0xff]
    %v1181 = vld [vmem:[#allocation9] sm:$0xff]
    %v1182 = vld [vmem:[#allocation9 + $0x8] sm:$0xff]
    %v1183 = vld [vmem:[#allocation9 + $0x10] sm:$0xff]
    %v1184 = vld [vmem:[#allocation9 + $0x18] sm:$0xff]
    %v1185 = vld [vmem:[#allocation9 + $0x20] sm:$0xff]
    %v1186 = vld [vmem:[#allocation9 + $0x28] sm:$0xff]
    %v1187 = vld [vmem:[#allocation9 + $0x30] sm:$0xff]
    %v1188 = vld [vmem:[#allocation9 + $0x38] sm:$0xff]
    %v1189 = vld [vmem:[#allocation9 + $0x40] sm:$0xff]
    %v1190 = vld [vmem:[#allocation9 + $0x48] sm:$0xff]
    %v1191 = vld [vmem:[#allocation9 + $0x50] sm:$0xff]
    %v1192 = vld [vmem:[#allocation9 + $0x58] sm:$0xff]
    %v1193 = vld [vmem:[#allocation9 + $0x60] sm:$0xff]
    %v1194 = vld [vmem:[#allocation9 + $0x68] sm:$0xff]
    %v1195 = vld [vmem:[#allocation9 + $0x70] sm:$0xff]
    %v1196 = vld [vmem:[#allocation9 + $0x78] sm:$0xff]
    %v1197 = vld [vmem:[#allocation9 + $0x80] sm:$0xff]
    %v1198 = vld [vmem:[#allocation9 + $0x88] sm:$0xff]
    %v1199 = vld [vmem:[#allocation9 + $0x90] sm:$0xff]
    %v1200 = vld [vmem:[#allocation9 + $0x98] sm:$0xff]
    %v1201 = vld [vmem:[#allocation9 + $0xa0] sm:$0xff]
    %v1202 = vld [vmem:[#allocation9 + $0xa8] sm:$0xff]
    %v1203 = vld [vmem:[#allocation9 + $0xb0] sm:$0xff]
    %v1204 = vld [vmem:[#allocation9 + $0xb8] sm:$0xff]
    %v1205 = vld [vmem:[#allocation9 + $0xc0] sm:$0xff]
    %v1206 = vld [vmem:[#allocation9 + $0xc8] sm:$0xff]
    %v1207 = vld [vmem:[#allocation9 + $0xd0] sm:$0xff]
    %v1208 = vld [vmem:[#allocation9 + $0xd8] sm:$0xff]
    %v1209 = vld [vmem:[#allocation9 + $0xe0] sm:$0xff]
    %v1210 = vld [vmem:[#allocation9 + $0xe8] sm:$0xff]
    %v1211 = vld [vmem:[#allocation9 + $0xf0] sm:$0xff]
    %v1212 = vld [vmem:[#allocation9 + $0xf8] sm:$0xff]
    %v1213 = vld [vmem:[#allocation9 + $0x100] sm:$0xff]
    %v1214 = vld [vmem:[#allocation9 + $0x108] sm:$0xff]
    %v1215 = vld [vmem:[#allocation9 + $0x110] sm:$0xff]
    %v1216 = vld [vmem:[#allocation9 + $0x118] sm:$0xff]
    %v1217 = vld [vmem:[#allocation9 + $0x120] sm:$0xff]
    %v1218 = vld [vmem:[#allocation9 + $0x128] sm:$0xff]
    %v1219 = vld [vmem:[#allocation9 + $0x130] sm:$0xff]
    %v1220 = vld [vmem:[#allocation9 + $0x138] sm:$0xff]
    %v1221 = vld [vmem:[#allocation9 + $0x140] sm:$0xff]
    %v1222 = vld [vmem:[#allocation9 + $0x148] sm:$0xff]
    %v1223 = vld [vmem:[#allocation9 + $0x150] sm:$0xff]
    %v1224 = vld [vmem:[#allocation9 + $0x158] sm:$0xff]
    %v1225 = vld [vmem:[#allocation9 + $0x160] sm:$0xff]
    %v1226 = vld [vmem:[#allocation9 + $0x168] sm:$0xff]
    %v1227 = vld [vmem:[#allocation9 + $0x170] sm:$0xff]
    %v1228 = vld [vmem:[#allocation9 + $0x178] sm:$0xff]
    %1229 = vmatpush.msra.mxu0 %v1226
    %1230 = vmatpush.msra.mxu0 %v1223
    %1231 = vmatpush.msra.mxu0 %v1220
    %1232 = vmatpush.msra.mxu0 %v1217
    %1233 = vmatpush.msra.mxu0 %v1214
    %1234 = vmatpush.msra.mxu0 %v1211
    %1235 = vmatpush.msra.mxu0 %v1208
    %1236 = vmatpush.msra.mxu0 %v1205
    %1237 = vmatpush.msra.mxu0 %v1202
    %1238 = vmatpush.msra.mxu0 %v1199
    %1239 = vmatpush.msra.mxu0 %v1196
    %1240 = vmatpush.msra.mxu0 %v1193
    %1241 = vmatpush.msra.mxu0 %v1190
    %1242 = vmatpush.msra.mxu0 %v1187
    %1243 = vmatpush.msra.mxu0 %v1184
    %1244 = vmatpush.msra.mxu0 %v1181
    %1245 = vmatmul.f32.gmra.mxu0 %v1172
    %v1246 = vpop.f32.mrf.mxu0
    %v1247 = vadd.f32 0.0, %v1246
    %1248 = vdwg.mxu0
    %1249 = vmatpush.msra.mxu0 %v1227
    %1250 = vmatpush.msra.mxu0 %v1224
    %1251 = vmatpush.msra.mxu0 %v1221
    %1252 = vmatpush.msra.mxu0 %v1218
    %1253 = vmatpush.msra.mxu0 %v1215
    %1254 = vmatpush.msra.mxu0 %v1212
    %1255 = vmatpush.msra.mxu0 %v1209
    %1256 = vmatpush.msra.mxu0 %v1206
    %1257 = vmatpush.msra.mxu0 %v1203
    %1258 = vmatpush.msra.mxu0 %v1200
    %1259 = vmatpush.msra.mxu0 %v1197
    %1260 = vmatpush.msra.mxu0 %v1194
    %1261 = vmatpush.msra.mxu0 %v1191
    %1262 = vmatpush.msra.mxu0 %v1188
    %1263 = vmatpush.msra.mxu0 %v1185
    %1264 = vmatpush.msra.mxu0 %v1182
    %1265 = vmatmul.f32.gmra.mxu0 %v1172
    %v1266 = vpop.f32.mrf.mxu0
    %v1267 = vadd.f32 0.0, %v1266
    %1268 = vdwg.mxu0
    %1269 = vmatpush.msra.mxu0 %v1228
    %1270 = vmatpush.msra.mxu0 %v1225
    %1271 = vmatpush.msra.mxu0 %v1222
    %1272 = vmatpush.msra.mxu0 %v1219
    %1273 = vmatpush.msra.mxu0 %v1216
    %1274 = vmatpush.msra.mxu0 %v1213
    %1275 = vmatpush.msra.mxu0 %v1210
    %1276 = vmatpush.msra.mxu0 %v1207
    %1277 = vmatpush.msra.mxu0 %v1204
    %1278 = vmatpush.msra.mxu0 %v1201
    %1279 = vmatpush.msra.mxu0 %v1198
    %1280 = vmatpush.msra.mxu0 %v1195
    %1281 = vmatpush.msra.mxu0 %v1192
    %1282 = vmatpush.msra.mxu0 %v1189
    %1283 = vmatpush.msra.mxu0 %v1186
    %1284 = vmatpush.msra.mxu0 %v1183
    %1285 = vmatmul.f32.gmra.mxu0 %v1172
    %v1286 = vpop.f32.mrf.mxu0
    %v1287 = vadd.f32 0.0, %v1286
    %1288 = vdwg.mxu0
    %v1289 = vadd.f32 %v1178, %v1247
    %v1290 = vadd.f32 %v1179, %v1267
    %v1291 = vxor.u32 %v1289, 2147483648
    %v1292 = vxor.u32 %v1290, 2147483648
    %v1293 = vmul.f32 %v1291, 1.442695
    %v1294 = vpow.pop %v1293
    %v1295 = vmul.f32 %v1292, 1.442695
    %v1296 = vpow.pop %v1295
    %v1297 = vadd.f32 %v1294, 1.0
    %v1298 = vadd.f32 %v1296, 1.0
    %v1299 = vrcp.pop %v1297
    %v1300 = vmul.f32 %v1297, %v1299
    %v1301 = vsub.f32 1.0, %v1300
    %v1302 = vmul.f32 %v1299, %v1301
    %v1303 = vadd.f32 %v1299, %v1302
    %vm1304 = vweird.f32 %v1297
    %vm1305 = vweird.f32 %v1299
    %vm1306 = vmor %vm1304, %vm1305
    %v1307 = vsel %vm1306, %v1299, %v1303
    %v1308 = vand.u32 2147483647, %v1297
    %vm1309 = vcmp.eq.f32.partialorder %v1308, 8.507059e+37
    %v1310 = vand.u32 %v1297, 2147483648
    %v1311 = vor.u32 1.1754944e-38, %v1310
    %v1312 = vsel %vm1309, %v1311, %v1307
    %v1313 = vmul.f32 1.0, %v1312
    %v1314 = vrcp.pop %v1298
    %v1315 = vmul.f32 %v1298, %v1314
    %v1316 = vsub.f32 1.0, %v1315
    %v1317 = vmul.f32 %v1314, %v1316
    %v1318 = vadd.f32 %v1314, %v1317
    %vm1319 = vweird.f32 %v1298
    %vm1320 = vweird.f32 %v1314
    %vm1321 = vmor %vm1319, %vm1320
    %v1322 = vsel %vm1321, %v1314, %v1318
    %v1323 = vand.u32 2147483647, %v1298
    %vm1324 = vcmp.eq.f32.partialorder %v1323, 8.507059e+37
    %v1325 = vand.u32 %v1298, 2147483648
    %v1326 = vor.u32 1.1754944e-38, %v1325
    %v1327 = vsel %vm1324, %v1326, %v1322
    %v1328 = vmul.f32 1.0, %v1327
    %v1329 = vadd.f32 %v1287, %v359
    %v1330 = vmul.f32 %v1313, %v1329
    %v1331 = vadd.f32 %v1180, %v1330
    %v1332 = vtanh.pop %v1331
    %v1333 = vsub.f32 %v1172, %v1332
    %v1334 = vmul.f32 %v1328, %v1333
    %v1335 = vadd.f32 %v1332, %v1334
    %s1336 = scalar_lea.vmem [#allocation3], 40
    %1337 = vst [vmem:[%s1336] sm:$0xff] %v1335
    %s1338 = smul.u32 6, 3
    %s1339 = smul.addr %s1338, 8
    %s1340 = scalar_lea.vmem [#allocation2], %s1339
    %v1341 = vld [vmem:[%s1340] sm:$0xff]
    %v1342 = vld [vmem:[%s1340 + $0x8] sm:$0xff]
    %v1343 = vld [vmem:[%s1340 + $0x10] sm:$0xff]
    %v1344 = vld [vmem:[#allocation9] sm:$0xff]
    %v1345 = vld [vmem:[#allocation9 + $0x8] sm:$0xff]
    %v1346 = vld [vmem:[#allocation9 + $0x10] sm:$0xff]
    %v1347 = vld [vmem:[#allocation9 + $0x18] sm:$0xff]
    %v1348 = vld [vmem:[#allocation9 + $0x20] sm:$0xff]
    %v1349 = vld [vmem:[#allocation9 + $0x28] sm:$0xff]
    %v1350 = vld [vmem:[#allocation9 + $0x30] sm:$0xff]
    %v1351 = vld [vmem:[#allocation9 + $0x38] sm:$0xff]
    %v1352 = vld [vmem:[#allocation9 + $0x40] sm:$0xff]
    %v1353 = vld [vmem:[#allocation9 + $0x48] sm:$0xff]
    %v1354 = vld [vmem:[#allocation9 + $0x50] sm:$0xff]
    %v1355 = vld [vmem:[#allocation9 + $0x58] sm:$0xff]
    %v1356 = vld [vmem:[#allocation9 + $0x60] sm:$0xff]
    %v1357 = vld [vmem:[#allocation9 + $0x68] sm:$0xff]
    %v1358 = vld [vmem:[#allocation9 + $0x70] sm:$0xff]
    %v1359 = vld [vmem:[#allocation9 + $0x78] sm:$0xff]
    %v1360 = vld [vmem:[#allocation9 + $0x80] sm:$0xff]
    %v1361 = vld [vmem:[#allocation9 + $0x88] sm:$0xff]
    %v1362 = vld [vmem:[#allocation9 + $0x90] sm:$0xff]
    %v1363 = vld [vmem:[#allocation9 + $0x98] sm:$0xff]
    %v1364 = vld [vmem:[#allocation9 + $0xa0] sm:$0xff]
    %v1365 = vld [vmem:[#allocation9 + $0xa8] sm:$0xff]
    %v1366 = vld [vmem:[#allocation9 + $0xb0] sm:$0xff]
    %v1367 = vld [vmem:[#allocation9 + $0xb8] sm:$0xff]
    %v1368 = vld [vmem:[#allocation9 + $0xc0] sm:$0xff]
    %v1369 = vld [vmem:[#allocation9 + $0xc8] sm:$0xff]
    %v1370 = vld [vmem:[#allocation9 + $0xd0] sm:$0xff]
    %v1371 = vld [vmem:[#allocation9 + $0xd8] sm:$0xff]
    %v1372 = vld [vmem:[#allocation9 + $0xe0] sm:$0xff]
    %v1373 = vld [vmem:[#allocation9 + $0xe8] sm:$0xff]
    %v1374 = vld [vmem:[#allocation9 + $0xf0] sm:$0xff]
    %v1375 = vld [vmem:[#allocation9 + $0xf8] sm:$0xff]
    %v1376 = vld [vmem:[#allocation9 + $0x100] sm:$0xff]
    %v1377 = vld [vmem:[#allocation9 + $0x108] sm:$0xff]
    %v1378 = vld [vmem:[#allocation9 + $0x110] sm:$0xff]
    %v1379 = vld [vmem:[#allocation9 + $0x118] sm:$0xff]
    %v1380 = vld [vmem:[#allocation9 + $0x120] sm:$0xff]
    %v1381 = vld [vmem:[#allocation9 + $0x128] sm:$0xff]
    %v1382 = vld [vmem:[#allocation9 + $0x130] sm:$0xff]
    %v1383 = vld [vmem:[#allocation9 + $0x138] sm:$0xff]
    %v1384 = vld [vmem:[#allocation9 + $0x140] sm:$0xff]
    %v1385 = vld [vmem:[#allocation9 + $0x148] sm:$0xff]
    %v1386 = vld [vmem:[#allocation9 + $0x150] sm:$0xff]
    %v1387 = vld [vmem:[#allocation9 + $0x158] sm:$0xff]
    %v1388 = vld [vmem:[#allocation9 + $0x160] sm:$0xff]
    %v1389 = vld [vmem:[#allocation9 + $0x168] sm:$0xff]
    %v1390 = vld [vmem:[#allocation9 + $0x170] sm:$0xff]
    %v1391 = vld [vmem:[#allocation9 + $0x178] sm:$0xff]
    %1392 = vmatpush.msra.mxu0 %v1389
    %1393 = vmatpush.msra.mxu0 %v1386
    %1394 = vmatpush.msra.mxu0 %v1383
    %1395 = vmatpush.msra.mxu0 %v1380
    %1396 = vmatpush.msra.mxu0 %v1377
    %1397 = vmatpush.msra.mxu0 %v1374
    %1398 = vmatpush.msra.mxu0 %v1371
    %1399 = vmatpush.msra.mxu0 %v1368
    %1400 = vmatpush.msra.mxu0 %v1365
    %1401 = vmatpush.msra.mxu0 %v1362
    %1402 = vmatpush.msra.mxu0 %v1359
    %1403 = vmatpush.msra.mxu0 %v1356
    %1404 = vmatpush.msra.mxu0 %v1353
    %1405 = vmatpush.msra.mxu0 %v1350
    %1406 = vmatpush.msra.mxu0 %v1347
    %1407 = vmatpush.msra.mxu0 %v1344
    %1408 = vmatmul.f32.gmra.mxu0 %v1335
    %v1409 = vpop.f32.mrf.mxu0
    %v1410 = vadd.f32 0.0, %v1409
    %1411 = vdwg.mxu0
    %1412 = vmatpush.msra.mxu0 %v1390
    %1413 = vmatpush.msra.mxu0 %v1387
    %1414 = vmatpush.msra.mxu0 %v1384
    %1415 = vmatpush.msra.mxu0 %v1381
    %1416 = vmatpush.msra.mxu0 %v1378
    %1417 = vmatpush.msra.mxu0 %v1375
    %1418 = vmatpush.msra.mxu0 %v1372
    %1419 = vmatpush.msra.mxu0 %v1369
    %1420 = vmatpush.msra.mxu0 %v1366
    %1421 = vmatpush.msra.mxu0 %v1363
    %1422 = vmatpush.msra.mxu0 %v1360
    %1423 = vmatpush.msra.mxu0 %v1357
    %1424 = vmatpush.msra.mxu0 %v1354
    %1425 = vmatpush.msra.mxu0 %v1351
    %1426 = vmatpush.msra.mxu0 %v1348
    %1427 = vmatpush.msra.mxu0 %v1345
    %1428 = vmatmul.f32.gmra.mxu0 %v1335
    %v1429 = vpop.f32.mrf.mxu0
    %v1430 = vadd.f32 0.0, %v1429
    %1431 = vdwg.mxu0
    %1432 = vmatpush.msra.mxu0 %v1391
    %1433 = vmatpush.msra.mxu0 %v1388
    %1434 = vmatpush.msra.mxu0 %v1385
    %1435 = vmatpush.msra.mxu0 %v1382
    %1436 = vmatpush.msra.mxu0 %v1379
    %1437 = vmatpush.msra.mxu0 %v1376
    %1438 = vmatpush.msra.mxu0 %v1373
    %1439 = vmatpush.msra.mxu0 %v1370
    %1440 = vmatpush.msra.mxu0 %v1367
    %1441 = vmatpush.msra.mxu0 %v1364
    %1442 = vmatpush.msra.mxu0 %v1361
    %1443 = vmatpush.msra.mxu0 %v1358
    %1444 = vmatpush.msra.mxu0 %v1355
    %1445 = vmatpush.msra.mxu0 %v1352
    %1446 = vmatpush.msra.mxu0 %v1349
    %1447 = vmatpush.msra.mxu0 %v1346
    %1448 = vmatmul.f32.gmra.mxu0 %v1335
    %v1449 = vpop.f32.mrf.mxu0
    %v1450 = vadd.f32 0.0, %v1449
    %1451 = vdwg.mxu0
    %v1452 = vadd.f32 %v1341, %v1410
    %v1453 = vadd.f32 %v1342, %v1430
    %v1454 = vxor.u32 %v1452, 2147483648
    %v1455 = vxor.u32 %v1453, 2147483648
    %v1456 = vmul.f32 %v1454, 1.442695
    %v1457 = vpow.pop %v1456
    %v1458 = vmul.f32 %v1455, 1.442695
    %v1459 = vpow.pop %v1458
    %v1460 = vadd.f32 %v1457, 1.0
    %v1461 = vadd.f32 %v1459, 1.0
    %v1462 = vrcp.pop %v1460
    %v1463 = vmul.f32 %v1460, %v1462
    %v1464 = vsub.f32 1.0, %v1463
    %v1465 = vmul.f32 %v1462, %v1464
    %v1466 = vadd.f32 %v1462, %v1465
    %vm1467 = vweird.f32 %v1460
    %vm1468 = vweird.f32 %v1462
    %vm1469 = vmor %vm1467, %vm1468
    %v1470 = vsel %vm1469, %v1462, %v1466
    %v1471 = vand.u32 2147483647, %v1460
    %vm1472 = vcmp.eq.f32.partialorder %v1471, 8.507059e+37
    %v1473 = vand.u32 %v1460, 2147483648
    %v1474 = vor.u32 1.1754944e-38, %v1473
    %v1475 = vsel %vm1472, %v1474, %v1470
    %v1476 = vmul.f32 1.0, %v1475
    %v1477 = vrcp.pop %v1461
    %v1478 = vmul.f32 %v1461, %v1477
    %v1479 = vsub.f32 1.0, %v1478
    %v1480 = vmul.f32 %v1477, %v1479
    %v1481 = vadd.f32 %v1477, %v1480
    %vm1482 = vweird.f32 %v1461
    %vm1483 = vweird.f32 %v1477
    %vm1484 = vmor %vm1482, %vm1483
    %v1485 = vsel %vm1484, %v1477, %v1481
    %v1486 = vand.u32 2147483647, %v1461
    %vm1487 = vcmp.eq.f32.partialorder %v1486, 8.507059e+37
    %v1488 = vand.u32 %v1461, 2147483648
    %v1489 = vor.u32 1.1754944e-38, %v1488
    %v1490 = vsel %vm1487, %v1489, %v1485
    %v1491 = vmul.f32 1.0, %v1490
    %v1492 = vadd.f32 %v1450, %v359
    %v1493 = vmul.f32 %v1476, %v1492
    %v1494 = vadd.f32 %v1343, %v1493
    %v1495 = vtanh.pop %v1494
    %v1496 = vsub.f32 %v1335, %v1495
    %v1497 = vmul.f32 %v1491, %v1496
    %v1498 = vadd.f32 %v1495, %v1497
    %s1499 = scalar_lea.vmem [#allocation3], 48
    %1500 = vst [vmem:[%s1499] sm:$0xff] %v1498
    %s1501 = smul.u32 7, 3
    %s1502 = smul.addr %s1501, 8
    %s1503 = scalar_lea.vmem [#allocation2], %s1502
    %v1504 = vld [vmem:[%s1503] sm:$0xff]
    %v1505 = vld [vmem:[%s1503 + $0x8] sm:$0xff]
    %v1506 = vld [vmem:[%s1503 + $0x10] sm:$0xff]
    %v1507 = vld [vmem:[#allocation9] sm:$0xff]
    %v1508 = vld [vmem:[#allocation9 + $0x8] sm:$0xff]
    %v1509 = vld [vmem:[#allocation9 + $0x10] sm:$0xff]
    %v1510 = vld [vmem:[#allocation9 + $0x18] sm:$0xff]
    %v1511 = vld [vmem:[#allocation9 + $0x20] sm:$0xff]
    %v1512 = vld [vmem:[#allocation9 + $0x28] sm:$0xff]
    %v1513 = vld [vmem:[#allocation9 + $0x30] sm:$0xff]
    %v1514 = vld [vmem:[#allocation9 + $0x38] sm:$0xff]
    %v1515 = vld [vmem:[#allocation9 + $0x40] sm:$0xff]
    %v1516 = vld [vmem:[#allocation9 + $0x48] sm:$0xff]
    %v1517 = vld [vmem:[#allocation9 + $0x50] sm:$0xff]
    %v1518 = vld [vmem:[#allocation9 + $0x58] sm:$0xff]
    %v1519 = vld [vmem:[#allocation9 + $0x60] sm:$0xff]
    %v1520 = vld [vmem:[#allocation9 + $0x68] sm:$0xff]
    %v1521 = vld [vmem:[#allocation9 + $0x70] sm:$0xff]
    %v1522 = vld [vmem:[#allocation9 + $0x78] sm:$0xff]
    %v1523 = vld [vmem:[#allocation9 + $0x80] sm:$0xff]
    %v1524 = vld [vmem:[#allocation9 + $0x88] sm:$0xff]
    %v1525 = vld [vmem:[#allocation9 + $0x90] sm:$0xff]
    %v1526 = vld [vmem:[#allocation9 + $0x98] sm:$0xff]
    %v1527 = vld [vmem:[#allocation9 + $0xa0] sm:$0xff]
    %v1528 = vld [vmem:[#allocation9 + $0xa8] sm:$0xff]
    %v1529 = vld [vmem:[#allocation9 + $0xb0] sm:$0xff]
    %v1530 = vld [vmem:[#allocation9 + $0xb8] sm:$0xff]
    %v1531 = vld [vmem:[#allocation9 + $0xc0] sm:$0xff]
    %v1532 = vld [vmem:[#allocation9 + $0xc8] sm:$0xff]
    %v1533 = vld [vmem:[#allocation9 + $0xd0] sm:$0xff]
    %v1534 = vld [vmem:[#allocation9 + $0xd8] sm:$0xff]
    %v1535 = vld [vmem:[#allocation9 + $0xe0] sm:$0xff]
    %v1536 = vld [vmem:[#allocation9 + $0xe8] sm:$0xff]
    %v1537 = vld [vmem:[#allocation9 + $0xf0] sm:$0xff]
    %v1538 = vld [vmem:[#allocation9 + $0xf8] sm:$0xff]
    %v1539 = vld [vmem:[#allocation9 + $0x100] sm:$0xff]
    %v1540 = vld [vmem:[#allocation9 + $0x108] sm:$0xff]
    %v1541 = vld [vmem:[#allocation9 + $0x110] sm:$0xff]
    %v1542 = vld [vmem:[#allocation9 + $0x118] sm:$0xff]
    %v1543 = vld [vmem:[#allocation9 + $0x120] sm:$0xff]
    %v1544 = vld [vmem:[#allocation9 + $0x128] sm:$0xff]
    %v1545 = vld [vmem:[#allocation9 + $0x130] sm:$0xff]
    %v1546 = vld [vmem:[#allocation9 + $0x138] sm:$0xff]
    %v1547 = vld [vmem:[#allocation9 + $0x140] sm:$0xff]
    %v1548 = vld [vmem:[#allocation9 + $0x148] sm:$0xff]
    %v1549 = vld [vmem:[#allocation9 + $0x150] sm:$0xff]
    %v1550 = vld [vmem:[#allocation9 + $0x158] sm:$0xff]
    %v1551 = vld [vmem:[#allocation9 + $0x160] sm:$0xff]
    %v1552 = vld [vmem:[#allocation9 + $0x168] sm:$0xff]
    %v1553 = vld [vmem:[#allocation9 + $0x170] sm:$0xff]
    %v1554 = vld [vmem:[#allocation9 + $0x178] sm:$0xff]
    %1555 = vmatpush.msra.mxu0 %v1552
    %1556 = vmatpush.msra.mxu0 %v1549
    %1557 = vmatpush.msra.mxu0 %v1546
    %1558 = vmatpush.msra.mxu0 %v1543
    %1559 = vmatpush.msra.mxu0 %v1540
    %1560 = vmatpush.msra.mxu0 %v1537
    %1561 = vmatpush.msra.mxu0 %v1534
    %1562 = vmatpush.msra.mxu0 %v1531
    %1563 = vmatpush.msra.mxu0 %v1528
    %1564 = vmatpush.msra.mxu0 %v1525
    %1565 = vmatpush.msra.mxu0 %v1522
    %1566 = vmatpush.msra.mxu0 %v1519
    %1567 = vmatpush.msra.mxu0 %v1516
    %1568 = vmatpush.msra.mxu0 %v1513
    %1569 = vmatpush.msra.mxu0 %v1510
    %1570 = vmatpush.msra.mxu0 %v1507
    %1571 = vmatmul.f32.gmra.mxu0 %v1498
    %v1572 = vpop.f32.mrf.mxu0
    %v1573 = vadd.f32 0.0, %v1572
    %1574 = vdwg.mxu0
    %1575 = vmatpush.msra.mxu0 %v1553
    %1576 = vmatpush.msra.mxu0 %v1550
    %1577 = vmatpush.msra.mxu0 %v1547
    %1578 = vmatpush.msra.mxu0 %v1544
    %1579 = vmatpush.msra.mxu0 %v1541
    %1580 = vmatpush.msra.mxu0 %v1538
    %1581 = vmatpush.msra.mxu0 %v1535
    %1582 = vmatpush.msra.mxu0 %v1532
    %1583 = vmatpush.msra.mxu0 %v1529
    %1584 = vmatpush.msra.mxu0 %v1526
    %1585 = vmatpush.msra.mxu0 %v1523
    %1586 = vmatpush.msra.mxu0 %v1520
    %1587 = vmatpush.msra.mxu0 %v1517
    %1588 = vmatpush.msra.mxu0 %v1514
    %1589 = vmatpush.msra.mxu0 %v1511
    %1590 = vmatpush.msra.mxu0 %v1508
    %1591 = vmatmul.f32.gmra.mxu0 %v1498
    %v1592 = vpop.f32.mrf.mxu0
    %v1593 = vadd.f32 0.0, %v1592
    %1594 = vdwg.mxu0
    %1595 = vmatpush.msra.mxu0 %v1554
    %1596 = vmatpush.msra.mxu0 %v1551
    %1597 = vmatpush.msra.mxu0 %v1548
    %1598 = vmatpush.msra.mxu0 %v1545
    %1599 = vmatpush.msra.mxu0 %v1542
    %1600 = vmatpush.msra.mxu0 %v1539
    %1601 = vmatpush.msra.mxu0 %v1536
    %1602 = vmatpush.msra.mxu0 %v1533
    %1603 = vmatpush.msra.mxu0 %v1530
    %1604 = vmatpush.msra.mxu0 %v1527
    %1605 = vmatpush.msra.mxu0 %v1524
    %1606 = vmatpush.msra.mxu0 %v1521
    %1607 = vmatpush.msra.mxu0 %v1518
    %1608 = vmatpush.msra.mxu0 %v1515
    %1609 = vmatpush.msra.mxu0 %v1512
    %1610 = vmatpush.msra.mxu0 %v1509
    %1611 = vmatmul.f32.gmra.mxu0 %v1498
    %v1612 = vpop.f32.mrf.mxu0
    %v1613 = vadd.f32 0.0, %v1612
    %1614 = vdwg.mxu0
    %v1615 = vadd.f32 %v1504, %v1573
    %v1616 = vadd.f32 %v1505, %v1593
    %v1617 = vxor.u32 %v1615, 2147483648
    %v1618 = vxor.u32 %v1616, 2147483648
    %v1619 = vmul.f32 %v1617, 1.442695
    %v1620 = vpow.pop %v1619
    %v1621 = vmul.f32 %v1618, 1.442695
    %v1622 = vpow.pop %v1621
    %v1623 = vadd.f32 %v1620, 1.0
    %v1624 = vadd.f32 %v1622, 1.0
    %v1625 = vrcp.pop %v1623
    %v1626 = vmul.f32 %v1623, %v1625
    %v1627 = vsub.f32 1.0, %v1626
    %v1628 = vmul.f32 %v1625, %v1627
    %v1629 = vadd.f32 %v1625, %v1628
    %vm1630 = vweird.f32 %v1623
    %vm1631 = vweird.f32 %v1625
    %vm1632 = vmor %vm1630, %vm1631
    %v1633 = vsel %vm1632, %v1625, %v1629
    %v1634 = vand.u32 2147483647, %v1623
    %vm1635 = vcmp.eq.f32.partialorder %v1634, 8.507059e+37
    %v1636 = vand.u32 %v1623, 2147483648
    %v1637 = vor.u32 1.1754944e-38, %v1636
    %v1638 = vsel %vm1635, %v1637, %v1633
    %v1639 = vmul.f32 1.0, %v1638
    %v1640 = vrcp.pop %v1624
    %v1641 = vmul.f32 %v1624, %v1640
    %v1642 = vsub.f32 1.0, %v1641
    %v1643 = vmul.f32 %v1640, %v1642
    %v1644 = vadd.f32 %v1640, %v1643
    %vm1645 = vweird.f32 %v1624
    %vm1646 = vweird.f32 %v1640
    %vm1647 = vmor %vm1645, %vm1646
    %v1648 = vsel %vm1647, %v1640, %v1644
    %v1649 = vand.u32 2147483647, %v1624
    %vm1650 = vcmp.eq.f32.partialorder %v1649, 8.507059e+37
    %v1651 = vand.u32 %v1624, 2147483648
    %v1652 = vor.u32 1.1754944e-38, %v1651
    %v1653 = vsel %vm1650, %v1652, %v1648
    %v1654 = vmul.f32 1.0, %v1653
    %v1655 = vadd.f32 %v1613, %v359
    %v1656 = vmul.f32 %v1639, %v1655
    %v1657 = vadd.f32 %v1506, %v1656
    %v1658 = vtanh.pop %v1657
    %v1659 = vsub.f32 %v1498, %v1658
    %v1660 = vmul.f32 %v1654, %v1659
    %v1661 = vadd.f32 %v1658, %v1660
    %s1662 = scalar_lea.vmem [#allocation3], 56
    %1663 = vst [vmem:[%s1662] sm:$0xff] %v1661
    %v1664 = vld [vmem:[#allocation3] sm:$0xff]
    %v1665 = vld [vmem:[#allocation3 + $0x8] sm:$0xff]
    %v1666 = vld [vmem:[#allocation3 + $0x10] sm:$0xff]
    %v1667 = vld [vmem:[#allocation3 + $0x18] sm:$0xff]
    %v1668 = vld [vmem:[#allocation3 + $0x20] sm:$0xff]
    %v1669 = vld [vmem:[#allocation3 + $0x28] sm:$0xff]
    %v1670 = vld [vmem:[#allocation3 + $0x30] sm:$0xff]
    %v1671 = vld [vmem:[#allocation3 + $0x38] sm:$0xff]
    %v1672 = vld [vmem:[#allocation12] sm:$0xff]
    %v1673 = vld [vmem:[#allocation12 + $0x8] sm:$0xff]
    %v1674 = vld [vmem:[#allocation12 + $0x10] sm:$0xff]
    %v1675 = vld [vmem:[#allocation12 + $0x18] sm:$0xff]
    %v1676 = vld [vmem:[#allocation12 + $0x20] sm:$0xff]
    %v1677 = vld [vmem:[#allocation12 + $0x28] sm:$0xff]
    %v1678 = vld [vmem:[#allocation12 + $0x30] sm:$0xff]
    %v1679 = vld [vmem:[#allocation12 + $0x38] sm:$0xff]
    %v1680 = vld [vmem:[#allocation12 + $0x40] sm:$0xff]
    %v1681 = vld [vmem:[#allocation12 + $0x48] sm:$0xff]
    %v1682 = vld [vmem:[#allocation12 + $0x50] sm:$0xff]
    %v1683 = vld [vmem:[#allocation12 + $0x58] sm:$0xff]
    %v1684 = vld [vmem:[#allocation12 + $0x60] sm:$0xff]
    %v1685 = vld [vmem:[#allocation12 + $0x68] sm:$0xff]
    %v1686 = vld [vmem:[#allocation12 + $0x70] sm:$0xff]
    %v1687 = vld [vmem:[#allocation12 + $0x78] sm:$0xff]
    %v1688 = vld [vmem:[#allocation12 + $0x80] sm:$0xff]
    %v1689 = vld [vmem:[#allocation12 + $0x88] sm:$0xff]
    %v1690 = vld [vmem:[#allocation12 + $0x90] sm:$0xff]
    %v1691 = vld [vmem:[#allocation12 + $0x98] sm:$0xff]
    %v1692 = vld [vmem:[#allocation12 + $0xa0] sm:$0xff]
    %v1693 = vld [vmem:[#allocation12 + $0xa8] sm:$0xff]
    %v1694 = vld [vmem:[#allocation12 + $0xb0] sm:$0xff]
    %v1695 = vld [vmem:[#allocation12 + $0xb8] sm:$0xff]
    %v1696 = vld [vmem:[#allocation12 + $0xc0] sm:$0xff]
    %v1697 = vld [vmem:[#allocation12 + $0xc8] sm:$0xff]
    %v1698 = vld [vmem:[#allocation12 + $0xd0] sm:$0xff]
    %v1699 = vld [vmem:[#allocation12 + $0xd8] sm:$0xff]
    %v1700 = vld [vmem:[#allocation12 + $0xe0] sm:$0xff]
    %v1701 = vld [vmem:[#allocation12 + $0xe8] sm:$0xff]
    %v1702 = vld [vmem:[#allocation12 + $0xf0] sm:$0xff]
    %v1703 = vld [vmem:[#allocation12 + $0xf8] sm:$0xff]
    %v1704 = vld [vmem:[#allocation12 + $0x100] sm:$0xff]
    %v1705 = vld [vmem:[#allocation12 + $0x108] sm:$0xff]
    %v1706 = vld [vmem:[#allocation12 + $0x110] sm:$0xff]
    %v1707 = vld [vmem:[#allocation12 + $0x118] sm:$0xff]
    %v1708 = vld [vmem:[#allocation12 + $0x120] sm:$0xff]
    %v1709 = vld [vmem:[#allocation12 + $0x128] sm:$0xff]
    %v1710 = vld [vmem:[#allocation12 + $0x130] sm:$0xff]
    %v1711 = vld [vmem:[#allocation12 + $0x138] sm:$0xff]
    %v1712 = vld [vmem:[#allocation12 + $0x140] sm:$0xff]
    %v1713 = vld [vmem:[#allocation12 + $0x148] sm:$0xff]
    %v1714 = vld [vmem:[#allocation12 + $0x150] sm:$0xff]
    %v1715 = vld [vmem:[#allocation12 + $0x158] sm:$0xff]
    %v1716 = vld [vmem:[#allocation12 + $0x160] sm:$0xff]
    %v1717 = vld [vmem:[#allocation12 + $0x168] sm:$0xff]
    %v1718 = vld [vmem:[#allocation12 + $0x170] sm:$0xff]
    %v1719 = vld [vmem:[#allocation12 + $0x178] sm:$0xff]
    %v1720 = vld [vmem:[%s7] sm:$0x7]
    %v1722 = vperm.slane %v1720, 0
    %v1723 = vperm.slane %v1720, 1
    %v1724 = vperm.slane %v1720, 2
    %1728 = vmatpush.msra.mxu0 %v1717
    %1729 = vmatpush.msra.mxu0 %v1714
    %1730 = vmatpush.msra.mxu0 %v1711
    %1731 = vmatpush.msra.mxu0 %v1708
    %1732 = vmatpush.msra.mxu0 %v1705
    %1733 = vmatpush.msra.mxu0 %v1702
    %1734 = vmatpush.msra.mxu0 %v1699
    %1735 = vmatpush.msra.mxu0 %v1696
    %1736 = vmatpush.msra.mxu0 %v1693
    %1737 = vmatpush.msra.mxu0 %v1690
    %1738 = vmatpush.msra.mxu0 %v1687
    %1739 = vmatpush.msra.mxu0 %v1684
    %1740 = vmatpush.msra.mxu0 %v1681
    %1741 = vmatpush.msra.mxu0 %v1678
    %1742 = vmatpush.msra.mxu0 %v1675
    %1743 = vmatpush.msra.mxu0 %v1672
    %1744 = vmatmul.f32.gmra.mxu0 %v1664
    %v1745 = vpop.f32.mrf.mxu0
    %v1746 = vadd.f32 %v1722, %v1745
    %1747 = vmatmul.f32.gmra.mxu0 %v1665
    %v1748 = vpop.f32.mrf.mxu0
    %v1749 = vadd.f32 %v1722, %v1748
    %1750 = vmatmul.f32.gmra.mxu0 %v1666
    %v1751 = vpop.f32.mrf.mxu0
    %v1752 = vadd.f32 %v1722, %v1751
    %1753 = vmatmul.f32.gmra.mxu0 %v1667
    %v1754 = vpop.f32.mrf.mxu0
    %v1755 = vadd.f32 %v1722, %v1754
    %1756 = vmatmul.f32.gmra.mxu0 %v1668
    %v1757 = vpop.f32.mrf.mxu0
    %v1758 = vadd.f32 %v1722, %v1757
    %1759 = vmatmul.f32.gmra.mxu0 %v1669
    %v1760 = vpop.f32.mrf.mxu0
    %v1761 = vadd.f32 %v1722, %v1760
    %1762 = vmatmul.f32.gmra.mxu0 %v1670
    %v1763 = vpop.f32.mrf.mxu0
    %v1764 = vadd.f32 %v1722, %v1763
    %1765 = vmatmul.f32.gmra.mxu0 %v1671
    %v1766 = vpop.f32.mrf.mxu0
    %v1767 = vadd.f32 %v1722, %v1766
    %1768 = vdwg.mxu0
    %1769 = vmatpush.msra.mxu0 %v1718
    %1770 = vmatpush.msra.mxu0 %v1715
    %1771 = vmatpush.msra.mxu0 %v1712
    %1772 = vmatpush.msra.mxu0 %v1709
    %1773 = vmatpush.msra.mxu0 %v1706
    %1774 = vmatpush.msra.mxu0 %v1703
    %1775 = vmatpush.msra.mxu0 %v1700
    %1776 = vmatpush.msra.mxu0 %v1697
    %1777 = vmatpush.msra.mxu0 %v1694
    %1778 = vmatpush.msra.mxu0 %v1691
    %1779 = vmatpush.msra.mxu0 %v1688
    %1780 = vmatpush.msra.mxu0 %v1685
    %1781 = vmatpush.msra.mxu0 %v1682
    %1782 = vmatpush.msra.mxu0 %v1679
    %1783 = vmatpush.msra.mxu0 %v1676
    %1784 = vmatpush.msra.mxu0 %v1673
    %1785 = vmatmul.f32.gmra.mxu0 %v1664
    %v1786 = vpop.f32.mrf.mxu0
    %v1787 = vadd.f32 %v1723, %v1786
    %1788 = vmatmul.f32.gmra.mxu0 %v1665
    %v1789 = vpop.f32.mrf.mxu0
    %v1790 = vadd.f32 %v1723, %v1789
    %1791 = vmatmul.f32.gmra.mxu0 %v1666
    %v1792 = vpop.f32.mrf.mxu0
    %v1793 = vadd.f32 %v1723, %v1792
    %1794 = vmatmul.f32.gmra.mxu0 %v1667
    %v1795 = vpop.f32.mrf.mxu0
    %v1796 = vadd.f32 %v1723, %v1795
    %1797 = vmatmul.f32.gmra.mxu0 %v1668
    %v1798 = vpop.f32.mrf.mxu0
    %v1799 = vadd.f32 %v1723, %v1798
    %1800 = vmatmul.f32.gmra.mxu0 %v1669
    %v1801 = vpop.f32.mrf.mxu0
    %v1802 = vadd.f32 %v1723, %v1801
    %1803 = vmatmul.f32.gmra.mxu0 %v1670
    %v1804 = vpop.f32.mrf.mxu0
    %v1805 = vadd.f32 %v1723, %v1804
    %1806 = vmatmul.f32.gmra.mxu0 %v1671
    %v1807 = vpop.f32.mrf.mxu0
    %v1808 = vadd.f32 %v1723, %v1807
    %1809 = vdwg.mxu0
    %1810 = vmatpush.msra.mxu0 %v1719
    %1811 = vmatpush.msra.mxu0 %v1716
    %1812 = vmatpush.msra.mxu0 %v1713
    %1813 = vmatpush.msra.mxu0 %v1710
    %1814 = vmatpush.msra.mxu0 %v1707
    %1815 = vmatpush.msra.mxu0 %v1704
    %1816 = vmatpush.msra.mxu0 %v1701
    %1817 = vmatpush.msra.mxu0 %v1698
    %1818 = vmatpush.msra.mxu0 %v1695
    %1819 = vmatpush.msra.mxu0 %v1692
    %1820 = vmatpush.msra.mxu0 %v1689
    %1821 = vmatpush.msra.mxu0 %v1686
    %1822 = vmatpush.msra.mxu0 %v1683
    %1823 = vmatpush.msra.mxu0 %v1680
    %1824 = vmatpush.msra.mxu0 %v1677
    %1825 = vmatpush.msra.mxu0 %v1674
    %1826 = vmatmul.f32.gmra.mxu0 %v1664
    %v1827 = vpop.f32.mrf.mxu0
    %v1828 = vadd.f32 %v1724, %v1827
    %1829 = vmatmul.f32.gmra.mxu0 %v1665
    %v1830 = vpop.f32.mrf.mxu0
    %v1831 = vadd.f32 %v1724, %v1830
    %1832 = vmatmul.f32.gmra.mxu0 %v1666
    %v1833 = vpop.f32.mrf.mxu0
    %v1834 = vadd.f32 %v1724, %v1833
    %1835 = vmatmul.f32.gmra.mxu0 %v1667
    %v1836 = vpop.f32.mrf.mxu0
    %v1837 = vadd.f32 %v1724, %v1836
    %1838 = vmatmul.f32.gmra.mxu0 %v1668
    %v1839 = vpop.f32.mrf.mxu0
    %v1840 = vadd.f32 %v1724, %v1839
    %1841 = vmatmul.f32.gmra.mxu0 %v1669
    %v1842 = vpop.f32.mrf.mxu0
    %v1843 = vadd.f32 %v1724, %v1842
    %1844 = vmatmul.f32.gmra.mxu0 %v1670
    %v1845 = vpop.f32.mrf.mxu0
    %v1846 = vadd.f32 %v1724, %v1845
    %1847 = vmatmul.f32.gmra.mxu0 %v1671
    %v1848 = vpop.f32.mrf.mxu0
    %v1849 = vadd.f32 %v1724, %v1848
    %1850 = vdwg.mxu0
    %1851 = vst [vmem:[#allocation2] sm:$0xff] %v1746
    %1852 = vst [vmem:[#allocation2 + $0x8] sm:$0xff] %v1787
    %1853 = vst [vmem:[#allocation2 + $0x10] sm:$0xff] %v1828
    %1854 = vst [vmem:[#allocation2 + $0x18] sm:$0xff] %v1749
    %1855 = vst [vmem:[#allocation2 + $0x20] sm:$0xff] %v1790
    %1856 = vst [vmem:[#allocation2 + $0x28] sm:$0xff] %v1831
    %1857 = vst [vmem:[#allocation2 + $0x30] sm:$0xff] %v1752
    %1858 = vst [vmem:[#allocation2 + $0x38] sm:$0xff] %v1793
    %1859 = vst [vmem:[#allocation2 + $0x40] sm:$0xff] %v1834
    %1860 = vst [vmem:[#allocation2 + $0x48] sm:$0xff] %v1755
    %1861 = vst [vmem:[#allocation2 + $0x50] sm:$0xff] %v1796
    %1862 = vst [vmem:[#allocation2 + $0x58] sm:$0xff] %v1837
    %1863 = vst [vmem:[#allocation2 + $0x60] sm:$0xff] %v1758
    %1864 = vst [vmem:[#allocation2 + $0x68] sm:$0xff] %v1799
    %1865 = vst [vmem:[#allocation2 + $0x70] sm:$0xff] %v1840
    %1866 = vst [vmem:[#allocation2 + $0x78] sm:$0xff] %v1761
    %1867 = vst [vmem:[#allocation2 + $0x80] sm:$0xff] %v1802
    %1868 = vst [vmem:[#allocation2 + $0x88] sm:$0xff] %v1843
    %1869 = vst [vmem:[#allocation2 + $0x90] sm:$0xff] %v1764
    %1870 = vst [vmem:[#allocation2 + $0x98] sm:$0xff] %v1805
    %1871 = vst [vmem:[#allocation2 + $0xa0] sm:$0xff] %v1846
    %1872 = vst [vmem:[#allocation2 + $0xa8] sm:$0xff] %v1767
    %1873 = vst [vmem:[#allocation2 + $0xb0] sm:$0xff] %v1808
    %1874 = vst [vmem:[#allocation2 + $0xb8] sm:$0xff] %v1849
    %v1875 = vld [vmem:[%s8] sm:$0x1]
    %v1877 = vperm.slane %v1875, 0
    %v1879 = vld [vmem:[%s363] sm:$0xff]
    %v1880 = vld [vmem:[%s363 + $0x8] sm:$0xff]
    %v1881 = vld [vmem:[%s363 + $0x10] sm:$0xff]
    %v1882 = vld [vmem:[#allocation13] sm:$0xff]
    %v1883 = vld [vmem:[#allocation13 + $0x8] sm:$0xff]
    %v1884 = vld [vmem:[#allocation13 + $0x10] sm:$0xff]
    %v1885 = vld [vmem:[#allocation13 + $0x18] sm:$0xff]
    %v1886 = vld [vmem:[#allocation13 + $0x20] sm:$0xff]
    %v1887 = vld [vmem:[#allocation13 + $0x28] sm:$0xff]
    %v1888 = vld [vmem:[#allocation13 + $0x30] sm:$0xff]
    %v1889 = vld [vmem:[#allocation13 + $0x38] sm:$0xff]
    %v1890 = vld [vmem:[#allocation13 + $0x40] sm:$0xff]
    %v1891 = vld [vmem:[#allocation13 + $0x48] sm:$0xff]
    %v1892 = vld [vmem:[#allocation13 + $0x50] sm:$0xff]
    %v1893 = vld [vmem:[#allocation13 + $0x58] sm:$0xff]
    %v1894 = vld [vmem:[#allocation13 + $0x60] sm:$0xff]
    %v1895 = vld [vmem:[#allocation13 + $0x68] sm:$0xff]
    %v1896 = vld [vmem:[#allocation13 + $0x70] sm:$0xff]
    %v1897 = vld [vmem:[#allocation13 + $0x78] sm:$0xff]
    %v1898 = vld [vmem:[#allocation13 + $0x80] sm:$0xff]
    %v1899 = vld [vmem:[#allocation13 + $0x88] sm:$0xff]
    %v1900 = vld [vmem:[#allocation13 + $0x90] sm:$0xff]
    %v1901 = vld [vmem:[#allocation13 + $0x98] sm:$0xff]
    %v1902 = vld [vmem:[#allocation13 + $0xa0] sm:$0xff]
    %v1903 = vld [vmem:[#allocation13 + $0xa8] sm:$0xff]
    %v1904 = vld [vmem:[#allocation13 + $0xb0] sm:$0xff]
    %v1905 = vld [vmem:[#allocation13 + $0xb8] sm:$0xff]
    %v1906 = vld [vmem:[#allocation13 + $0xc0] sm:$0xff]
    %v1907 = vld [vmem:[#allocation13 + $0xc8] sm:$0xff]
    %v1908 = vld [vmem:[#allocation13 + $0xd0] sm:$0xff]
    %v1909 = vld [vmem:[#allocation13 + $0xd8] sm:$0xff]
    %v1910 = vld [vmem:[#allocation13 + $0xe0] sm:$0xff]
    %v1911 = vld [vmem:[#allocation13 + $0xe8] sm:$0xff]
    %v1912 = vld [vmem:[#allocation13 + $0xf0] sm:$0xff]
    %v1913 = vld [vmem:[#allocation13 + $0xf8] sm:$0xff]
    %v1914 = vld [vmem:[#allocation13 + $0x100] sm:$0xff]
    %v1915 = vld [vmem:[#allocation13 + $0x108] sm:$0xff]
    %v1916 = vld [vmem:[#allocation13 + $0x110] sm:$0xff]
    %v1917 = vld [vmem:[#allocation13 + $0x118] sm:$0xff]
    %v1918 = vld [vmem:[#allocation13 + $0x120] sm:$0xff]
    %v1919 = vld [vmem:[#allocation13 + $0x128] sm:$0xff]
    %v1920 = vld [vmem:[#allocation13 + $0x130] sm:$0xff]
    %v1921 = vld [vmem:[#allocation13 + $0x138] sm:$0xff]
    %v1922 = vld [vmem:[#allocation13 + $0x140] sm:$0xff]
    %v1923 = vld [vmem:[#allocation13 + $0x148] sm:$0xff]
    %v1924 = vld [vmem:[#allocation13 + $0x150] sm:$0xff]
    %v1925 = vld [vmem:[#allocation13 + $0x158] sm:$0xff]
    %v1926 = vld [vmem:[#allocation13 + $0x160] sm:$0xff]
    %v1927 = vld [vmem:[#allocation13 + $0x168] sm:$0xff]
    %v1928 = vld [vmem:[#allocation13 + $0x170] sm:$0xff]
    %v1929 = vld [vmem:[#allocation13 + $0x178] sm:$0xff]
    %1930 = vmatpush.msra.mxu0 %v1927
    %1931 = vmatpush.msra.mxu0 %v1924
    %1932 = vmatpush.msra.mxu0 %v1921
    %1933 = vmatpush.msra.mxu0 %v1918
    %1934 = vmatpush.msra.mxu0 %v1915
    %1935 = vmatpush.msra.mxu0 %v1912
    %1936 = vmatpush.msra.mxu0 %v1909
    %1937 = vmatpush.msra.mxu0 %v1906
    %1938 = vmatpush.msra.mxu0 %v1903
    %1939 = vmatpush.msra.mxu0 %v1900
    %1940 = vmatpush.msra.mxu0 %v1897
    %1941 = vmatpush.msra.mxu0 %v1894
    %1942 = vmatpush.msra.mxu0 %v1891
    %1943 = vmatpush.msra.mxu0 %v1888
    %1944 = vmatpush.msra.mxu0 %v1885
    %1945 = vmatpush.msra.mxu0 %v1882
    %1946 = vmatmul.f32.gmra.mxu0 0.0
    %v1947 = vpop.f32.mrf.mxu0
    %v1948 = vadd.f32 0.0, %v1947
    %1949 = vdwg.mxu0
    %1950 = vmatpush.msra.mxu0 %v1928
    %1951 = vmatpush.msra.mxu0 %v1925
    %1952 = vmatpush.msra.mxu0 %v1922
    %1953 = vmatpush.msra.mxu0 %v1919
    %1954 = vmatpush.msra.mxu0 %v1916
    %1955 = vmatpush.msra.mxu0 %v1913
    %1956 = vmatpush.msra.mxu0 %v1910
    %1957 = vmatpush.msra.mxu0 %v1907
    %1958 = vmatpush.msra.mxu0 %v1904
    %1959 = vmatpush.msra.mxu0 %v1901
    %1960 = vmatpush.msra.mxu0 %v1898
    %1961 = vmatpush.msra.mxu0 %v1895
    %1962 = vmatpush.msra.mxu0 %v1892
    %1963 = vmatpush.msra.mxu0 %v1889
    %1964 = vmatpush.msra.mxu0 %v1886
    %1965 = vmatpush.msra.mxu0 %v1883
    %1966 = vmatmul.f32.gmra.mxu0 0.0
    %v1967 = vpop.f32.mrf.mxu0
    %v1968 = vadd.f32 0.0, %v1967
    %1969 = vdwg.mxu0
    %1970 = vmatpush.msra.mxu0 %v1929
    %1971 = vmatpush.msra.mxu0 %v1926
    %1972 = vmatpush.msra.mxu0 %v1923
    %1973 = vmatpush.msra.mxu0 %v1920
    %1974 = vmatpush.msra.mxu0 %v1917
    %1975 = vmatpush.msra.mxu0 %v1914
    %1976 = vmatpush.msra.mxu0 %v1911
    %1977 = vmatpush.msra.mxu0 %v1908
    %1978 = vmatpush.msra.mxu0 %v1905
    %1979 = vmatpush.msra.mxu0 %v1902
    %1980 = vmatpush.msra.mxu0 %v1899
    %1981 = vmatpush.msra.mxu0 %v1896
    %1982 = vmatpush.msra.mxu0 %v1893
    %1983 = vmatpush.msra.mxu0 %v1890
    %1984 = vmatpush.msra.mxu0 %v1887
    %1985 = vmatpush.msra.mxu0 %v1884
    %1986 = vmatmul.f32.gmra.mxu0 0.0
    %v1987 = vpop.f32.mrf.mxu0
    %v1988 = vadd.f32 0.0, %v1987
    %1989 = vdwg.mxu0
    %v1990 = vadd.f32 %v1879, %v1948
    %v1991 = vadd.f32 %v1880, %v1968
    %v1992 = vxor.u32 %v1990, 2147483648
    %v1993 = vxor.u32 %v1991, 2147483648
    %v1994 = vmul.f32 %v1992, 1.442695
    %v1995 = vpow.pop %v1994
    %v1996 = vmul.f32 %v1993, 1.442695
    %v1997 = vpow.pop %v1996
    %v1998 = vadd.f32 %v1995, 1.0
    %v1999 = vadd.f32 %v1997, 1.0
    %v2000 = vrcp.pop %v1998
    %v2001 = vmul.f32 %v1998, %v2000
    %v2002 = vsub.f32 1.0, %v2001
    %v2003 = vmul.f32 %v2000, %v2002
    %v2004 = vadd.f32 %v2000, %v2003
    %vm2005 = vweird.f32 %v1998
    %vm2006 = vweird.f32 %v2000
    %vm2007 = vmor %vm2005, %vm2006
    %v2008 = vsel %vm2007, %v2000, %v2004
    %v2009 = vand.u32 2147483647, %v1998
    %vm2010 = vcmp.eq.f32.partialorder %v2009, 8.507059e+37
    %v2011 = vand.u32 %v1998, 2147483648
    %v2012 = vor.u32 1.1754944e-38, %v2011
    %v2013 = vsel %vm2010, %v2012, %v2008
    %v2014 = vmul.f32 1.0, %v2013
    %v2015 = vrcp.pop %v1999
    %v2016 = vmul.f32 %v1999, %v2015
    %v2017 = vsub.f32 1.0, %v2016
    %v2018 = vmul.f32 %v2015, %v2017
    %v2019 = vadd.f32 %v2015, %v2018
    %vm2020 = vweird.f32 %v1999
    %vm2021 = vweird.f32 %v2015
    %vm2022 = vmor %vm2020, %vm2021
    %v2023 = vsel %vm2022, %v2015, %v2019
    %v2024 = vand.u32 2147483647, %v1999
    %vm2025 = vcmp.eq.f32.partialorder %v2024, 8.507059e+37
    %v2026 = vand.u32 %v1999, 2147483648
    %v2027 = vor.u32 1.1754944e-38, %v2026
    %v2028 = vsel %vm2025, %v2027, %v2023
    %v2029 = vmul.f32 1.0, %v2028
    %v2030 = vadd.f32 %v1988, %v1877
    %v2031 = vmul.f32 %v2014, %v2030
    %v2032 = vadd.f32 %v1881, %v2031
    %v2033 = vtanh.pop %v2032
    %v2034 = vsub.f32 0.0, %v2033
    %v2035 = vmul.f32 %v2029, %v2034
    %v2036 = vadd.f32 %v2033, %v2035
    %v2037 = vld [vmem:[%s525] sm:$0xff]
    %v2038 = vld [vmem:[%s525 + $0x8] sm:$0xff]
    %v2039 = vld [vmem:[%s525 + $0x10] sm:$0xff]
    %2040 = vmatpush.msra.mxu0 %v1927
    %2041 = vmatpush.msra.mxu0 %v1924
    %2042 = vmatpush.msra.mxu0 %v1921
    %2043 = vmatpush.msra.mxu0 %v1918
    %2044 = vmatpush.msra.mxu0 %v1915
    %2045 = vmatpush.msra.mxu0 %v1912
    %2046 = vmatpush.msra.mxu0 %v1909
    %2047 = vmatpush.msra.mxu0 %v1906
    %2048 = vmatpush.msra.mxu0 %v1903
    %2049 = vmatpush.msra.mxu0 %v1900
    %2050 = vmatpush.msra.mxu0 %v1897
    %2051 = vmatpush.msra.mxu0 %v1894
    %2052 = vmatpush.msra.mxu0 %v1891
    %2053 = vmatpush.msra.mxu0 %v1888
    %2054 = vmatpush.msra.mxu0 %v1885
    %2055 = vmatpush.msra.mxu0 %v1882
    %2056 = vmatmul.f32.gmra.mxu0 %v2036
    %v2057 = vpop.f32.mrf.mxu0
    %v2058 = vadd.f32 0.0, %v2057
    %2059 = vdwg.mxu0
    %2060 = vmatpush.msra.mxu0 %v1928
    %2061 = vmatpush.msra.mxu0 %v1925
    %2062 = vmatpush.msra.mxu0 %v1922
    %2063 = vmatpush.msra.mxu0 %v1919
    %2064 = vmatpush.msra.mxu0 %v1916
    %2065 = vmatpush.msra.mxu0 %v1913
    %2066 = vmatpush.msra.mxu0 %v1910
    %2067 = vmatpush.msra.mxu0 %v1907
    %2068 = vmatpush.msra.mxu0 %v1904
    %2069 = vmatpush.msra.mxu0 %v1901
    %2070 = vmatpush.msra.mxu0 %v1898
    %2071 = vmatpush.msra.mxu0 %v1895
    %2072 = vmatpush.msra.mxu0 %v1892
    %2073 = vmatpush.msra.mxu0 %v1889
    %2074 = vmatpush.msra.mxu0 %v1886
    %2075 = vmatpush.msra.mxu0 %v1883
    %2076 = vmatmul.f32.gmra.mxu0 %v2036
    %v2077 = vpop.f32.mrf.mxu0
    %v2078 = vadd.f32 0.0, %v2077
    %2079 = vdwg.mxu0
    %2080 = vmatpush.msra.mxu0 %v1929
    %2081 = vmatpush.msra.mxu0 %v1926
    %2082 = vmatpush.msra.mxu0 %v1923
    %2083 = vmatpush.msra.mxu0 %v1920
    %2084 = vmatpush.msra.mxu0 %v1917
    %2085 = vmatpush.msra.mxu0 %v1914
    %2086 = vmatpush.msra.mxu0 %v1911
    %2087 = vmatpush.msra.mxu0 %v1908
    %2088 = vmatpush.msra.mxu0 %v1905
    %2089 = vmatpush.msra.mxu0 %v1902
    %2090 = vmatpush.msra.mxu0 %v1899
    %2091 = vmatpush.msra.mxu0 %v1896
    %2092 = vmatpush.msra.mxu0 %v1893
    %2093 = vmatpush.msra.mxu0 %v1890
    %2094 = vmatpush.msra.mxu0 %v1887
    %2095 = vmatpush.msra.mxu0 %v1884
    %2096 = vmatmul.f32.gmra.mxu0 %v2036
    %v2097 = vpop.f32.mrf.mxu0
    %v2098 = vadd.f32 0.0, %v2097
    %2099 = vdwg.mxu0
    %v2100 = vadd.f32 %v2037, %v2058
    %v2101 = vadd.f32 %v2038, %v2078
    %v2102 = vxor.u32 %v2100, 2147483648
    %v2103 = vxor.u32 %v2101, 2147483648
    %v2104 = vmul.f32 %v2102, 1.442695
    %v2105 = vpow.pop %v2104
    %v2106 = vmul.f32 %v2103, 1.442695
    %v2107 = vpow.pop %v2106
    %v2108 = vadd.f32 %v2105, 1.0
    %v2109 = vadd.f32 %v2107, 1.0
    %v2110 = vrcp.pop %v2108
    %v2111 = vmul.f32 %v2108, %v2110
    %v2112 = vsub.f32 1.0, %v2111
    %v2113 = vmul.f32 %v2110, %v2112
    %v2114 = vadd.f32 %v2110, %v2113
    %vm2115 = vweird.f32 %v2108
    %vm2116 = vweird.f32 %v2110
    %vm2117 = vmor %vm2115, %vm2116
    %v2118 = vsel %vm2117, %v2110, %v2114
    %v2119 = vand.u32 2147483647, %v2108
    %vm2120 = vcmp.eq.f32.partialorder %v2119, 8.507059e+37
    %v2121 = vand.u32 %v2108, 2147483648
    %v2122 = vor.u32 1.1754944e-38, %v2121
    %v2123 = vsel %vm2120, %v2122, %v2118
    %v2124 = vmul.f32 1.0, %v2123
    %v2125 = vrcp.pop %v2109
    %v2126 = vmul.f32 %v2109, %v2125
    %v2127 = vsub.f32 1.0, %v2126
    %v2128 = vmul.f32 %v2125, %v2127
    %v2129 = vadd.f32 %v2125, %v2128
    %vm2130 = vweird.f32 %v2109
    %vm2131 = vweird.f32 %v2125
    %vm2132 = vmor %vm2130, %vm2131
    %v2133 = vsel %vm2132, %v2125, %v2129
    %v2134 = vand.u32 2147483647, %v2109
    %vm2135 = vcmp.eq.f32.partialorder %v2134, 8.507059e+37
    %v2136 = vand.u32 %v2109, 2147483648
    %v2137 = vor.u32 1.1754944e-38, %v2136
    %v2138 = vsel %vm2135, %v2137, %v2133
    %v2139 = vmul.f32 1.0, %v2138
    %v2140 = vadd.f32 %v2098, %v1877
    %v2141 = vmul.f32 %v2124, %v2140
    %v2142 = vadd.f32 %v2039, %v2141
    %v2143 = vtanh.pop %v2142
    %v2144 = vsub.f32 %v2036, %v2143
    %v2145 = vmul.f32 %v2139, %v2144
    %v2146 = vadd.f32 %v2143, %v2145
    %v2147 = vld [vmem:[%s688] sm:$0xff]
    %v2148 = vld [vmem:[%s688 + $0x8] sm:$0xff]
    %v2149 = vld [vmem:[%s688 + $0x10] sm:$0xff]
    %2150 = vmatpush.msra.mxu0 %v1927
    %2151 = vmatpush.msra.mxu0 %v1924
    %2152 = vmatpush.msra.mxu0 %v1921
    %2153 = vmatpush.msra.mxu0 %v1918
    %2154 = vmatpush.msra.mxu0 %v1915
    %2155 = vmatpush.msra.mxu0 %v1912
    %2156 = vmatpush.msra.mxu0 %v1909
    %2157 = vmatpush.msra.mxu0 %v1906
    %2158 = vmatpush.msra.mxu0 %v1903
    %2159 = vmatpush.msra.mxu0 %v1900
    %2160 = vmatpush.msra.mxu0 %v1897
    %2161 = vmatpush.msra.mxu0 %v1894
    %2162 = vmatpush.msra.mxu0 %v1891
    %2163 = vmatpush.msra.mxu0 %v1888
    %2164 = vmatpush.msra.mxu0 %v1885
    %2165 = vmatpush.msra.mxu0 %v1882
    %2166 = vmatmul.f32.gmra.mxu0 %v2146
    %v2167 = vpop.f32.mrf.mxu0
    %v2168 = vadd.f32 0.0, %v2167
    %2169 = vdwg.mxu0
    %2170 = vmatpush.msra.mxu0 %v1928
    %2171 = vmatpush.msra.mxu0 %v1925
    %2172 = vmatpush.msra.mxu0 %v1922
    %2173 = vmatpush.msra.mxu0 %v1919
    %2174 = vmatpush.msra.mxu0 %v1916
    %2175 = vmatpush.msra.mxu0 %v1913
    %2176 = vmatpush.msra.mxu0 %v1910
    %2177 = vmatpush.msra.mxu0 %v1907
    %2178 = vmatpush.msra.mxu0 %v1904
    %2179 = vmatpush.msra.mxu0 %v1901
    %2180 = vmatpush.msra.mxu0 %v1898
    %2181 = vmatpush.msra.mxu0 %v1895
    %2182 = vmatpush.msra.mxu0 %v1892
    %2183 = vmatpush.msra.mxu0 %v1889
    %2184 = vmatpush.msra.mxu0 %v1886
    %2185 = vmatpush.msra.mxu0 %v1883
    %2186 = vmatmul.f32.gmra.mxu0 %v2146
    %v2187 = vpop.f32.mrf.mxu0
    %v2188 = vadd.f32 0.0, %v2187
    %2189 = vdwg.mxu0
    %2190 = vmatpush.msra.mxu0 %v1929
    %2191 = vmatpush.msra.mxu0 %v1926
    %2192 = vmatpush.msra.mxu0 %v1923
    %2193 = vmatpush.msra.mxu0 %v1920
    %2194 = vmatpush.msra.mxu0 %v1917
    %2195 = vmatpush.msra.mxu0 %v1914
    %2196 = vmatpush.msra.mxu0 %v1911
    %2197 = vmatpush.msra.mxu0 %v1908
    %2198 = vmatpush.msra.mxu0 %v1905
    %2199 = vmatpush.msra.mxu0 %v1902
    %2200 = vmatpush.msra.mxu0 %v1899
    %2201 = vmatpush.msra.mxu0 %v1896
    %2202 = vmatpush.msra.mxu0 %v1893
    %2203 = vmatpush.msra.mxu0 %v1890
    %2204 = vmatpush.msra.mxu0 %v1887
    %2205 = vmatpush.msra.mxu0 %v1884
    %2206 = vmatmul.f32.gmra.mxu0 %v2146
    %v2207 = vpop.f32.mrf.mxu0
    %v2208 = vadd.f32 0.0, %v2207
    %2209 = vdwg.mxu0
    %v2210 = vadd.f32 %v2147, %v2168
    %v2211 = vadd.f32 %v2148, %v2188
    %v2212 = vxor.u32 %v2210, 2147483648
    %v2213 = vxor.u32 %v2211, 2147483648
    %v2214 = vmul.f32 %v2212, 1.442695
    %v2215 = vpow.pop %v2214
    %v2216 = vmul.f32 %v2213, 1.442695
    %v2217 = vpow.pop %v2216
    %v2218 = vadd.f32 %v2215, 1.0
    %v2219 = vadd.f32 %v2217, 1.0
    %v2220 = vrcp.pop %v2218
    %v2221 = vmul.f32 %v2218, %v2220
    %v2222 = vsub.f32 1.0, %v2221
    %v2223 = vmul.f32 %v2220, %v2222
    %v2224 = vadd.f32 %v2220, %v2223
    %vm2225 = vweird.f32 %v2218
    %vm2226 = vweird.f32 %v2220
    %vm2227 = vmor %vm2225, %vm2226
    %v2228 = vsel %vm2227, %v2220, %v2224
    %v2229 = vand.u32 2147483647, %v2218
    %vm2230 = vcmp.eq.f32.partialorder %v2229, 8.507059e+37
    %v2231 = vand.u32 %v2218, 2147483648
    %v2232 = vor.u32 1.1754944e-38, %v2231
    %v2233 = vsel %vm2230, %v2232, %v2228
    %v2234 = vmul.f32 1.0, %v2233
    %v2235 = vrcp.pop %v2219
    %v2236 = vmul.f32 %v2219, %v2235
    %v2237 = vsub.f32 1.0, %v2236
    %v2238 = vmul.f32 %v2235, %v2237
    %v2239 = vadd.f32 %v2235, %v2238
    %vm2240 = vweird.f32 %v2219
    %vm2241 = vweird.f32 %v2235
    %vm2242 = vmor %vm2240, %vm2241
    %v2243 = vsel %vm2242, %v2235, %v2239
    %v2244 = vand.u32 2147483647, %v2219
    %vm2245 = vcmp.eq.f32.partialorder %v2244, 8.507059e+37
    %v2246 = vand.u32 %v2219, 2147483648
    %v2247 = vor.u32 1.1754944e-38, %v2246
    %v2248 = vsel %vm2245, %v2247, %v2243
    %v2249 = vmul.f32 1.0, %v2248
    %v2250 = vadd.f32 %v2208, %v1877
    %v2251 = vmul.f32 %v2234, %v2250
    %v2252 = vadd.f32 %v2149, %v2251
    %v2253 = vtanh.pop %v2252
    %v2254 = vsub.f32 %v2146, %v2253
    %v2255 = vmul.f32 %v2249, %v2254
    %v2256 = vadd.f32 %v2253, %v2255
    %v2257 = vld [vmem:[%s851] sm:$0xff]
    %v2258 = vld [vmem:[%s851 + $0x8] sm:$0xff]
    %v2259 = vld [vmem:[%s851 + $0x10] sm:$0xff]
    %2260 = vmatpush.msra.mxu0 %v1927
    %2261 = vmatpush.msra.mxu0 %v1924
    %2262 = vmatpush.msra.mxu0 %v1921
    %2263 = vmatpush.msra.mxu0 %v1918
    %2264 = vmatpush.msra.mxu0 %v1915
    %2265 = vmatpush.msra.mxu0 %v1912
    %2266 = vmatpush.msra.mxu0 %v1909
    %2267 = vmatpush.msra.mxu0 %v1906
    %2268 = vmatpush.msra.mxu0 %v1903
    %2269 = vmatpush.msra.mxu0 %v1900
    %2270 = vmatpush.msra.mxu0 %v1897
    %2271 = vmatpush.msra.mxu0 %v1894
    %2272 = vmatpush.msra.mxu0 %v1891
    %2273 = vmatpush.msra.mxu0 %v1888
    %2274 = vmatpush.msra.mxu0 %v1885
    %2275 = vmatpush.msra.mxu0 %v1882
    %2276 = vmatmul.f32.gmra.mxu0 %v2256
    %v2277 = vpop.f32.mrf.mxu0
    %v2278 = vadd.f32 0.0, %v2277
    %2279 = vdwg.mxu0
    %2280 = vmatpush.msra.mxu0 %v1928
    %2281 = vmatpush.msra.mxu0 %v1925
    %2282 = vmatpush.msra.mxu0 %v1922
    %2283 = vmatpush.msra.mxu0 %v1919
    %2284 = vmatpush.msra.mxu0 %v1916
    %2285 = vmatpush.msra.mxu0 %v1913
    %2286 = vmatpush.msra.mxu0 %v1910
    %2287 = vmatpush.msra.mxu0 %v1907
    %2288 = vmatpush.msra.mxu0 %v1904
    %2289 = vmatpush.msra.mxu0 %v1901
    %2290 = vmatpush.msra.mxu0 %v1898
    %2291 = vmatpush.msra.mxu0 %v1895
    %2292 = vmatpush.msra.mxu0 %v1892
    %2293 = vmatpush.msra.mxu0 %v1889
    %2294 = vmatpush.msra.mxu0 %v1886
    %2295 = vmatpush.msra.mxu0 %v1883
    %2296 = vmatmul.f32.gmra.mxu0 %v2256
    %v2297 = vpop.f32.mrf.mxu0
    %v2298 = vadd.f32 0.0, %v2297
    %2299 = vdwg.mxu0
    %2300 = vmatpush.msra.mxu0 %v1929
    %2301 = vmatpush.msra.mxu0 %v1926
    %2302 = vmatpush.msra.mxu0 %v1923
    %2303 = vmatpush.msra.mxu0 %v1920
    %2304 = vmatpush.msra.mxu0 %v1917
    %2305 = vmatpush.msra.mxu0 %v1914
    %2306 = vmatpush.msra.mxu0 %v1911
    %2307 = vmatpush.msra.mxu0 %v1908
    %2308 = vmatpush.msra.mxu0 %v1905
    %2309 = vmatpush.msra.mxu0 %v1902
    %2310 = vmatpush.msra.mxu0 %v1899
    %2311 = vmatpush.msra.mxu0 %v1896
    %2312 = vmatpush.msra.mxu0 %v1893
    %2313 = vmatpush.msra.mxu0 %v1890
    %2314 = vmatpush.msra.mxu0 %v1887
    %2315 = vmatpush.msra.mxu0 %v1884
    %2316 = vmatmul.f32.gmra.mxu0 %v2256
    %v2317 = vpop.f32.mrf.mxu0
    %v2318 = vadd.f32 0.0, %v2317
    %2319 = vdwg.mxu0
    %v2320 = vadd.f32 %v2257, %v2278
    %v2321 = vadd.f32 %v2258, %v2298
    %v2322 = vxor.u32 %v2320, 2147483648
    %v2323 = vxor.u32 %v2321, 2147483648
    %v2324 = vmul.f32 %v2322, 1.442695
    %v2325 = vpow.pop %v2324
    %v2326 = vmul.f32 %v2323, 1.442695
    %v2327 = vpow.pop %v2326
    %v2328 = vadd.f32 %v2325, 1.0
    %v2329 = vadd.f32 %v2327, 1.0
    %v2330 = vrcp.pop %v2328
    %v2331 = vmul.f32 %v2328, %v2330
    %v2332 = vsub.f32 1.0, %v2331
    %v2333 = vmul.f32 %v2330, %v2332
    %v2334 = vadd.f32 %v2330, %v2333
    %vm2335 = vweird.f32 %v2328
    %vm2336 = vweird.f32 %v2330
    %vm2337 = vmor %vm2335, %vm2336
    %v2338 = vsel %vm2337, %v2330, %v2334
    %v2339 = vand.u32 2147483647, %v2328
    %vm2340 = vcmp.eq.f32.partialorder %v2339, 8.507059e+37
    %v2341 = vand.u32 %v2328, 2147483648
    %v2342 = vor.u32 1.1754944e-38, %v2341
    %v2343 = vsel %vm2340, %v2342, %v2338
    %v2344 = vmul.f32 1.0, %v2343
    %v2345 = vrcp.pop %v2329
    %v2346 = vmul.f32 %v2329, %v2345
    %v2347 = vsub.f32 1.0, %v2346
    %v2348 = vmul.f32 %v2345, %v2347
    %v2349 = vadd.f32 %v2345, %v2348
    %vm2350 = vweird.f32 %v2329
    %vm2351 = vweird.f32 %v2345
    %vm2352 = vmor %vm2350, %vm2351
    %v2353 = vsel %vm2352, %v2345, %v2349
    %v2354 = vand.u32 2147483647, %v2329
    %vm2355 = vcmp.eq.f32.partialorder %v2354, 8.507059e+37
    %v2356 = vand.u32 %v2329, 2147483648
    %v2357 = vor.u32 1.1754944e-38, %v2356
    %v2358 = vsel %vm2355, %v2357, %v2353
    %v2359 = vmul.f32 1.0, %v2358
    %v2360 = vadd.f32 %v2318, %v1877
    %v2361 = vmul.f32 %v2344, %v2360
    %v2362 = vadd.f32 %v2259, %v2361
    %v2363 = vtanh.pop %v2362
    %v2364 = vsub.f32 %v2256, %v2363
    %v2365 = vmul.f32 %v2359, %v2364
    %v2366 = vadd.f32 %v2363, %v2365
    %v2367 = vld [vmem:[%s1014] sm:$0xff]
    %v2368 = vld [vmem:[%s1014 + $0x8] sm:$0xff]
    %v2369 = vld [vmem:[%s1014 + $0x10] sm:$0xff]
    %2370 = vmatpush.msra.mxu0 %v1927
    %2371 = vmatpush.msra.mxu0 %v1924
    %2372 = vmatpush.msra.mxu0 %v1921
    %2373 = vmatpush.msra.mxu0 %v1918
    %2374 = vmatpush.msra.mxu0 %v1915
    %2375 = vmatpush.msra.mxu0 %v1912
    %2376 = vmatpush.msra.mxu0 %v1909
    %2377 = vmatpush.msra.mxu0 %v1906
    %2378 = vmatpush.msra.mxu0 %v1903
    %2379 = vmatpush.msra.mxu0 %v1900
    %2380 = vmatpush.msra.mxu0 %v1897
    %2381 = vmatpush.msra.mxu0 %v1894
    %2382 = vmatpush.msra.mxu0 %v1891
    %2383 = vmatpush.msra.mxu0 %v1888
    %2384 = vmatpush.msra.mxu0 %v1885
    %2385 = vmatpush.msra.mxu0 %v1882
    %2386 = vmatmul.f32.gmra.mxu0 %v2366
    %v2387 = vpop.f32.mrf.mxu0
    %v2388 = vadd.f32 0.0, %v2387
    %2389 = vdwg.mxu0
    %2390 = vmatpush.msra.mxu0 %v1928
    %2391 = vmatpush.msra.mxu0 %v1925
    %2392 = vmatpush.msra.mxu0 %v1922
    %2393 = vmatpush.msra.mxu0 %v1919
    %2394 = vmatpush.msra.mxu0 %v1916
    %2395 = vmatpush.msra.mxu0 %v1913
    %2396 = vmatpush.msra.mxu0 %v1910
    %2397 = vmatpush.msra.mxu0 %v1907
    %2398 = vmatpush.msra.mxu0 %v1904
    %2399 = vmatpush.msra.mxu0 %v1901
    %2400 = vmatpush.msra.mxu0 %v1898
    %2401 = vmatpush.msra.mxu0 %v1895
    %2402 = vmatpush.msra.mxu0 %v1892
    %2403 = vmatpush.msra.mxu0 %v1889
    %2404 = vmatpush.msra.mxu0 %v1886
    %2405 = vmatpush.msra.mxu0 %v1883
    %2406 = vmatmul.f32.gmra.mxu0 %v2366
    %v2407 = vpop.f32.mrf.mxu0
    %v2408 = vadd.f32 0.0, %v2407
    %2409 = vdwg.mxu0
    %2410 = vmatpush.msra.mxu0 %v1929
    %2411 = vmatpush.msra.mxu0 %v1926
    %2412 = vmatpush.msra.mxu0 %v1923
    %2413 = vmatpush.msra.mxu0 %v1920
    %2414 = vmatpush.msra.mxu0 %v1917
    %2415 = vmatpush.msra.mxu0 %v1914
    %2416 = vmatpush.msra.mxu0 %v1911
    %2417 = vmatpush.msra.mxu0 %v1908
    %2418 = vmatpush.msra.mxu0 %v1905
    %2419 = vmatpush.msra.mxu0 %v1902
    %2420 = vmatpush.msra.mxu0 %v1899
    %2421 = vmatpush.msra.mxu0 %v1896
    %2422 = vmatpush.msra.mxu0 %v1893
    %2423 = vmatpush.msra.mxu0 %v1890
    %2424 = vmatpush.msra.mxu0 %v1887
    %2425 = vmatpush.msra.mxu0 %v1884
    %2426 = vmatmul.f32.gmra.mxu0 %v2366
    %v2427 = vpop.f32.mrf.mxu0
    %v2428 = vadd.f32 0.0, %v2427
    %2429 = vdwg.mxu0
    %v2430 = vadd.f32 %v2367, %v2388
    %v2431 = vadd.f32 %v2368, %v2408
    %v2432 = vxor.u32 %v2430, 2147483648
    %v2433 = vxor.u32 %v2431, 2147483648
    %v2434 = vmul.f32 %v2432, 1.442695
    %v2435 = vpow.pop %v2434
    %v2436 = vmul.f32 %v2433, 1.442695
    %v2437 = vpow.pop %v2436
    %v2438 = vadd.f32 %v2435, 1.0
    %v2439 = vadd.f32 %v2437, 1.0
    %v2440 = vrcp.pop %v2438
    %v2441 = vmul.f32 %v2438, %v2440
    %v2442 = vsub.f32 1.0, %v2441
    %v2443 = vmul.f32 %v2440, %v2442
    %v2444 = vadd.f32 %v2440, %v2443
    %vm2445 = vweird.f32 %v2438
    %vm2446 = vweird.f32 %v2440
    %vm2447 = vmor %vm2445, %vm2446
    %v2448 = vsel %vm2447, %v2440, %v2444
    %v2449 = vand.u32 2147483647, %v2438
    %vm2450 = vcmp.eq.f32.partialorder %v2449, 8.507059e+37
    %v2451 = vand.u32 %v2438, 2147483648
    %v2452 = vor.u32 1.1754944e-38, %v2451
    %v2453 = vsel %vm2450, %v2452, %v2448
    %v2454 = vmul.f32 1.0, %v2453
    %v2455 = vrcp.pop %v2439
    %v2456 = vmul.f32 %v2439, %v2455
    %v2457 = vsub.f32 1.0, %v2456
    %v2458 = vmul.f32 %v2455, %v2457
    %v2459 = vadd.f32 %v2455, %v2458
    %vm2460 = vweird.f32 %v2439
    %vm2461 = vweird.f32 %v2455
    %vm2462 = vmor %vm2460, %vm2461
    %v2463 = vsel %vm2462, %v2455, %v2459
    %v2464 = vand.u32 2147483647, %v2439
    %vm2465 = vcmp.eq.f32.partialorder %v2464, 8.507059e+37
    %v2466 = vand.u32 %v2439, 2147483648
    %v2467 = vor.u32 1.1754944e-38, %v2466
    %v2468 = vsel %vm2465, %v2467, %v2463
    %v2469 = vmul.f32 1.0, %v2468
    %v2470 = vadd.f32 %v2428, %v1877
    %v2471 = vmul.f32 %v2454, %v2470
    %v2472 = vadd.f32 %v2369, %v2471
    %v2473 = vtanh.pop %v2472
    %v2474 = vsub.f32 %v2366, %v2473
    %v2475 = vmul.f32 %v2469, %v2474
    %v2476 = vadd.f32 %v2473, %v2475
    %v2477 = vld [vmem:[%s1177] sm:$0xff]
    %v2478 = vld [vmem:[%s1177 + $0x8] sm:$0xff]
    %v2479 = vld [vmem:[%s1177 + $0x10] sm:$0xff]
    %2480 = vmatpush.msra.mxu0 %v1927
    %2481 = vmatpush.msra.mxu0 %v1924
    %2482 = vmatpush.msra.mxu0 %v1921
    %2483 = vmatpush.msra.mxu0 %v1918
    %2484 = vmatpush.msra.mxu0 %v1915
    %2485 = vmatpush.msra.mxu0 %v1912
    %2486 = vmatpush.msra.mxu0 %v1909
    %2487 = vmatpush.msra.mxu0 %v1906
    %2488 = vmatpush.msra.mxu0 %v1903
    %2489 = vmatpush.msra.mxu0 %v1900
    %2490 = vmatpush.msra.mxu0 %v1897
    %2491 = vmatpush.msra.mxu0 %v1894
    %2492 = vmatpush.msra.mxu0 %v1891
    %2493 = vmatpush.msra.mxu0 %v1888
    %2494 = vmatpush.msra.mxu0 %v1885
    %2495 = vmatpush.msra.mxu0 %v1882
    %2496 = vmatmul.f32.gmra.mxu0 %v2476
    %v2497 = vpop.f32.mrf.mxu0
    %v2498 = vadd.f32 0.0, %v2497
    %2499 = vdwg.mxu0
    %2500 = vmatpush.msra.mxu0 %v1928
    %2501 = vmatpush.msra.mxu0 %v1925
    %2502 = vmatpush.msra.mxu0 %v1922
    %2503 = vmatpush.msra.mxu0 %v1919
    %2504 = vmatpush.msra.mxu0 %v1916
    %2505 = vmatpush.msra.mxu0 %v1913
    %2506 = vmatpush.msra.mxu0 %v1910
    %2507 = vmatpush.msra.mxu0 %v1907
    %2508 = vmatpush.msra.mxu0 %v1904
    %2509 = vmatpush.msra.mxu0 %v1901
    %2510 = vmatpush.msra.mxu0 %v1898
    %2511 = vmatpush.msra.mxu0 %v1895
    %2512 = vmatpush.msra.mxu0 %v1892
    %2513 = vmatpush.msra.mxu0 %v1889
    %2514 = vmatpush.msra.mxu0 %v1886
    %2515 = vmatpush.msra.mxu0 %v1883
    %2516 = vmatmul.f32.gmra.mxu0 %v2476
    %v2517 = vpop.f32.mrf.mxu0
    %v2518 = vadd.f32 0.0, %v2517
    %2519 = vdwg.mxu0
    %2520 = vmatpush.msra.mxu0 %v1929
    %2521 = vmatpush.msra.mxu0 %v1926
    %2522 = vmatpush.msra.mxu0 %v1923
    %2523 = vmatpush.msra.mxu0 %v1920
    %2524 = vmatpush.msra.mxu0 %v1917
    %2525 = vmatpush.msra.mxu0 %v1914
    %2526 = vmatpush.msra.mxu0 %v1911
    %2527 = vmatpush.msra.mxu0 %v1908
    %2528 = vmatpush.msra.mxu0 %v1905
    %2529 = vmatpush.msra.mxu0 %v1902
    %2530 = vmatpush.msra.mxu0 %v1899
    %2531 = vmatpush.msra.mxu0 %v1896
    %2532 = vmatpush.msra.mxu0 %v1893
    %2533 = vmatpush.msra.mxu0 %v1890
    %2534 = vmatpush.msra.mxu0 %v1887
    %2535 = vmatpush.msra.mxu0 %v1884
    %2536 = vmatmul.f32.gmra.mxu0 %v2476
    %v2537 = vpop.f32.mrf.mxu0
    %v2538 = vadd.f32 0.0, %v2537
    %2539 = vdwg.mxu0
    %v2540 = vadd.f32 %v2477, %v2498
    %v2541 = vadd.f32 %v2478, %v2518
    %v2542 = vxor.u32 %v2540, 2147483648
    %v2543 = vxor.u32 %v2541, 2147483648
    %v2544 = vmul.f32 %v2542, 1.442695
    %v2545 = vpow.pop %v2544
    %v2546 = vmul.f32 %v2543, 1.442695
    %v2547 = vpow.pop %v2546
    %v2548 = vadd.f32 %v2545, 1.0
    %v2549 = vadd.f32 %v2547, 1.0
    %v2550 = vrcp.pop %v2548
    %v2551 = vmul.f32 %v2548, %v2550
    %v2552 = vsub.f32 1.0, %v2551
    %v2553 = vmul.f32 %v2550, %v2552
    %v2554 = vadd.f32 %v2550, %v2553
    %vm2555 = vweird.f32 %v2548
    %vm2556 = vweird.f32 %v2550
    %vm2557 = vmor %vm2555, %vm2556
    %v2558 = vsel %vm2557, %v2550, %v2554
    %v2559 = vand.u32 2147483647, %v2548
    %vm2560 = vcmp.eq.f32.partialorder %v2559, 8.507059e+37
    %v2561 = vand.u32 %v2548, 2147483648
    %v2562 = vor.u32 1.1754944e-38, %v2561
    %v2563 = vsel %vm2560, %v2562, %v2558
    %v2564 = vmul.f32 1.0, %v2563
    %v2565 = vrcp.pop %v2549
    %v2566 = vmul.f32 %v2549, %v2565
    %v2567 = vsub.f32 1.0, %v2566
    %v2568 = vmul.f32 %v2565, %v2567
    %v2569 = vadd.f32 %v2565, %v2568
    %vm2570 = vweird.f32 %v2549
    %vm2571 = vweird.f32 %v2565
    %vm2572 = vmor %vm2570, %vm2571
    %v2573 = vsel %vm2572, %v2565, %v2569
    %v2574 = vand.u32 2147483647, %v2549
    %vm2575 = vcmp.eq.f32.partialorder %v2574, 8.507059e+37
    %v2576 = vand.u32 %v2549, 2147483648
    %v2577 = vor.u32 1.1754944e-38, %v2576
    %v2578 = vsel %vm2575, %v2577, %v2573
    %v2579 = vmul.f32 1.0, %v2578
    %v2580 = vadd.f32 %v2538, %v1877
    %v2581 = vmul.f32 %v2564, %v2580
    %v2582 = vadd.f32 %v2479, %v2581
    %v2583 = vtanh.pop %v2582
    %v2584 = vsub.f32 %v2476, %v2583
    %v2585 = vmul.f32 %v2579, %v2584
    %v2586 = vadd.f32 %v2583, %v2585
    %v2587 = vld [vmem:[%s1340] sm:$0xff]
    %v2588 = vld [vmem:[%s1340 + $0x8] sm:$0xff]
    %v2589 = vld [vmem:[%s1340 + $0x10] sm:$0xff]
    %2590 = vmatpush.msra.mxu0 %v1927
    %2591 = vmatpush.msra.mxu0 %v1924
    %2592 = vmatpush.msra.mxu0 %v1921
    %2593 = vmatpush.msra.mxu0 %v1918
    %2594 = vmatpush.msra.mxu0 %v1915
    %2595 = vmatpush.msra.mxu0 %v1912
    %2596 = vmatpush.msra.mxu0 %v1909
    %2597 = vmatpush.msra.mxu0 %v1906
    %2598 = vmatpush.msra.mxu0 %v1903
    %2599 = vmatpush.msra.mxu0 %v1900
    %2600 = vmatpush.msra.mxu0 %v1897
    %2601 = vmatpush.msra.mxu0 %v1894
    %2602 = vmatpush.msra.mxu0 %v1891
    %2603 = vmatpush.msra.mxu0 %v1888
    %2604 = vmatpush.msra.mxu0 %v1885
    %2605 = vmatpush.msra.mxu0 %v1882
    %2606 = vmatmul.f32.gmra.mxu0 %v2586
    %v2607 = vpop.f32.mrf.mxu0
    %v2608 = vadd.f32 0.0, %v2607
    %2609 = vdwg.mxu0
    %2610 = vmatpush.msra.mxu0 %v1928
    %2611 = vmatpush.msra.mxu0 %v1925
    %2612 = vmatpush.msra.mxu0 %v1922
    %2613 = vmatpush.msra.mxu0 %v1919
    %2614 = vmatpush.msra.mxu0 %v1916
    %2615 = vmatpush.msra.mxu0 %v1913
    %2616 = vmatpush.msra.mxu0 %v1910
    %2617 = vmatpush.msra.mxu0 %v1907
    %2618 = vmatpush.msra.mxu0 %v1904
    %2619 = vmatpush.msra.mxu0 %v1901
    %2620 = vmatpush.msra.mxu0 %v1898
    %2621 = vmatpush.msra.mxu0 %v1895
    %2622 = vmatpush.msra.mxu0 %v1892
    %2623 = vmatpush.msra.mxu0 %v1889
    %2624 = vmatpush.msra.mxu0 %v1886
    %2625 = vmatpush.msra.mxu0 %v1883
    %2626 = vmatmul.f32.gmra.mxu0 %v2586
    %v2627 = vpop.f32.mrf.mxu0
    %v2628 = vadd.f32 0.0, %v2627
    %2629 = vdwg.mxu0
    %2630 = vmatpush.msra.mxu0 %v1929
    %2631 = vmatpush.msra.mxu0 %v1926
    %2632 = vmatpush.msra.mxu0 %v1923
    %2633 = vmatpush.msra.mxu0 %v1920
    %2634 = vmatpush.msra.mxu0 %v1917
    %2635 = vmatpush.msra.mxu0 %v1914
    %2636 = vmatpush.msra.mxu0 %v1911
    %2637 = vmatpush.msra.mxu0 %v1908
    %2638 = vmatpush.msra.mxu0 %v1905
    %2639 = vmatpush.msra.mxu0 %v1902
    %2640 = vmatpush.msra.mxu0 %v1899
    %2641 = vmatpush.msra.mxu0 %v1896
    %2642 = vmatpush.msra.mxu0 %v1893
    %2643 = vmatpush.msra.mxu0 %v1890
    %2644 = vmatpush.msra.mxu0 %v1887
    %2645 = vmatpush.msra.mxu0 %v1884
    %2646 = vmatmul.f32.gmra.mxu0 %v2586
    %v2647 = vpop.f32.mrf.mxu0
    %v2648 = vadd.f32 0.0, %v2647
    %2649 = vdwg.mxu0
    %v2650 = vadd.f32 %v2587, %v2608
    %v2651 = vadd.f32 %v2588, %v2628
    %v2652 = vxor.u32 %v2650, 2147483648
    %v2653 = vxor.u32 %v2651, 2147483648
    %v2654 = vmul.f32 %v2652, 1.442695
    %v2655 = vpow.pop %v2654
    %v2656 = vmul.f32 %v2653, 1.442695
    %v2657 = vpow.pop %v2656
    %v2658 = vadd.f32 %v2655, 1.0
    %v2659 = vadd.f32 %v2657, 1.0
    %v2660 = vrcp.pop %v2658
    %v2661 = vmul.f32 %v2658, %v2660
    %v2662 = vsub.f32 1.0, %v2661
    %v2663 = vmul.f32 %v2660, %v2662
    %v2664 = vadd.f32 %v2660, %v2663
    %vm2665 = vweird.f32 %v2658
    %vm2666 = vweird.f32 %v2660
    %vm2667 = vmor %vm2665, %vm2666
    %v2668 = vsel %vm2667, %v2660, %v2664
    %v2669 = vand.u32 2147483647, %v2658
    %vm2670 = vcmp.eq.f32.partialorder %v2669, 8.507059e+37
    %v2671 = vand.u32 %v2658, 2147483648
    %v2672 = vor.u32 1.1754944e-38, %v2671
    %v2673 = vsel %vm2670, %v2672, %v2668
    %v2674 = vmul.f32 1.0, %v2673
    %v2675 = vrcp.pop %v2659
    %v2676 = vmul.f32 %v2659, %v2675
    %v2677 = vsub.f32 1.0, %v2676
    %v2678 = vmul.f32 %v2675, %v2677
    %v2679 = vadd.f32 %v2675, %v2678
    %vm2680 = vweird.f32 %v2659
    %vm2681 = vweird.f32 %v2675
    %vm2682 = vmor %vm2680, %vm2681
    %v2683 = vsel %vm2682, %v2675, %v2679
    %v2684 = vand.u32 2147483647, %v2659
    %vm2685 = vcmp.eq.f32.partialorder %v2684, 8.507059e+37
    %v2686 = vand.u32 %v2659, 2147483648
    %v2687 = vor.u32 1.1754944e-38, %v2686
    %v2688 = vsel %vm2685, %v2687, %v2683
    %v2689 = vmul.f32 1.0, %v2688
    %v2690 = vadd.f32 %v2648, %v1877
    %v2691 = vmul.f32 %v2674, %v2690
    %v2692 = vadd.f32 %v2589, %v2691
    %v2693 = vtanh.pop %v2692
    %v2694 = vsub.f32 %v2586, %v2693
    %v2695 = vmul.f32 %v2689, %v2694
    %v2696 = vadd.f32 %v2693, %v2695
    %v2697 = vld [vmem:[%s1503] sm:$0xff]
    %v2698 = vld [vmem:[%s1503 + $0x8] sm:$0xff]
    %v2699 = vld [vmem:[%s1503 + $0x10] sm:$0xff]
    %2700 = vmatpush.msra.mxu0 %v1927
    %2701 = vmatpush.msra.mxu0 %v1924
    %2702 = vmatpush.msra.mxu0 %v1921
    %2703 = vmatpush.msra.mxu0 %v1918
    %2704 = vmatpush.msra.mxu0 %v1915
    %2705 = vmatpush.msra.mxu0 %v1912
    %2706 = vmatpush.msra.mxu0 %v1909
    %2707 = vmatpush.msra.mxu0 %v1906
    %2708 = vmatpush.msra.mxu0 %v1903
    %2709 = vmatpush.msra.mxu0 %v1900
    %2710 = vmatpush.msra.mxu0 %v1897
    %2711 = vmatpush.msra.mxu0 %v1894
    %2712 = vmatpush.msra.mxu0 %v1891
    %2713 = vmatpush.msra.mxu0 %v1888
    %2714 = vmatpush.msra.mxu0 %v1885
    %2715 = vmatpush.msra.mxu0 %v1882
    %2716 = vmatmul.f32.gmra.mxu0 %v2696
    %v2717 = vpop.f32.mrf.mxu0
    %v2718 = vadd.f32 0.0, %v2717
    %2719 = vdwg.mxu0
    %2720 = vmatpush.msra.mxu0 %v1928
    %2721 = vmatpush.msra.mxu0 %v1925
    %2722 = vmatpush.msra.mxu0 %v1922
    %2723 = vmatpush.msra.mxu0 %v1919
    %2724 = vmatpush.msra.mxu0 %v1916
    %2725 = vmatpush.msra.mxu0 %v1913
    %2726 = vmatpush.msra.mxu0 %v1910
    %2727 = vmatpush.msra.mxu0 %v1907
    %2728 = vmatpush.msra.mxu0 %v1904
    %2729 = vmatpush.msra.mxu0 %v1901
    %2730 = vmatpush.msra.mxu0 %v1898
    %2731 = vmatpush.msra.mxu0 %v1895
    %2732 = vmatpush.msra.mxu0 %v1892
    %2733 = vmatpush.msra.mxu0 %v1889
    %2734 = vmatpush.msra.mxu0 %v1886
    %2735 = vmatpush.msra.mxu0 %v1883
    %2736 = vmatmul.f32.gmra.mxu0 %v2696
    %v2737 = vpop.f32.mrf.mxu0
    %v2738 = vadd.f32 0.0, %v2737
    %2739 = vdwg.mxu0
    %2740 = vmatpush.msra.mxu0 %v1929
    %2741 = vmatpush.msra.mxu0 %v1926
    %2742 = vmatpush.msra.mxu0 %v1923
    %2743 = vmatpush.msra.mxu0 %v1920
    %2744 = vmatpush.msra.mxu0 %v1917
    %2745 = vmatpush.msra.mxu0 %v1914
    %2746 = vmatpush.msra.mxu0 %v1911
    %2747 = vmatpush.msra.mxu0 %v1908
    %2748 = vmatpush.msra.mxu0 %v1905
    %2749 = vmatpush.msra.mxu0 %v1902
    %2750 = vmatpush.msra.mxu0 %v1899
    %2751 = vmatpush.msra.mxu0 %v1896
    %2752 = vmatpush.msra.mxu0 %v1893
    %2753 = vmatpush.msra.mxu0 %v1890
    %2754 = vmatpush.msra.mxu0 %v1887
    %2755 = vmatpush.msra.mxu0 %v1884
    %2756 = vmatmul.f32.gmra.mxu0 %v2696
    %v2757 = vpop.f32.mrf.mxu0
    %v2758 = vadd.f32 0.0, %v2757
    %2759 = vdwg.mxu0
    %v2760 = vadd.f32 %v2697, %v2718
    %v2761 = vadd.f32 %v2698, %v2738
    %v2762 = vxor.u32 %v2760, 2147483648
    %v2763 = vxor.u32 %v2761, 2147483648
    %v2764 = vmul.f32 %v2762, 1.442695
    %v2765 = vpow.pop %v2764
    %v2766 = vmul.f32 %v2763, 1.442695
    %v2767 = vpow.pop %v2766
    %v2768 = vadd.f32 %v2765, 1.0
    %v2769 = vadd.f32 %v2767, 1.0
    %v2770 = vrcp.pop %v2768
    %v2771 = vmul.f32 %v2768, %v2770
    %v2772 = vsub.f32 1.0, %v2771
    %v2773 = vmul.f32 %v2770, %v2772
    %v2774 = vadd.f32 %v2770, %v2773
    %vm2775 = vweird.f32 %v2768
    %vm2776 = vweird.f32 %v2770
    %vm2777 = vmor %vm2775, %vm2776
    %v2778 = vsel %vm2777, %v2770, %v2774
    %v2779 = vand.u32 2147483647, %v2768
    %vm2780 = vcmp.eq.f32.partialorder %v2779, 8.507059e+37
    %v2781 = vand.u32 %v2768, 2147483648
    %v2782 = vor.u32 1.1754944e-38, %v2781
    %v2783 = vsel %vm2780, %v2782, %v2778
    %v2784 = vmul.f32 1.0, %v2783
    %v2785 = vrcp.pop %v2769
    %v2786 = vmul.f32 %v2769, %v2785
    %v2787 = vsub.f32 1.0, %v2786
    %v2788 = vmul.f32 %v2785, %v2787
    %v2789 = vadd.f32 %v2785, %v2788
    %vm2790 = vweird.f32 %v2769
    %vm2791 = vweird.f32 %v2785
    %vm2792 = vmor %vm2790, %vm2791
    %v2793 = vsel %vm2792, %v2785, %v2789
    %v2794 = vand.u32 2147483647, %v2769
    %vm2795 = vcmp.eq.f32.partialorder %v2794, 8.507059e+37
    %v2796 = vand.u32 %v2769, 2147483648
    %v2797 = vor.u32 1.1754944e-38, %v2796
    %v2798 = vsel %vm2795, %v2797, %v2793
    %v2799 = vmul.f32 1.0, %v2798
    %v2800 = vadd.f32 %v2758, %v1877
    %v2801 = vmul.f32 %v2784, %v2800
    %v2802 = vadd.f32 %v2699, %v2801
    %v2803 = vtanh.pop %v2802
    %v2804 = vsub.f32 %v2696, %v2803
    %v2805 = vmul.f32 %v2799, %v2804
    %v2806 = vadd.f32 %v2803, %v2805
    %v2807 = vld [vmem:[#allocation15] sm:$0xff]
    %v2808 = vld [vmem:[#allocation15 + $0x8] sm:$0xff]
    %v2809 = vld [vmem:[#allocation15 + $0x10] sm:$0xff]
    %v2810 = vld [vmem:[#allocation15 + $0x18] sm:$0xff]
    %v2811 = vld [vmem:[#allocation15 + $0x20] sm:$0xff]
    %v2812 = vld [vmem:[#allocation15 + $0x28] sm:$0xff]
    %v2813 = vld [vmem:[#allocation15 + $0x30] sm:$0xff]
    %v2814 = vld [vmem:[#allocation15 + $0x38] sm:$0xff]
    %v2815 = vld [vmem:[#allocation15 + $0x40] sm:$0xff]
    %v2816 = vld [vmem:[#allocation15 + $0x48] sm:$0xff]
    %v2817 = vld [vmem:[#allocation15 + $0x50] sm:$0xff]
    %v2818 = vld [vmem:[#allocation15 + $0x58] sm:$0xff]
    %v2819 = vld [vmem:[#allocation15 + $0x60] sm:$0xff]
    %v2820 = vld [vmem:[#allocation15 + $0x68] sm:$0xff]
    %v2821 = vld [vmem:[#allocation15 + $0x70] sm:$0xff]
    %v2822 = vld [vmem:[#allocation15 + $0x78] sm:$0xff]
    %v2823 = vld [vmem:[%s10] sm:$0x1]
    %v2825 = vperm.slane %v2823, 0
    %2827 = vmatpush.msra.mxu0 %v2822
    %2828 = vmatpush.msra.mxu0 %v2821
    %2829 = vmatpush.msra.mxu0 %v2820
    %2830 = vmatpush.msra.mxu0 %v2819
    %2831 = vmatpush.msra.mxu0 %v2818
    %2832 = vmatpush.msra.mxu0 %v2817
    %2833 = vmatpush.msra.mxu0 %v2816
    %2834 = vmatpush.msra.mxu0 %v2815
    %2835 = vmatpush.msra.mxu0 %v2814
    %2836 = vmatpush.msra.mxu0 %v2813
    %2837 = vmatpush.msra.mxu0 %v2812
    %2838 = vmatpush.msra.mxu0 %v2811
    %2839 = vmatpush.msra.mxu0 %v2810
    %2840 = vmatpush.msra.mxu0 %v2809
    %2841 = vmatpush.msra.mxu0 %v2808
    %2842 = vmatpush.msra.mxu0 %v2807
    %2843 = vmatmul.f32.gmra.mxu0 %v2806
    %v2844 = vpop.f32.mrf.mxu0
    %v2845 = vadd.f32 %v2825, %v2844
    %2846 = vdwg.mxu0
    %2847 = vst [vmem:[#allocation16] sm:$0xff] %v2845
    // Predicated region
    $region74: #{tpu_custom_call.1} parent=1 // pred_check
      _
    $region75: #{tpu_custom_call.1} parent=1 // pred_check_branch
      %2849 = sbr.rel (0) target = $region77
    $region76: #{tpu_custom_call.1} parent=1 // pred_region
      %2851 = vsyncadd [#allocation6], 0
      %s2853 = sshll.u32 [#allocation16], 4
      %s2854 = int_to_ptr.vmem [resolvable:$true] %s2853
      %s2855 = sshll.u32 %s11, 4
      %s2856 = int_to_ptr.hbm [resolvable:$true] %s2855
      %2858 = dma.vmem_to_hbm [thread:$0]  %s2854, 128, %s2856, [#allocation6]
    $region77: #{tpu_custom_call.1} parent=1 // pred_fallthru
      _
    // Predicated region
    $region78: #{tpu_custom_call.1} parent=1 // pred_check
      _
    $region79: #{tpu_custom_call.1} parent=1 // pred_check_branch
      %2860 = sbr.rel (0) target = $region81
    $region80: #{tpu_custom_call.1} parent=1 // pred_region
      %2862 = dma.done [#allocation6], 128
    $region81: #{tpu_custom_call.1} parent=1 // pred_fallthru
      _
    %2863 = vsyncpa [#allocation5], 1
    %2864 = vsyncpa [#allocation8], 1
    %2865 = vsyncpa [#allocation11], 1
    %2866 = vsyncpa [#allocation14], 1
    %2867 = vsyncpa [#allocation6], 1

</llo_original>
